<compile_context>
chip_gen: v7x
topology: tpu7x:2x2x1
jax: 0.10.0
libtpu: 0.0.40
codegen_flags: <defaults>
</compile_context>

<pallas_src>
import functools
import math

import numpy as np
import jax
import jax.numpy as jnp
from jax.experimental import pallas as pl
from jax.experimental.pallas import tpu as pltpu


def _round_up(x, m):
    return ((x + m - 1) // m) * m


# ----------------------------------------------------------------------------
# Basis / parameter construction (glue; mirrors the torch __init__ exactly)
# ----------------------------------------------------------------------------
def reg_rot_mat(theta, k):
    slice_angle = 2.0 * math.pi / k
    index_shift = theta / slice_angle
    i = int(np.floor(index_shift))
    first_col = np.zeros(k, dtype=np.float32)
    offset = (theta - slice_angle * i) / slice_angle
    w_i = 1.0 - offset
    w_ip = offset
    # NOTE: the torch source hard-codes mod 8 here; the module asserts k == 8 so it matches.
    first_col[i % 8] = w_i
    first_col[(i + 1) % 8] = w_ip
    m = np.stack([np.roll(first_col, s) for s in range(k)], axis=-1)
    return m.astype(np.float32)


def basis_element_column(num_theta, i, j, k):
    C = np.zeros((num_theta, k, k), dtype=np.float32)
    C[0, i, j] = 1.0
    for ind in range(1, num_theta):
        theta_i = float(np.float32(ind * 2.0 * math.pi / num_theta))
        C[ind] = reg_rot_mat(theta_i, k) @ C[0] @ reg_rot_mat(-theta_i, k)
    return C


def generate_kernel_basis(num_radii, num_theta, k):
    r = num_radii
    KB_outer = np.zeros((r, k, k, r + 1, num_theta, k, k), dtype=np.float32)
    for i in range(k):
        for j in range(k):
            col = basis_element_column(num_theta, i, j, k)
            for r1 in range(r):
                KB_outer[r1, i, j, r1 + 1] = col
    K_bullseye = np.zeros((k, r + 1, num_theta, k, k), dtype=np.float32)
    for l in range(k):
        first_col = np.zeros(k, dtype=np.float32)
        first_col[l] = 1.0
        M = np.stack([np.roll(first_col, s) for s in range(k)], axis=-1)
        K_bullseye[l, 0, :] = M
    return KB_outer, K_bullseye


def compute_kernel(kb_outer, k_bullseye, outer_w, bullseye_w):
    # -> [c_out, c_in, num_radii+1, num_theta, k, k]
    k1 = jnp.einsum('pabrtij,xypab->yxrtij', kb_outer, outer_w)
    k2 = jnp.einsum('lrtij,xyl->yxrtij', k_bullseye, bullseye_w)
    return k1 + k2


def build_interp_table(kernel):
    # kernel: [c_out, c_in, R, theta, ky, kx]; pad theta circularly like the torch code:
    # [theta-1, 0..theta-1, 0]  -> H = theta + 2
    pad = jnp.concatenate([kernel[:, :, :, -1:], kernel, kernel[:, :, :, :1]], axis=3)
    # table indexed as [h (padded theta), w (radius), c_out, c_in, ky, kx]
    tab = jnp.transpose(pad, (3, 2, 0, 1, 4, 5))
    H, W, c_out, c_in, k, _ = tab.shape
    # K3[t=(h,w), f=(c_in, kx), o=(c_out, ky)]
    K3 = jnp.transpose(tab, (0, 1, 3, 5, 2, 4)).reshape(H * W, c_in * k, c_out * k)
    return K3


# ----------------------------------------------------------------------------
# Geometry glue (polar coords + grid_sample bilinear weights)
# ----------------------------------------------------------------------------
def polar_coords(vec, eps=1e-9):
    vx, vy = vec[..., 0], vec[..., 1]
    r = jnp.sqrt(vx * vx + vy * vy + eps)
    nz = ~((vx == 0.0) & (vy == 0.0))
    theta = jnp.where(nz, jnp.arctan2(vy, vx), 0.0)
    return jnp.stack([r, theta], axis=-1)


def _bilinear_corner_terms(polar, num_theta, num_radii):
    """F.grid_sample(padded_kernel, grid, 'bilinear', zeros, align_corners=False) as a list of
    (table-cell index, weight) pairs (<=4 per point)."""
    H = num_theta + 2
    W = num_radii + 1
    gx = 2.0 * polar[..., 0] - 1.0
    gy = polar[..., 1] * (1.0 / math.pi) * (num_theta / (num_theta + 2))
    ix = ((gx + 1.0) * W - 1.0) / 2.0
    iy = ((gy + 1.0) * H - 1.0) / 2.0
    x0 = jnp.floor(ix)
    y0 = jnp.floor(iy)
    wx1 = ix - x0
    wy1 = iy - y0
    x0i = x0.astype(jnp.int32)
    y0i = y0.astype(jnp.int32)
    terms = []
    for xc, yc, w in [
        (x0i, y0i, (1.0 - wx1) * (1.0 - wy1)),
        (x0i + 1, y0i, wx1 * (1.0 - wy1)),
        (x0i, y0i + 1, (1.0 - wx1) * wy1),
        (x0i + 1, y0i + 1, wx1 * wy1),
    ]:
        valid = (xc >= 0) & (xc < W) & (yc >= 0) & (yc < H)
        w = w * valid.astype(jnp.float32)
        idx = jnp.clip(yc, 0, H - 1) * W + jnp.clip(xc, 0, W - 1)
        terms.append((idx, w))
    return terms


def bilinear_weights_bmnt(polar, num_theta, num_radii):
    """Reference-path layout: [B, M, N, T] with T = (theta+2)*(radii+1)."""
    T = (num_theta + 2) * (num_radii + 1)
    P = jnp.zeros(polar.shape[:-1] + (T,), jnp.float32)
    for idx, w in _bilinear_corner_terms(polar, num_theta, num_radii):
        P = P + w[..., None] * jax.nn.one_hot(idx, T, dtype=jnp.float32)
    return P


# ----------------------------------------------------------------------------
# Pallas kernel: the einsum hot path
# ----------------------------------------------------------------------------
def _equiconv_kernel(pw_ref, ff1t_ref, cft_ref, k3t_ref, o_ref, s_acc,
                     *, tn, num_feat, ff_resident):
    # pw_ref  : [1, 1, tn, T_pad*tm]        bf16  bilinear*attention weights, (t,m) in lanes
    # ff1t_ref: [1, F1_pad, N_pad (or tn)]  bf16  transposed [features | ones] (N in lanes)
    # cft_ref : [1, F, tm]                  f32   transposed center features (M in lanes)
    # k3t_ref : [O_pad, T_pad*F]            bf16  transposed flattened kernel table
    # o_ref   : [1, O_pad, tm]              f32   transposed output (M in lanes)
    # s_acc   : [F1_pad, T_pad*tm]          f32   lane-dense accumulator over the N grid axis
    ni = pl.program_id(2)
    n_steps = pl.num_programs(2)

    @pl.when(ni == 0)
    def _init():
        s_acc[...] = jnp.zeros_like(s_acc)

    if ff_resident:
        # FF1^T is resident for the whole batch element; slice the current N chunk.
        start = pl.multiple_of(ni * tn, 128)
        lhs = ff1t_ref[0, :, pl.ds(start, tn)]      # [F1_pad, tn] bf16
    else:
        lhs = ff1t_ref[0]                           # [F1_pad, tn] bf16

    # Stage 1 (transposed): S^T[f|1, (t,m)] += ff1^T[f|1, n] @ Pw[n, (t,m)]
    #   output is T_pad*tm lanes wide (dense 128-lane stores, full MXU output width).
    s_acc[...] += jnp.dot(lhs, pw_ref[0, 0], preferred_element_type=jnp.float32)

    @pl.when(ni == n_steps - 1)
    def _finalize():
        f = num_feat                                 # F = c_in * k  (multiple of 8)
        tm = cft_ref.shape[2]
        t_pad = s_acc.shape[1] // tm
        cft = cft_ref[0]                             # [F, tm] f32
        blocks = []
        for t in range(t_pad):                       # static unroll over the small table dim
            feat = s_acc[pl.ds(0, f), pl.ds(t * tm, tm)]      # [F, tm]  sum_n Pw*ff
            ones = s_acc[pl.ds(f, 1), pl.ds(t * tm, tm)]      # [1, tm]  sum_n Pw
            blocks.append(feat - ones * cft)         # relative-feature correction (sublane bcast)
        # 8-aligned sublane stacking -> [T_pad*F, tm]; one lane-dense stage-2 matmul.
        s2 = jnp.concatenate(blocks, axis=0).astype(k3t_ref.dtype)
        o_ref[0] = jnp.dot(k3t_ref[...], s2,
                           preferred_element_type=jnp.float32).astype(o_ref.dtype)


def pallas_equiconv(Pw, FF1T, CFT, K3T, *, tm, tn, t_pad, ff_resident, vmem_limit_bytes):
    B, m_tiles, N_pad, tptm = Pw.shape
    assert tptm == t_pad * tm
    F1_pad = FF1T.shape[1]
    F = CFT.shape[1]
    M_pad = CFT.shape[2]
    O_pad, TF = K3T.shape
    n_tiles = N_pad // tn
    grid = (B, m_tiles, n_tiles)

    kernel = functools.partial(_equiconv_kernel, tn=tn, num_feat=F, ff_resident=ff_resident)

    if ff_resident:
        ff_spec = pl.BlockSpec((1, F1_pad, N_pad), lambda b, mi, ni: (b, 0, 0))
    else:
        ff_spec = pl.BlockSpec((1, F1_pad, tn), lambda b, mi, ni: (b, 0, ni))

    flops = 2 * B * F1_pad * N_pad * t_pad * M_pad + 2 * B * M_pad * O_pad * TF
    bytes_accessed = (Pw.size * Pw.dtype.itemsize + FF1T.size * FF1T.dtype.itemsize
                      + CFT.size * CFT.dtype.itemsize + K3T.size * K3T.dtype.itemsize
                      + B * M_pad * O_pad * 4)

    return pl.pallas_call(
        kernel,
        out_shape=jax.ShapeDtypeStruct((B, O_pad, M_pad), jnp.float32),
        grid_spec=pltpu.PrefetchScalarGridSpec(
            num_scalar_prefetch=0,
            grid=grid,
            in_specs=[
                pl.BlockSpec((1, 1, tn, tptm), lambda b, mi, ni: (b, mi, ni, 0)),
                ff_spec,
                pl.BlockSpec((1, F, tm), lambda b, mi, ni: (b, 0, mi)),
                pl.BlockSpec((O_pad, TF), lambda b, mi, ni: (0, 0)),
            ],
            out_specs=pl.BlockSpec((1, O_pad, tm), lambda b, mi, ni: (b, 0, mi)),
            scratch_shapes=[pltpu.VMEM((F1_pad, tptm), jnp.float32)],
        ),
        compiler_params=pltpu.CompilerParams(
            dimension_semantics=("parallel", "parallel", "arbitrary"),
            vmem_limit_bytes=int(vmem_limit_bytes),
        ),
        cost_estimate=pl.CostEstimate(
            flops=int(flops), transcendentals=0, bytes_accessed=int(bytes_accessed)),
    )(Pw, FF1T, CFT, K3T)


# ----------------------------------------------------------------------------
# Module wrapper
# ----------------------------------------------------------------------------
class RelEquiCtsConv2dRegToRegPallas:
    def __init__(self, in_channels, out_channels, radius, num_radii, num_theta, k,
                 key, use_attention=True):
        assert k == 8, "torch RegRotMat hard-codes mod 8; only k == 8 is supported."
        self.in_channels = in_channels
        self.out_channels = out_channels
        self.radius = radius
        self.num_radii = num_radii
        self.num_theta = num_theta
        self.k = k
        self.use_attention = use_attention

        self.T = (num_theta + 2) * (num_radii + 1)
        self.T_pad = _round_up(self.T, 8)
        self.F = in_channels * k                 # multiple of 8 (k == 8)
        self.F1 = self.F + 1                     # features + ones row
        self.F1_pad = _round_up(self.F1, 8)
        self.O = out_channels * k
        self.O_pad = _round_up(self.O, 128)

        kb_outer, k_bullseye = generate_kernel_basis(num_radii, num_theta, k)
        k1, k2 = jax.random.split(key)
        scale = 1.0 / math.sqrt(float(in_channels))
        self.outer_weights = (jax.random.uniform(
            k1, (in_channels, out_channels, num_radii, k, k), jnp.float32) - 0.5) * scale
        self.bullseye_weights = (jax.random.uniform(
            k2, (in_channels, out_channels, k), jnp.float32) - 0.5) * scale

        kernel = compute_kernel(jnp.asarray(kb_outer), jnp.asarray(k_bullseye),
                                self.outer_weights, self.bullseye_weights)
        K3_raw = build_interp_table(kernel)                       # [T, F, O] f32 (reference)
        self.K3_ref = K3_raw
        K3_pad = jnp.zeros((self.T_pad, self.F, self.O_pad), jnp.float32)
        K3_pad = K3_pad.at[:self.T, :, :self.O].set(K3_raw)
        # stage-2 table, transposed host-side: K3T[o, t*F + f]   (O rows, lane-dense T_pad*F)
        self.K3T = jnp.transpose(K3_pad, (2, 0, 1)).reshape(
            self.O_pad, self.T_pad * self.F).astype(jnp.bfloat16)

    # ---------------- generation-aware tiling ----------------
    def _pick_tiles(self, B, M, N):
        try:
            vmem_cap = int(pltpu.get_tpu_info().vmem_capacity_bytes)
        except Exception:
            vmem_cap = 64 * 1024 * 1024          # conservative default (v7x per-core VMEM)

        # M sits in lanes -> tm must be a multiple of 128.  Keep >= 2 parallel grid points
        # when B == 1 so both v7x TensorCores get work.
        if M <= 128:
            tm = 128
        elif B == 1 and M <= 256:
            tm = 128
        else:
            tm = 256
        M_pad = _round_up(M, tm)

        # N (reduction) tile: largest tile whose double-buffered Pw stream fits the budget
        # and that divides the 128-rounded N (avoid gross padding waste for awkward N).
        pw_budget = (vmem_cap * 2) // 5
        n_pad128 = _round_up(N, 128)
        tn = 128
        for cand in (1024, 512, 256):
            if n_pad128 % cand == 0 and 2 * cand * self.T_pad * tm * 2 <= pw_budget:
                tn = cand
                break
        N_pad = _round_up(N, tn)

        # Keep FF1^T resident in VMEM (fetched once per batch element) when it is small.
        ff_resident = (2 * self.F1_pad * N_pad * 2) <= 8 * 1024 * 1024

        ff_bytes = 2 * self.F1_pad * (N_pad if ff_resident else tn) * 2
        ws = (2 * tn * self.T_pad * tm * 2            # Pw double buffer (bf16)
              + ff_bytes
              + self.O_pad * self.T_pad * self.F * 2  # K3^T
              + 2 * self.F * tm * 4                   # CF^T double buffer
              + self.F1_pad * self.T_pad * tm * 4     # accumulator
              + 2 * self.O_pad * tm * 4)              # output double buffer
        vmem_limit = min(max(ws + 8 * 1024 * 1024, 32 * 1024 * 1024), (vmem_cap * 3) // 4)
        return tm, tn, M_pad, N_pad, ff_resident, vmem_limit

    def _attention(self, rel, mask_bn):
        if self.use_attention:
            r2 = jnp.sum(rel * rel, axis=-1)
            return jax.nn.relu((1.0 - r2) ** 3) * mask_bn[:, None, :]     # [B,M,N]
        return jnp.ones(rel.shape[:3], jnp.float32)

    # ---------------- host-side prep (fused bf16 Pw construction) ----------------
    def prepare(self, field, center, field_feat, field_mask, ctr_feat):
        B, N = field.shape[0], field.shape[1]
        M = center.shape[1]
        tm, tn, M_pad, N_pad, ff_resident, vmem_limit = self._pick_tiles(B, M, N)
        m_tiles = M_pad // tm

        # Pad the *geometry* (small tensors) up front; all downstream work is pre-padded.
        center_p = jnp.pad(center, ((0, 0), (0, M_pad - M), (0, 0)))
        field_p = jnp.pad(field, ((0, 0), (0, N_pad - N), (0, 0)))
        mask_p = jnp.pad(field_mask[..., 0], ((0, 0), (0, N_pad - N)))       # [B, N_pad]
        n_valid = (jnp.arange(N_pad) < N).astype(jnp.float32)                # [N_pad]

        rel = (field_p[:, None, :, :] - center_p[:, :, None, :]) / self.radius  # [B,M_pad,N_pad,2]
        polar = polar_coords(rel)
        if self.use_attention:
            att = self._attention(rel, mask_p)                               # mask zero-pads N too
        else:
            # torch ignores field_mask when use_attention=False; only mask out the N padding.
            att = jnp.broadcast_to(n_valid[None, None, :], rel.shape[:3]).astype(jnp.float32)

        terms = _bilinear_corner_terms(polar, self.num_theta, self.num_radii)

        # [B, M_pad, N_pad] -> [B, M_tiles, N_pad, tm]  (transpose the SMALL per-corner tensors,
        # then do the 32x one-hot expansion last so the big bf16 Pw is written exactly once).
        def to_tiles(x):
            return x.reshape(B, m_tiles, tm, N_pad).transpose(0, 1, 3, 2)

        t_iota = jnp.arange(self.T_pad, dtype=jnp.int32).reshape(1, 1, 1, self.T_pad, 1)
        contribs = []
        for idx, w in terms:
            wa = to_tiles(w * att)[:, :, :, None, :]                         # [B,Mt,N_pad,1,tm]
            ci = to_tiles(idx)[:, :, :, None, :]
            contribs.append(jnp.where(ci == t_iota, wa, 0.0))
        pw = functools.reduce(lambda a, b: a + b, contribs)                  # [B,Mt,N_pad,T_pad,tm]
        Pw = pw.astype(jnp.bfloat16).reshape(B, m_tiles, N_pad, self.T_pad * tm)

        # FF1^T: [B, F1_pad, N_pad] bf16  = [features | ones | zero-pad]^T  (N in lanes)
        ff = field_feat.reshape(B, N, self.F).astype(jnp.float32)
        ff1t = jnp.concatenate([jnp.swapaxes(ff, 1, 2),
                                jnp.ones((B, 1, N), jnp.float32)], axis=1)
        ff1t = jnp.pad(ff1t, ((0, 0), (0, self.F1_pad - self.F1), (0, N_pad - N)))
        FF1T = ff1t.astype(jnp.bfloat16)

        # CF^T: [B, F, M_pad] f32  (M in lanes; used in the f32 finalize)
        cf = ctr_feat.reshape(B, M, self.F).astype(jnp.float32)
        CFT = jnp.pad(jnp.swapaxes(cf, 1, 2), ((0, 0), (0, 0), (0, M_pad - M)))

        return Pw, FF1T, CFT, tm, tn, ff_resident, vmem_limit

    def __call__(self, field, center, field_feat, field_mask, ctr_feat):
        B, M = center.shape[0], center.shape[1]
        Pw, FF1T, CFT, tm, tn, ff_resident, vmem_limit = self.prepare(
            field, center, field_feat, field_mask, ctr_feat)
        outT = pallas_equiconv(Pw, FF1T, CFT, self.K3T, tm=tm, tn=tn, t_pad=self.T_pad,
                               ff_resident=ff_resident,
                               vmem_limit_bytes=vmem_limit)                   # [B, O_pad, M_pad]
        out = jnp.swapaxes(outT[:, :self.O, :M], 1, 2)                        # [B, M, O]
        return out.reshape(B, M, self.out_channels, self.k)                   # [b,m,o,y]

    def reference(self, field, center, field_feat, field_mask, ctr_feat):
        # Pure-JAX f32 reference (same grid_sample reformulation, no algebraic split).
        B, N = field.shape[0], field.shape[1]
        M = center.shape[1]
        rel = (field[:, None, :, :] - center[:, :, None, :]) / self.radius
        polar = polar_coords(rel)
        P = bilinear_weights_bmnt(polar, self.num_theta, self.num_radii)      # [B,M,N,T]
        att = self._attention(rel, field_mask[..., 0])
        ff = field_feat[:, None, :, :, :] - ctr_feat[:, :, None, :, :]        # [B,M,N,c_in,k]
        A = (ff * att[..., None, None]).reshape(B, M, N, self.F)
        out = jnp.einsum('bmnt,bmnf,tfo->bmo', P, A, self.K3_ref)
        return out.reshape(B, M, self.out_channels, self.k)


# ----------------------------------------------------------------------------
if __name__ == "__main__":
    B, M, N = 2, 16, 16          # batch, num centers, num field points
    c_in, c_out = 2, 3
    k = 8                        # regular representation size
    num_radii, num_theta = 2, 8
    radius = 1.5

    key = jax.random.PRNGKey(0)
    kmod, kf, kc, kff, kcf, kmask = jax.random.split(key, 6)

    module = RelEquiCtsConv2dRegToRegPallas(c_in, c_out, radius, num_radii, num_theta,
                                            k, key=kmod)

    field = jax.random.uniform(kf, (B, N, 2), jnp.float32, -1.0, 1.0)
    center = jax.random.uniform(kc, (B, M, 2), jnp.float32, -1.0, 1.0)
    field_feat = jax.random.normal(kff, (B, N, c_in, k), jnp.float32)
    ctr_feat = jax.random.normal(kcf, (B, M, c_in, k), jnp.float32)
    field_mask = (jax.random.uniform(kmask, (B, N, 1), jnp.float32) > 0.1).astype(jnp.float32)

    out = jax.block_until_ready(module(field, center, field_feat, field_mask, ctr_feat))
    ref = jax.block_until_ready(module.reference(field, center, field_feat, field_mask, ctr_feat))

    assert out.shape == (B, M, c_out, k), out.shape
    err = float(np.max(np.abs(np.asarray(out, dtype=np.float32) - np.asarray(ref))))
    # bf16 MXU inputs with f32 accumulation vs. an f32 reference -> loosened tolerance.
    assert np.allclose(np.asarray(out, dtype=np.float32), np.asarray(ref),
                       rtol=2e-2, atol=3e-2), err

    print("KERNEL_OK")
</pallas_src>

<mosaic_0001>
module attributes {stable_mosaic.version = 11 : i64} {
  func.func @_equiconv_kernel(%arg0: i32, %arg1: i32, %arg2: i32, %arg3: memref<1x1x128x4096xbf16, #tpu.memory_space<vmem>>, %arg4: memref<1x24x128xbf16, #tpu.memory_space<vmem>>, %arg5: memref<1x16x128xf32, #tpu.memory_space<vmem>>, %arg6: memref<128x512xbf16, #tpu.memory_space<vmem>>, %arg7: memref<1x128x128xf32, #tpu.memory_space<vmem>>, %arg8: memref<24x4096xf32, #tpu.memory_space<vmem>>) attributes {dimension_semantics = [#tpu.dimension_semantics<parallel>, #tpu.dimension_semantics<parallel>, #tpu.dimension_semantics<arbitrary>], iteration_bounds = array<i64: 2, 1, 1>, scalar_prefetch = 0 : i64, scratch_operands = 1 : i64, tpu.core_type = #tpu.core_type<tc>, window_params = [{transform_indices = @transform_0, window_bounds = array<i64: 1, 1, 128, 4096>}, {transform_indices = @transform_1, window_bounds = array<i64: 1, 24, 128>}, {transform_indices = @transform_2, window_bounds = array<i64: 1, 16, 128>}, {pipeline_mode = #tpu.pipeline_mode<synchronous>, transform_indices = @transform_3, window_bounds = array<i64: 128, 512>}, {transform_indices = @transform_4, window_bounds = array<i64: 1, 128, 128>}]} {
    %c0_i32 = arith.constant 0 : i32
    %0 = arith.cmpi eq, %arg2, %c0_i32 : i32
    %1 = arith.extui %0 : i1 to i32
    %c0_i32_0 = arith.constant 0 : i32
    %2 = arith.cmpi ne, %1, %c0_i32_0 : i32
    scf.if %2 {
      %cst_12 = arith.constant 0.000000e+00 : f32
      %17 = vector.broadcast %cst_12 : f32 to vector<24x4096xf32>
      %c0_13 = arith.constant 0 : index
      %c0_14 = arith.constant 0 : index
      %18 = vector.load %arg8[%c0_13, %c0_14] : memref<24x4096xf32, #tpu.memory_space<vmem>>, vector<24x4096xf32>
      tpu.vector_store %arg8[%c0_13, %c0_14], %17 {strides = array<i32>} : memref<24x4096xf32, #tpu.memory_space<vmem>>, vector<24x4096xf32>,
    } else {
    }
    %c128_i32 = arith.constant 128 : i32
    %3 = arith.muli %arg2, %c128_i32 : i32
    %4 = tpu.assume_multiple %3, 128 : i32
    %c0 = arith.constant 0 : index
    %c0_1 = arith.constant 0 : index
    %5 = arith.index_cast %4 : i32 to index
    %6 = vector.load %arg4[%c0, %c0_1, %5] : memref<1x24x128xbf16, #tpu.memory_space<vmem>>, vector<1x24x128xbf16>
    %7 = vector.shape_cast %6 : vector<1x24x128xbf16> to vector<24x128xbf16>
    %c0_2 = arith.constant 0 : index
    %c0_3 = arith.constant 0 : index
    %8 = vector.load %arg8[%c0_2, %c0_3] : memref<24x4096xf32, #tpu.memory_space<vmem>>, vector<24x4096xf32>
    %c0_4 = arith.constant 0 : index
    %c0_5 = arith.constant 0 : index
    %c0_6 = arith.constant 0 : index
    %c0_7 = arith.constant 0 : index
    %9 = vector.load %arg3[%c0_4, %c0_5, %c0_6, %c0_7] : memref<1x1x128x4096xbf16, #tpu.memory_space<vmem>>, vector<1x1x128x4096xbf16>
    %10 = vector.shape_cast %9 : vector<1x1x128x4096xbf16> to vector<128x4096xbf16>
    %cst = arith.constant dense<0.000000e+00> : vector<24x4096xf32>
    %11 = tpu.matmul %7, %10, %cst {dimension_numbers = #tpu.dot_dimension_numbers<[1], [0], [0], [1], [0, 0, 1, 1], [], []>} : vector<24x128xbf16>, vector<128x4096xbf16>, vector<24x4096xf32> -> vector<24x4096xf32>
    %12 = arith.addf %8, %11 : vector<24x4096xf32>
    %c0_8 = arith.constant 0 : index
    %c0_9 = arith.constant 0 : index
    %13 = vector.load %arg8[%c0_8, %c0_9] : memref<24x4096xf32, #tpu.memory_space<vmem>>, vector<24x4096xf32>
    tpu.vector_store %arg8[%c0_8, %c0_9], %12 {strides = array<i32>} : memref<24x4096xf32, #tpu.memory_space<vmem>>, vector<24x4096xf32>,
    %c0_i32_10 = arith.constant 0 : i32
    %14 = arith.cmpi eq, %arg2, %c0_i32_10 : i32
    %15 = arith.extui %14 : i1 to i32
    %c0_i32_11 = arith.constant 0 : i32
    %16 = arith.cmpi ne, %15, %c0_i32_11 : i32
    scf.if %16 {
      %c0_12 = arith.constant 0 : index
      %c0_13 = arith.constant 0 : index
      %c0_14 = arith.constant 0 : index
      %17 = vector.load %arg5[%c0_12, %c0_13, %c0_14] : memref<1x16x128xf32, #tpu.memory_space<vmem>>, vector<1x16x128xf32>
      %18 = vector.shape_cast %17 : vector<1x16x128xf32> to vector<16x128xf32>
      %c0_15 = arith.constant 0 : index
      %c0_16 = arith.constant 0 : index
      %19 = vector.load %arg8[%c0_15, %c0_16] : memref<24x4096xf32, #tpu.memory_space<vmem>>, vector<16x128xf32>
      %c16 = arith.constant 16 : index
      %c0_17 = arith.constant 0 : index
      %20 = vector.load %arg8[%c16, %c0_17] : memref<24x4096xf32, #tpu.memory_space<vmem>>, vector<1x128xf32>
      %21 = vector.broadcast %20 : vector<1x128xf32> to vector<16x128xf32>
      %22 = arith.mulf %21, %18 : vector<16x128xf32>
      %23 = arith.subf %19, %22 : vector<16x128xf32>
      %c0_18 = arith.constant 0 : index
      %c128 = arith.constant 128 : index
      %24 = vector.load %arg8[%c0_18, %c128] : memref<24x4096xf32, #tpu.memory_space<vmem>>, vector<16x128xf32>
      %c16_19 = arith.constant 16 : index
      %c128_20 = arith.constant 128 : index
      %25 = vector.load %arg8[%c16_19, %c128_20] : memref<24x4096xf32, #tpu.memory_space<vmem>>, vector<1x128xf32>
      %26 = vector.broadcast %25 : vector<1x128xf32> to vector<16x128xf32>
      %27 = arith.mulf %26, %18 : vector<16x128xf32>
      %28 = arith.subf %24, %27 : vector<16x128xf32>
      %c0_21 = arith.constant 0 : index
      %c256 = arith.constant 256 : index
      %29 = vector.load %arg8[%c0_21, %c256] : memref<24x4096xf32, #tpu.memory_space<vmem>>, vector<16x128xf32>
      %c16_22 = arith.constant 16 : index
      %c256_23 = arith.constant 256 : index
      %30 = vector.load %arg8[%c16_22, %c256_23] : memref<24x4096xf32, #tpu.memory_space<vmem>>, vector<1x128xf32>
      %31 = vector.broadcast %30 : vector<1x128xf32> to vector<16x128xf32>
      %32 = arith.mulf %31, %18 : vector<16x128xf32>
      %33 = arith.subf %29, %32 : vector<16x128xf32>
      %c0_24 = arith.constant 0 : index
      %c384 = arith.constant 384 : index
      %34 = vector.load %arg8[%c0_24, %c384] : memref<24x4096xf32, #tpu.memory_space<vmem>>, vector<16x128xf32>
      %c16_25 = arith.constant 16 : index
      %c384_26 = arith.constant 384 : index
      %35 = vector.load %arg8[%c16_25, %c384_26] : memref<24x4096xf32, #tpu.memory_space<vmem>>, vector<1x128xf32>
      %36 = vector.broadcast %35 : vector<1x128xf32> to vector<16x128xf32>
      %37 = arith.mulf %36, %18 : vector<16x128xf32>
      %38 = arith.subf %34, %37 : vector<16x128xf32>
      %c0_27 = arith.constant 0 : index
      %c512 = arith.constant 512 : index
      %39 = vector.load %arg8[%c0_27, %c512] : memref<24x4096xf32, #tpu.memory_space<vmem>>, vector<16x128xf32>
      %c16_28 = arith.constant 16 : index
      %c512_29 = arith.constant 512 : index
      %40 = vector.load %arg8[%c16_28, %c512_29] : memref<24x4096xf32, #tpu.memory_space<vmem>>, vector<1x128xf32>
      %41 = vector.broadcast %40 : vector<1x128xf32> to vector<16x128xf32>
      %42 = arith.mulf %41, %18 : vector<16x128xf32>
      %43 = arith.subf %39, %42 : vector<16x128xf32>
      %c0_30 = arith.constant 0 : index
      %c640 = arith.constant 640 : index
      %44 = vector.load %arg8[%c0_30, %c640] : memref<24x4096xf32, #tpu.memory_space<vmem>>, vector<16x128xf32>
      %c16_31 = arith.constant 16 : index
      %c640_32 = arith.constant 640 : index
      %45 = vector.load %arg8[%c16_31, %c640_32] : memref<24x4096xf32, #tpu.memory_space<vmem>>, vector<1x128xf32>
      %46 = vector.broadcast %45 : vector<1x128xf32> to vector<16x128xf32>
      %47 = arith.mulf %46, %18 : vector<16x128xf32>
      %48 = arith.subf %44, %47 : vector<16x128xf32>
      %c0_33 = arith.constant 0 : index
      %c768 = arith.constant 768 : index
      %49 = vector.load %arg8[%c0_33, %c768] : memref<24x4096xf32, #tpu.memory_space<vmem>>, vector<16x128xf32>
      %c16_34 = arith.constant 16 : index
      %c768_35 = arith.constant 768 : index
      %50 = vector.load %arg8[%c16_34, %c768_35] : memref<24x4096xf32, #tpu.memory_space<vmem>>, vector<1x128xf32>
      %51 = vector.broadcast %50 : vector<1x128xf32> to vector<16x128xf32>
      %52 = arith.mulf %51, %18 : vector<16x128xf32>
      %53 = arith.subf %49, %52 : vector<16x128xf32>
      %c0_36 = arith.constant 0 : index
      %c896 = arith.constant 896 : index
      %54 = vector.load %arg8[%c0_36, %c896] : memref<24x4096xf32, #tpu.memory_space<vmem>>, vector<16x128xf32>
      %c16_37 = arith.constant 16 : index
      %c896_38 = arith.constant 896 : index
      %55 = vector.load %arg8[%c16_37, %c896_38] : memref<24x4096xf32, #tpu.memory_space<vmem>>, vector<1x128xf32>
      %56 = vector.broadcast %55 : vector<1x128xf32> to vector<16x128xf32>
      %57 = arith.mulf %56, %18 : vector<16x128xf32>
      %58 = arith.subf %54, %57 : vector<16x128xf32>
      %c0_39 = arith.constant 0 : index
      %c1024 = arith.constant 1024 : index
      %59 = vector.load %arg8[%c0_39, %c1024] : memref<24x4096xf32, #tpu.memory_space<vmem>>, vector<16x128xf32>
      %c16_40 = arith.constant 16 : index
      %c1024_41 = arith.constant 1024 : index
      %60 = vector.load %arg8[%c16_40, %c1024_41] : memref<24x4096xf32, #tpu.memory_space<vmem>>, vector<1x128xf32>
      %61 = vector.broadcast %60 : vector<1x128xf32> to vector<16x128xf32>
      %62 = arith.mulf %61, %18 : vector<16x128xf32>
      %63 = arith.subf %59, %62 : vector<16x128xf32>
      %c0_42 = arith.constant 0 : index
      %c1152 = arith.constant 1152 : index
      %64 = vector.load %arg8[%c0_42, %c1152] : memref<24x4096xf32, #tpu.memory_space<vmem>>, vector<16x128xf32>
      %c16_43 = arith.constant 16 : index
      %c1152_44 = arith.constant 1152 : index
      %65 = vector.load %arg8[%c16_43, %c1152_44] : memref<24x4096xf32, #tpu.memory_space<vmem>>, vector<1x128xf32>
      %66 = vector.broadcast %65 : vector<1x128xf32> to vector<16x128xf32>
      %67 = arith.mulf %66, %18 : vector<16x128xf32>
      %68 = arith.subf %64, %67 : vector<16x128xf32>
      %c0_45 = arith.constant 0 : index
      %c1280 = arith.constant 1280 : index
      %69 = vector.load %arg8[%c0_45, %c1280] : memref<24x4096xf32, #tpu.memory_space<vmem>>, vector<16x128xf32>
      %c16_46 = arith.constant 16 : index
      %c1280_47 = arith.constant 1280 : index
      %70 = vector.load %arg8[%c16_46, %c1280_47] : memref<24x4096xf32, #tpu.memory_space<vmem>>, vector<1x128xf32>
      %71 = vector.broadcast %70 : vector<1x128xf32> to vector<16x128xf32>
      %72 = arith.mulf %71, %18 : vector<16x128xf32>
      %73 = arith.subf %69, %72 : vector<16x128xf32>
      %c0_48 = arith.constant 0 : index
      %c1408 = arith.constant 1408 : index
      %74 = vector.load %arg8[%c0_48, %c1408] : memref<24x4096xf32, #tpu.memory_space<vmem>>, vector<16x128xf32>
      %c16_49 = arith.constant 16 : index
      %c1408_50 = arith.constant 1408 : index
      %75 = vector.load %arg8[%c16_49, %c1408_50] : memref<24x4096xf32, #tpu.memory_space<vmem>>, vector<1x128xf32>
      %76 = vector.broadcast %75 : vector<1x128xf32> to vector<16x128xf32>
      %77 = arith.mulf %76, %18 : vector<16x128xf32>
      %78 = arith.subf %74, %77 : vector<16x128xf32>
      %c0_51 = arith.constant 0 : index
      %c1536 = arith.constant 1536 : index
      %79 = vector.load %arg8[%c0_51, %c1536] : memref<24x4096xf32, #tpu.memory_space<vmem>>, vector<16x128xf32>
      %c16_52 = arith.constant 16 : index
      %c1536_53 = arith.constant 1536 : index
      %80 = vector.load %arg8[%c16_52, %c1536_53] : memref<24x4096xf32, #tpu.memory_space<vmem>>, vector<1x128xf32>
      %81 = vector.broadcast %80 : vector<1x128xf32> to vector<16x128xf32>
      %82 = arith.mulf %81, %18 : vector<16x128xf32>
      %83 = arith.subf %79, %82 : vector<16x128xf32>
      %c0_54 = arith.constant 0 : index
      %c1664 = arith.constant 1664 : index
      %84 = vector.load %arg8[%c0_54, %c1664] : memref<24x4096xf32, #tpu.memory_space<vmem>>, vector<16x128xf32>
      %c16_55 = arith.constant 16 : index
      %c1664_56 = arith.constant 1664 : index
      %85 = vector.load %arg8[%c16_55, %c1664_56] : memref<24x4096xf32, #tpu.memory_space<vmem>>, vector<1x128xf32>
      %86 = vector.broadcast %85 : vector<1x128xf32> to vector<16x128xf32>
      %87 = arith.mulf %86, %18 : vector<16x128xf32>
      %88 = arith.subf %84, %87 : vector<16x128xf32>
      %c0_57 = arith.constant 0 : index
      %c1792 = arith.constant 1792 : index
      %89 = vector.load %arg8[%c0_57, %c1792] : memref<24x4096xf32, #tpu.memory_space<vmem>>, vector<16x128xf32>
      %c16_58 = arith.constant 16 : index
      %c1792_59 = arith.constant 1792 : index
      %90 = vector.load %arg8[%c16_58, %c1792_59] : memref<24x4096xf32, #tpu.memory_space<vmem>>, vector<1x128xf32>
      %91 = vector.broadcast %90 : vector<1x128xf32> to vector<16x128xf32>
      %92 = arith.mulf %91, %18 : vector<16x128xf32>
      %93 = arith.subf %89, %92 : vector<16x128xf32>
      %c0_60 = arith.constant 0 : index
      %c1920 = arith.constant 1920 : index
      %94 = vector.load %arg8[%c0_60, %c1920] : memref<24x4096xf32, #tpu.memory_space<vmem>>, vector<16x128xf32>
      %c16_61 = arith.constant 16 : index
      %c1920_62 = arith.constant 1920 : index
      %95 = vector.load %arg8[%c16_61, %c1920_62] : memref<24x4096xf32, #tpu.memory_space<vmem>>, vector<1x128xf32>
      %96 = vector.broadcast %95 : vector<1x128xf32> to vector<16x128xf32>
      %97 = arith.mulf %96, %18 : vector<16x128xf32>
      %98 = arith.subf %94, %97 : vector<16x128xf32>
      %c0_63 = arith.constant 0 : index
      %c2048 = arith.constant 2048 : index
      %99 = vector.load %arg8[%c0_63, %c2048] : memref<24x4096xf32, #tpu.memory_space<vmem>>, vector<16x128xf32>
      %c16_64 = arith.constant 16 : index
      %c2048_65 = arith.constant 2048 : index
      %100 = vector.load %arg8[%c16_64, %c2048_65] : memref<24x4096xf32, #tpu.memory_space<vmem>>, vector<1x128xf32>
      %101 = vector.broadcast %100 : vector<1x128xf32> to vector<16x128xf32>
      %102 = arith.mulf %101, %18 : vector<16x128xf32>
      %103 = arith.subf %99, %102 : vector<16x128xf32>
      %c0_66 = arith.constant 0 : index
      %c2176 = arith.constant 2176 : index
      %104 = vector.load %arg8[%c0_66, %c2176] : memref<24x4096xf32, #tpu.memory_space<vmem>>, vector<16x128xf32>
      %c16_67 = arith.constant 16 : index
      %c2176_68 = arith.constant 2176 : index
      %105 = vector.load %arg8[%c16_67, %c2176_68] : memref<24x4096xf32, #tpu.memory_space<vmem>>, vector<1x128xf32>
      %106 = vector.broadcast %105 : vector<1x128xf32> to vector<16x128xf32>
      %107 = arith.mulf %106, %18 : vector<16x128xf32>
      %108 = arith.subf %104, %107 : vector<16x128xf32>
      %c0_69 = arith.constant 0 : index
      %c2304 = arith.constant 2304 : index
      %109 = vector.load %arg8[%c0_69, %c2304] : memref<24x4096xf32, #tpu.memory_space<vmem>>, vector<16x128xf32>
      %c16_70 = arith.constant 16 : index
      %c2304_71 = arith.constant 2304 : index
      %110 = vector.load %arg8[%c16_70, %c2304_71] : memref<24x4096xf32, #tpu.memory_space<vmem>>, vector<1x128xf32>
      %111 = vector.broadcast %110 : vector<1x128xf32> to vector<16x128xf32>
      %112 = arith.mulf %111, %18 : vector<16x128xf32>
      %113 = arith.subf %109, %112 : vector<16x128xf32>
      %c0_72 = arith.constant 0 : index
      %c2432 = arith.constant 2432 : index
      %114 = vector.load %arg8[%c0_72, %c2432] : memref<24x4096xf32, #tpu.memory_space<vmem>>, vector<16x128xf32>
      %c16_73 = arith.constant 16 : index
      %c2432_74 = arith.constant 2432 : index
      %115 = vector.load %arg8[%c16_73, %c2432_74] : memref<24x4096xf32, #tpu.memory_space<vmem>>, vector<1x128xf32>
      %116 = vector.broadcast %115 : vector<1x128xf32> to vector<16x128xf32>
      %117 = arith.mulf %116, %18 : vector<16x128xf32>
      %118 = arith.subf %114, %117 : vector<16x128xf32>
      %c0_75 = arith.constant 0 : index
      %c2560 = arith.constant 2560 : index
      %119 = vector.load %arg8[%c0_75, %c2560] : memref<24x4096xf32, #tpu.memory_space<vmem>>, vector<16x128xf32>
      %c16_76 = arith.constant 16 : index
      %c2560_77 = arith.constant 2560 : index
      %120 = vector.load %arg8[%c16_76, %c2560_77] : memref<24x4096xf32, #tpu.memory_space<vmem>>, vector<1x128xf32>
      %121 = vector.broadcast %120 : vector<1x128xf32> to vector<16x128xf32>
      %122 = arith.mulf %121, %18 : vector<16x128xf32>
      %123 = arith.subf %119, %122 : vector<16x128xf32>
      %c0_78 = arith.constant 0 : index
      %c2688 = arith.constant 2688 : index
      %124 = vector.load %arg8[%c0_78, %c2688] : memref<24x4096xf32, #tpu.memory_space<vmem>>, vector<16x128xf32>
      %c16_79 = arith.constant 16 : index
      %c2688_80 = arith.constant 2688 : index
      %125 = vector.load %arg8[%c16_79, %c2688_80] : memref<24x4096xf32, #tpu.memory_space<vmem>>, vector<1x128xf32>
      %126 = vector.broadcast %125 : vector<1x128xf32> to vector<16x128xf32>
      %127 = arith.mulf %126, %18 : vector<16x128xf32>
      %128 = arith.subf %124, %127 : vector<16x128xf32>
      %c0_81 = arith.constant 0 : index
      %c2816 = arith.constant 2816 : index
      %129 = vector.load %arg8[%c0_81, %c2816] : memref<24x4096xf32, #tpu.memory_space<vmem>>, vector<16x128xf32>
      %c16_82 = arith.constant 16 : index
      %c2816_83 = arith.constant 2816 : index
      %130 = vector.load %arg8[%c16_82, %c2816_83] : memref<24x4096xf32, #tpu.memory_space<vmem>>, vector<1x128xf32>
      %131 = vector.broadcast %130 : vector<1x128xf32> to vector<16x128xf32>
      %132 = arith.mulf %131, %18 : vector<16x128xf32>
      %133 = arith.subf %129, %132 : vector<16x128xf32>
      %c0_84 = arith.constant 0 : index
      %c2944 = arith.constant 2944 : index
      %134 = vector.load %arg8[%c0_84, %c2944] : memref<24x4096xf32, #tpu.memory_space<vmem>>, vector<16x128xf32>
      %c16_85 = arith.constant 16 : index
      %c2944_86 = arith.constant 2944 : index
      %135 = vector.load %arg8[%c16_85, %c2944_86] : memref<24x4096xf32, #tpu.memory_space<vmem>>, vector<1x128xf32>
      %136 = vector.broadcast %135 : vector<1x128xf32> to vector<16x128xf32>
      %137 = arith.mulf %136, %18 : vector<16x128xf32>
      %138 = arith.subf %134, %137 : vector<16x128xf32>
      %c0_87 = arith.constant 0 : index
      %c3072 = arith.constant 3072 : index
      %139 = vector.load %arg8[%c0_87, %c3072] : memref<24x4096xf32, #tpu.memory_space<vmem>>, vector<16x128xf32>
      %c16_88 = arith.constant 16 : index
      %c3072_89 = arith.constant 3072 : index
      %140 = vector.load %arg8[%c16_88, %c3072_89] : memref<24x4096xf32, #tpu.memory_space<vmem>>, vector<1x128xf32>
      %141 = vector.broadcast %140 : vector<1x128xf32> to vector<16x128xf32>
      %142 = arith.mulf %141, %18 : vector<16x128xf32>
      %143 = arith.subf %139, %142 : vector<16x128xf32>
      %c0_90 = arith.constant 0 : index
      %c3200 = arith.constant 3200 : index
      %144 = vector.load %arg8[%c0_90, %c3200] : memref<24x4096xf32, #tpu.memory_space<vmem>>, vector<16x128xf32>
      %c16_91 = arith.constant 16 : index
      %c3200_92 = arith.constant 3200 : index
      %145 = vector.load %arg8[%c16_91, %c3200_92] : memref<24x4096xf32, #tpu.memory_space<vmem>>, vector<1x128xf32>
      %146 = vector.broadcast %145 : vector<1x128xf32> to vector<16x128xf32>
      %147 = arith.mulf %146, %18 : vector<16x128xf32>
      %148 = arith.subf %144, %147 : vector<16x128xf32>
      %c0_93 = arith.constant 0 : index
      %c3328 = arith.constant 3328 : index
      %149 = vector.load %arg8[%c0_93, %c3328] : memref<24x4096xf32, #tpu.memory_space<vmem>>, vector<16x128xf32>
      %c16_94 = arith.constant 16 : index
      %c3328_95 = arith.constant 3328 : index
      %150 = vector.load %arg8[%c16_94, %c3328_95] : memref<24x4096xf32, #tpu.memory_space<vmem>>, vector<1x128xf32>
      %151 = vector.broadcast %150 : vector<1x128xf32> to vector<16x128xf32>
      %152 = arith.mulf %151, %18 : vector<16x128xf32>
      %153 = arith.subf %149, %152 : vector<16x128xf32>
      %c0_96 = arith.constant 0 : index
      %c3456 = arith.constant 3456 : index
      %154 = vector.load %arg8[%c0_96, %c3456] : memref<24x4096xf32, #tpu.memory_space<vmem>>, vector<16x128xf32>
      %c16_97 = arith.constant 16 : index
      %c3456_98 = arith.constant 3456 : index
      %155 = vector.load %arg8[%c16_97, %c3456_98] : memref<24x4096xf32, #tpu.memory_space<vmem>>, vector<1x128xf32>
      %156 = vector.broadcast %155 : vector<1x128xf32> to vector<16x128xf32>
      %157 = arith.mulf %156, %18 : vector<16x128xf32>
      %158 = arith.subf %154, %157 : vector<16x128xf32>
      %c0_99 = arith.constant 0 : index
      %c3584 = arith.constant 3584 : index
      %159 = vector.load %arg8[%c0_99, %c3584] : memref<24x4096xf32, #tpu.memory_space<vmem>>, vector<16x128xf32>
      %c16_100 = arith.constant 16 : index
      %c3584_101 = arith.constant 3584 : index
      %160 = vector.load %arg8[%c16_100, %c3584_101] : memref<24x4096xf32, #tpu.memory_space<vmem>>, vector<1x128xf32>
      %161 = vector.broadcast %160 : vector<1x128xf32> to vector<16x128xf32>
      %162 = arith.mulf %161, %18 : vector<16x128xf32>
      %163 = arith.subf %159, %162 : vector<16x128xf32>
      %c0_102 = arith.constant 0 : index
      %c3712 = arith.constant 3712 : index
      %164 = vector.load %arg8[%c0_102, %c3712] : memref<24x4096xf32, #tpu.memory_space<vmem>>, vector<16x128xf32>
      %c16_103 = arith.constant 16 : index
      %c3712_104 = arith.constant 3712 : index
      %165 = vector.load %arg8[%c16_103, %c3712_104] : memref<24x4096xf32, #tpu.memory_space<vmem>>, vector<1x128xf32>
      %166 = vector.broadcast %165 : vector<1x128xf32> to vector<16x128xf32>
      %167 = arith.mulf %166, %18 : vector<16x128xf32>
      %168 = arith.subf %164, %167 : vector<16x128xf32>
      %c0_105 = arith.constant 0 : index
      %c3840 = arith.constant 3840 : index
      %169 = vector.load %arg8[%c0_105, %c3840] : memref<24x4096xf32, #tpu.memory_space<vmem>>, vector<16x128xf32>
      %c16_106 = arith.constant 16 : index
      %c3840_107 = arith.constant 3840 : index
      %170 = vector.load %arg8[%c16_106, %c3840_107] : memref<24x4096xf32, #tpu.memory_space<vmem>>, vector<1x128xf32>
      %171 = vector.broadcast %170 : vector<1x128xf32> to vector<16x128xf32>
      %172 = arith.mulf %171, %18 : vector<16x128xf32>
      %173 = arith.subf %169, %172 : vector<16x128xf32>
      %c0_108 = arith.constant 0 : index
      %c3968 = arith.constant 3968 : index
      %174 = vector.load %arg8[%c0_108, %c3968] : memref<24x4096xf32, #tpu.memory_space<vmem>>, vector<16x128xf32>
      %c16_109 = arith.constant 16 : index
      %c3968_110 = arith.constant 3968 : index
      %175 = vector.load %arg8[%c16_109, %c3968_110] : memref<24x4096xf32, #tpu.memory_space<vmem>>, vector<1x128xf32>
      %176 = vector.broadcast %175 : vector<1x128xf32> to vector<16x128xf32>
      %177 = arith.mulf %176, %18 : vector<16x128xf32>
      %178 = arith.subf %174, %177 : vector<16x128xf32>
      %179 = tpu.concatenate %23, %28, %33, %38, %43, %48, %53, %58, %63, %68, %73, %78, %83, %88, %93, %98 in 0 : vector<16x128xf32>, vector<16x128xf32>, vector<16x128xf32>, vector<16x128xf32>, vector<16x128xf32>, vector<16x128xf32>, vector<16x128xf32>, vector<16x128xf32>, vector<16x128xf32>, vector<16x128xf32>, vector<16x128xf32>, vector<16x128xf32>, vector<16x128xf32>, vector<16x128xf32>, vector<16x128xf32>, vector<16x128xf32> -> vector<256x128xf32>
      %180 = tpu.concatenate %103, %108, %113, %118, %123, %128, %133, %138, %143, %148, %153, %158, %163, %168, %173, %178 in 0 : vector<16x128xf32>, vector<16x128xf32>, vector<16x128xf32>, vector<16x128xf32>, vector<16x128xf32>, vector<16x128xf32>, vector<16x128xf32>, vector<16x128xf32>, vector<16x128xf32>, vector<16x128xf32>, vector<16x128xf32>, vector<16x128xf32>, vector<16x128xf32>, vector<16x128xf32>, vector<16x128xf32>, vector<16x128xf32> -> vector<256x128xf32>
      %181 = tpu.concatenate %179, %180 in 0 : vector<256x128xf32>, vector<256x128xf32> -> vector<512x128xf32>
      %182 = arith.truncf %181 : vector<512x128xf32> to vector<512x128xbf16>
      %c0_111 = arith.constant 0 : index
      %c0_112 = arith.constant 0 : index
      %183 = vector.load %arg6[%c0_111, %c0_112] : memref<128x512xbf16, #tpu.memory_space<vmem>>, vector<128x512xbf16>
      %cst_113 = arith.constant dense<0.000000e+00> : vector<128x128xf32>
      %184 = tpu.matmul %183, %182, %cst_113 {dimension_numbers = #tpu.dot_dimension_numbers<[1], [0], [0], [1], [0, 0, 1, 1], [], []>} : vector<128x512xbf16>, vector<512x128xbf16>, vector<128x128xf32> -> vector<128x128xf32>
      %c0_114 = arith.constant 0 : index
      %c0_115 = arith.constant 0 : index
      %c0_116 = arith.constant 0 : index
      %185 = vector.load %arg7[%c0_114, %c0_115, %c0_116] : memref<1x128x128xf32, #tpu.memory_space<vmem>>, vector<1x128x128xf32>
      %186 = vector.shape_cast %185 : vector<1x128x128xf32> to vector<128x128xf32>
      %187 = vector.shape_cast %184 : vector<128x128xf32> to vector<1x128x128xf32>
      tpu.vector_store %arg7[%c0_114, %c0_115, %c0_116], %187 {strides = array<i32>} : memref<1x128x128xf32, #tpu.memory_space<vmem>>, vector<1x128x128xf32>,
    } else {
    }
    return
  }
  func.func @transform_0(%arg0: i32, %arg1: i32, %arg2: i32) -> (i32, i32, i32, i32) {
    %c0_i32 = arith.constant 0 : i32
    %c0_i32_0 = arith.constant 0 : i32
    return %arg0, %arg1, %arg2, %c0_i32 : i32, i32, i32, i32
  }
  func.func @transform_1(%arg0: i32, %arg1: i32, %arg2: i32) -> (i32, i32, i32) {
    %c0_i32 = arith.constant 0 : i32
    %c0_i32_0 = arith.constant 0 : i32
    %c0_i32_1 = arith.constant 0 : i32
    return %arg0, %c0_i32, %c0_i32_0 : i32, i32, i32
  }
  func.func @transform_2(%arg0: i32, %arg1: i32, %arg2: i32) -> (i32, i32, i32) {
    %c0_i32 = arith.constant 0 : i32
    %c0_i32_0 = arith.constant 0 : i32
    return %arg0, %c0_i32, %arg1 : i32, i32, i32
  }
  func.func @transform_3(%arg0: i32, %arg1: i32, %arg2: i32) -> (i32, i32) {
    %c0_i32 = arith.constant 0 : i32
    %c0_i32_0 = arith.constant 0 : i32
    %c0_i32_1 = arith.constant 0 : i32
    return %c0_i32, %c0_i32_0 : i32, i32
  }
  func.func @transform_4(%arg0: i32, %arg1: i32, %arg2: i32) -> (i32, i32, i32) {
    %c0_i32 = arith.constant 0 : i32
    %c0_i32_0 = arith.constant 0 : i32
    return %arg0, %c0_i32, %arg1 : i32, i32, i32
  }
}

</mosaic_0001>

<llo_original>
// kernel: tpu_custom_call.1
$region0: #{tpu_custom_call.1}
  #allocation0 [shape = 'u32[]', space=smem, size = 0x4, offset = 0x4, fixed_abs, tag = 'smem constant byte address 0x4 - core index']
  #allocation1 [shape = 'u32[144,128]{1,0:T(1,128)}', space=vmem, size = 0x12000, scoped, tag = 'internal scratch']
  #allocation2 [shape = 'f32[24,4096]{1,0:T(8,128)}', space=vmem, size = 0x60000, scoped, tag = 'scratch operand']
  %s0 = inlined_call_operand.hbm [shape: bf16[2,1,128,4096], index: 0, kind: input, shape index: {}]
  %s1 = inlined_call_operand.hbm [shape: bf16[2,24,128], index: 1, kind: input, shape index: {}]
  %s2 = inlined_call_operand.hbm [shape: f32[2,16,128], index: 2, kind: input, shape index: {}]
  %s3 = inlined_call_operand.hbm [shape: bf16[128,512], index: 3, kind: input, shape index: {}]
  %s4 = inlined_call_operand.hbm [shape: f32[2,128,128], index: 4, kind: output, shape index: {}]
  %s5 = sld [smem:[#allocation0]]
  $region73: #{tpu_custom_call.1} parent=0
    _
  %s7 = ssub.s32 1, %s5
  %s8 = scalar_select 0, %s7, %s5
  $region1: #{tpu_custom_call.1} parent=0
    #allocation3 [shape = 'u8[2097152]{0}', space=vmem, size = 0x200000, scoped, tag = 'input window, operand 0']
    #allocation4 [shape = 's32[2]{0}', space=sflag, size = 0x8, scoped, tag = 'scoped memory for tpu_custom_call.1']
    #allocation5 [shape = 's32[2]{0}', space=sflag, size = 0x8, scoped, tag = 'scoped memory for tpu_custom_call.1']
    #allocation6 [shape = 'u8[12288]{0}', space=vmem, size = 0x3000, scoped, tag = 'input window, operand 1']
    #allocation7 [shape = 's32[2]{0}', space=sflag, size = 0x8, scoped, tag = 'scoped memory for tpu_custom_call.1']
    #allocation8 [shape = 'u8[16384]{0}', space=vmem, size = 0x4000, scoped, tag = 'input window, operand 2']
    #allocation9 [shape = 'u8[131072]{0}', space=vmem, size = 0x20000, scoped, tag = 'input window, operand 3, single buffered']
    #allocation10 [shape = 's32[1]{0}', space=sflag, size = 0x4, scoped, tag = 'scoped memory for tpu_custom_call.1']
    #allocation11 [shape = 'u8[131072]{0}', space=vmem, size = 0x20000, scoped, tag = 'output window, operand 0']
    %9 = vsyncpa [#allocation4], 0
    %s10 = scalar_lea.sflag [#allocation4], 1
    %11 = vsyncpa %s10, 0
    %12 = vsyncpa [#allocation7], 0
    %s13 = scalar_lea.sflag [#allocation7], 1
    %14 = vsyncpa %s13, 0
    %15 = vsyncpa [#allocation10], 0
    %16 = vsyncpa [#allocation5], 0
    %s17 = scalar_lea.sflag [#allocation5], 1
    %18 = vsyncpa %s17, 0
    loop: start=0, step=1, limit=4
    $region2: #{tpu_custom_call.1} parent=1 // loop_pre_header
      _
    $region3: #{tpu_custom_call.1} parent=1 // loop_header
      %s20 = sphi 0, %s24
      %p21 = scmp.ge.s32.totalorder %s20, 4
      %s27 = sphi 0, %s46
      %s28 = sphi 0, %s42
      %s29 = sphi 0, %s38
      %s30 = sphi 0, %s27
      %s31 = sphi 0, %s28
      %s32 = sphi 0, %s29
      %s33 = sphi 0, %s30
      %s34 = sphi 0, %s31
      %s35 = sphi 0, %s32
      %s53 = sphi 0, %s55
      %s56 = sphi 0, %s53
      %s57 = sphi 0, %s56
      %s73 = sphi 0, %s57
      %s79 = sphi 0, %s81
      %s82 = sphi 0, %s79
      %s83 = sphi 0, %s82
      %s99 = sphi 0, %s83
      %s107 = sphi 0, %s109
      %s110 = sphi 0, %s107
      %s111 = sphi 0, %s110
      %s127 = sphi 0, %s111
      %s131 = sphi 0, %s131
      %s133 = sphi 0, %s131
      %s134 = sphi 0, %s133
      %s148 = sphi 0, %s134
      %s156 = sphi 0, %s158
      %s159 = sphi 0, %s156
      %s160 = sphi 0, %s159
      %s176 = sphi 0, %s160
    $region4: #{tpu_custom_call.1} parent=1 // loop_header_branch
      %23 = sbr.rel (%p21) target = $region8
    $region5: #{tpu_custom_call.1} parent=1 // loop_body
      %s25 = ssub.s32 %s20, 1
      %s26 = ssub.s32 %s20, 2
      %s36 = sadd.s32 1, %s29
      %p37 = scmp.ge.s32.totalorder %s36, 1
      %s38 = scalar_select %p37, 0, %s36
      %s39 = sadd.s32 1, %s28
      %s40 = scalar_select %p37, %s39, %s28
      %p41 = scmp.ge.s32.totalorder %s40, 1
      %s42 = scalar_select %p41, 0, %s40
      %s43 = sadd.s32 1, %s27
      %s44 = scalar_select %p41, %s43, %s27
      %p45 = scmp.ge.s32.totalorder %s44, 2
      %s46 = scalar_select %p45, 0, %s44
      %s47 = ssub.s32 %s27, %s46
      %s48 = ssub.s32 %s28, %s42
      %s49 = sor.u32 %s47, %s48
      %s50 = ssub.s32 %s29, %s38
      %s51 = sor.u32 %s49, %s50
      %p52 = scmp.eq.s32.totalorder %s51, 0
      %s54 = sadd.s32 %s53, 1
      %s55 = scalar_select %p52, %s53, %s54
      %p58 = pneg %p52
      %p59 = scmp.eq.s32.totalorder %s20, 1
      %p60 = por %p58, %p59
      %p61 = scmp.ne.s32.totalorder %s53, %s56
      %p62 = scmp.eq.s32.totalorder %s20, 0
      %p63 = por %p61, %p62
      %p64 = scmp.ne.s32.totalorder %s53, %s56
      %p65 = scmp.eq.s32.totalorder %s25, 1
      %p66 = por %p64, %p65
      %p67 = scmp.ne.s32.totalorder %s56, %s57
      %p68 = scmp.eq.s32.totalorder %s25, 0
      %p69 = por %p67, %p68
      %p70 = scmp.ne.s32.totalorder %s56, %s57
      %p71 = scmp.eq.s32.totalorder %s26, 1
      %p72 = por %p70, %p71
      %p74 = scmp.ne.s32.totalorder %s57, %s73
      %p75 = scmp.eq.s32.totalorder %s26, 0
      %p76 = por %p74, %p75
      %s77 = ssub.s32 %s27, %s46
      %p78 = scmp.eq.s32.totalorder %s77, 0
      %s80 = sadd.s32 %s79, 1
      %s81 = scalar_select %p78, %s79, %s80
      %p84 = pneg %p78
      %p85 = scmp.eq.s32.totalorder %s20, 1
      %p86 = por %p84, %p85
      %p87 = scmp.ne.s32.totalorder %s79, %s82
      %p88 = scmp.eq.s32.totalorder %s20, 0
      %p89 = por %p87, %p88
      %p90 = scmp.ne.s32.totalorder %s79, %s82
      %p91 = scmp.eq.s32.totalorder %s25, 1
      %p92 = por %p90, %p91
      %p93 = scmp.ne.s32.totalorder %s82, %s83
      %p94 = scmp.eq.s32.totalorder %s25, 0
      %p95 = por %p93, %p94
      %p96 = scmp.ne.s32.totalorder %s82, %s83
      %p97 = scmp.eq.s32.totalorder %s26, 1
      %p98 = por %p96, %p97
      %p100 = scmp.ne.s32.totalorder %s83, %s99
      %p101 = scmp.eq.s32.totalorder %s26, 0
      %p102 = por %p100, %p101
      %s103 = ssub.s32 %s27, %s46
      %s104 = ssub.s32 %s28, %s42
      %s105 = sor.u32 %s103, %s104
      %p106 = scmp.eq.s32.totalorder %s105, 0
      %s108 = sadd.s32 %s107, 1
      %s109 = scalar_select %p106, %s107, %s108
      %p112 = pneg %p106
      %p113 = scmp.eq.s32.totalorder %s20, 1
      %p114 = por %p112, %p113
      %p115 = scmp.ne.s32.totalorder %s107, %s110
      %p116 = scmp.eq.s32.totalorder %s20, 0
      %p117 = por %p115, %p116
      %p118 = scmp.ne.s32.totalorder %s107, %s110
      %p119 = scmp.eq.s32.totalorder %s25, 1
      %p120 = por %p118, %p119
      %p121 = scmp.ne.s32.totalorder %s110, %s111
      %p122 = scmp.eq.s32.totalorder %s25, 0
      %p123 = por %p121, %p122
      %p124 = scmp.ne.s32.totalorder %s110, %s111
      %p125 = scmp.eq.s32.totalorder %s26, 1
      %p126 = por %p124, %p125
      %p128 = scmp.ne.s32.totalorder %s111, %s127
      %p129 = scmp.eq.s32.totalorder %s26, 0
      %p130 = por %p128, %p129
      %s132 = sadd.s32 %s131, 1
      %p135 = scmp.eq.s32.totalorder %s20, 1
      %p136 = scmp.ne.s32.totalorder %s131, %s133
      %p137 = scmp.eq.s32.totalorder %s20, 0
      %p138 = por %p136, %p137
      %p139 = scmp.ne.s32.totalorder %s131, %s133
      %p140 = scmp.eq.s32.totalorder %s25, 1
      %p141 = por %p139, %p140
      %p142 = scmp.ne.s32.totalorder %s133, %s134
      %p143 = scmp.eq.s32.totalorder %s25, 0
      %p144 = por %p142, %p143
      %p145 = scmp.ne.s32.totalorder %s133, %s134
      %p146 = scmp.eq.s32.totalorder %s26, 1
      %p147 = por %p145, %p146
      %p149 = scmp.ne.s32.totalorder %s134, %s148
      %p150 = scmp.eq.s32.totalorder %s26, 0
      %p151 = por %p149, %p150
      %s152 = ssub.s32 %s27, %s46
      %s153 = ssub.s32 %s28, %s42
      %s154 = sor.u32 %s152, %s153
      %p155 = scmp.eq.s32.totalorder %s154, 0
      %s157 = sadd.s32 %s156, 1
      %s158 = scalar_select %p155, %s156, %s157
      %p161 = pneg %p155
      %p162 = scmp.eq.s32.totalorder %s20, 1
      %p163 = por %p161, %p162
      %p164 = scmp.ne.s32.totalorder %s156, %s159
      %p165 = scmp.eq.s32.totalorder %s20, 0
      %p166 = por %p164, %p165
      %p167 = scmp.ne.s32.totalorder %s156, %s159
      %p168 = scmp.eq.s32.totalorder %s25, 1
      %p169 = por %p167, %p168
      %p170 = scmp.ne.s32.totalorder %s159, %s160
      %p171 = scmp.eq.s32.totalorder %s25, 0
      %p172 = por %p170, %p171
      %p173 = scmp.ne.s32.totalorder %s159, %s160
      %p174 = scmp.eq.s32.totalorder %s26, 1
      %p175 = por %p173, %p174
      %p177 = scmp.ne.s32.totalorder %s160, %s176
      %p178 = scmp.eq.s32.totalorder %s26, 0
      %p179 = por %p177, %p178
      %p180 = scmp.le.s32.totalorder 1, %s20
      %p181 = scmp.lt.s32.totalorder %s20, 3
      %p182 = pnand %p180, %p181
      %p183 = pneg %p182
      // Predicated region
      $region9: #{tpu_custom_call.1} parent=5 // pred_check
        _
      $region10: #{tpu_custom_call.1} parent=5 // pred_check_branch
        %185 = sbr.rel (%p182) target = $region12
      $region11: #{tpu_custom_call.1} parent=5 // pred_region
        %s186 = ssub.s32 %s20, 1
        // Predicated region
        $region13: #{tpu_custom_call.1} parent=11 // pred_check
          %p187 = pneg %p144
        $region14: #{tpu_custom_call.1} parent=11 // pred_check_branch
          %189 = sbr.rel (%p187) target = $region16
        $region15: #{tpu_custom_call.1} parent=11 // pred_region
          %s191 = ssub.s32 4096, 4096
          %192 = vsyncadd [#allocation10], %s191
          %s193 = sshll.u32 [#allocation9], 4
          %s194 = int_to_ptr.vmem [resolvable:$true] %s193
          %199 = dma.hbm_to_vmem [thread:$0]  %s3, 4096, %s194, [#allocation10], 256, 256, 16
        $region16: #{tpu_custom_call.1} parent=11 // pred_fallthru
          _
      $region12: #{tpu_custom_call.1} parent=5 // pred_fallthru
        _
      %p200 = scmp.lt.s32.totalorder %s20, 2
      // Predicated region
      $region17: #{tpu_custom_call.1} parent=5 // pred_check
        %p201 = pneg %p200
      $region18: #{tpu_custom_call.1} parent=5 // pred_check_branch
        %203 = sbr.rel (%p201) target = $region20
      $region19: #{tpu_custom_call.1} parent=5 // pred_region
        // Predicated region
        $region21: #{tpu_custom_call.1} parent=19 // pred_check
          %p204 = pneg %p63
        $region22: #{tpu_custom_call.1} parent=19 // pred_check_branch
          %206 = sbr.rel (%p204) target = $region24
        $region23: #{tpu_custom_call.1} parent=19 // pred_region
          %s207 = sand.u32 %s53, 1
          %s208 = scalar_lea.sflag [#allocation4], %s207
          %s209 = sand.u32 %s53, 1
          %s210 = smul.addr %s209, 2048
          %s211 = scalar_lea.vmem [#allocation3], %s210
          %s212 = smul.u32 16, %s29
          %s214 = ssub.s32 32768, 32768
          %215 = vsyncadd %s208, %s214
          %s216 = smul.addr %s212, 32
          %s217 = smul.addr %s28, 512
          %s218 = sadd.s32 %s216, %s217
          %s219 = smul.addr %s27, 512
          %s220 = sadd.s32 %s218, %s219
          %s221 = smul.addr %s220, 64
          %s222 = scalar_lea.hbm %s0, %s221
          %s223 = sshll.u32 %s211, 4
          %s224 = int_to_ptr.vmem [resolvable:$true] %s223
          %229 = dma.hbm_to_vmem [thread:$0]  %s222, 32768, %s224, %s208, 2048, 2048, 128
        $region24: #{tpu_custom_call.1} parent=19 // pred_fallthru
          _
        // Predicated region
        $region25: #{tpu_custom_call.1} parent=19 // pred_check
          %p230 = pneg %p89
        $region26: #{tpu_custom_call.1} parent=19 // pred_check_branch
          %232 = sbr.rel (%p230) target = $region28
        $region27: #{tpu_custom_call.1} parent=19 // pred_region
          %s233 = sand.u32 %s20, 1
          %s234 = scalar_lea.sflag [#allocation7], %s233
          %s235 = sand.u32 %s79, 1
          %s236 = smul.addr %s235, 12
          %s237 = scalar_lea.vmem [#allocation6], %s236
          %s239 = ssub.s32 192, 192
          %240 = vsyncadd %s234, %s239
          %s241 = smul.addr %s27, 3
          %s242 = smul.addr %s241, 64
          %s243 = scalar_lea.hbm %s1, %s242
          %s244 = sshll.u32 %s237, 4
          %s245 = int_to_ptr.vmem [resolvable:$true] %s244
          %250 = dma.hbm_to_vmem [thread:$0]  %s243, 192, %s245, %s234, 64, 64, 4
        $region28: #{tpu_custom_call.1} parent=19 // pred_fallthru
          _
        // Predicated region
        $region29: #{tpu_custom_call.1} parent=19 // pred_check
          %p251 = pneg %p117
        $region30: #{tpu_custom_call.1} parent=19 // pred_check_branch
          %253 = sbr.rel (%p251) target = $region32
        $region31: #{tpu_custom_call.1} parent=19 // pred_region
          %s254 = sand.u32 %s20, 1
          %s255 = scalar_lea.sflag [#allocation7], %s254
          %s256 = sand.u32 %s107, 1
          %s257 = smul.addr %s256, 16
          %s258 = scalar_lea.vmem [#allocation8], %s257
          %s260 = ssub.s32 256, 256
          %261 = vsyncadd %s255, %s260
          %s262 = smul.addr %s27, 2
          %s263 = sadd.s32 %s28, %s262
          %s264 = smul.addr %s263, 128
          %s265 = scalar_lea.hbm %s2, %s264
          %s266 = sshll.u32 %s258, 4
          %s267 = int_to_ptr.vmem [resolvable:$true] %s266
          %272 = dma.hbm_to_vmem [thread:$0]  %s265, 256, %s267, %s255, 128, 128, 8
        $region32: #{tpu_custom_call.1} parent=19 // pred_fallthru
          _
      $region20: #{tpu_custom_call.1} parent=5 // pred_fallthru
        _
      %p273 = scmp.le.s32.totalorder 1, %s20
      %p274 = scmp.lt.s32.totalorder %s20, 3
      %p275 = pnand %p273, %p274
      %p276 = pneg %p275
      // Predicated region
      $region33: #{tpu_custom_call.1} parent=5 // pred_check
        _
      $region34: #{tpu_custom_call.1} parent=5 // pred_check_branch
        %278 = sbr.rel (%p275) target = $region36
      $region35: #{tpu_custom_call.1} parent=5 // pred_region
        %s279 = ssub.s32 %s20, 1
        %s280 = sand.u32 %s56, 1
        %s281 = scalar_lea.sflag [#allocation4], %s280
        %s282 = sand.u32 %s56, 1
        %s283 = smul.addr %s282, 2048
        %s284 = scalar_lea.vmem [#allocation3], %s283
        // Predicated region
        $region37: #{tpu_custom_call.1} parent=35 // pred_check
          %p285 = pneg %p69
        $region38: #{tpu_custom_call.1} parent=35 // pred_check_branch
          %287 = sbr.rel (%p285) target = $region40
        $region39: #{tpu_custom_call.1} parent=35 // pred_region
          %288 = dma.done %s281, 32768
        $region40: #{tpu_custom_call.1} parent=35 // pred_fallthru
          _
        %s289 = sand.u32 %s25, 1
        %s290 = scalar_lea.sflag [#allocation7], %s289
        %s291 = sand.u32 %s82, 1
        %s292 = smul.addr %s291, 12
        %s293 = scalar_lea.vmem [#allocation6], %s292
        // Predicated region
        $region41: #{tpu_custom_call.1} parent=35 // pred_check
          %p294 = pneg %p95
        $region42: #{tpu_custom_call.1} parent=35 // pred_check_branch
          %296 = sbr.rel (%p294) target = $region44
        $region43: #{tpu_custom_call.1} parent=35 // pred_region
          %297 = dma.done %s290, 192
        $region44: #{tpu_custom_call.1} parent=35 // pred_fallthru
          _
        %s298 = sand.u32 %s25, 1
        %s299 = scalar_lea.sflag [#allocation7], %s298
        %s300 = sand.u32 %s110, 1
        %s301 = smul.addr %s300, 16
        %s302 = scalar_lea.vmem [#allocation8], %s301
        // Predicated region
        $region45: #{tpu_custom_call.1} parent=35 // pred_check
          %p303 = pneg %p123
        $region46: #{tpu_custom_call.1} parent=35 // pred_check_branch
          %305 = sbr.rel (%p303) target = $region48
        $region47: #{tpu_custom_call.1} parent=35 // pred_region
          %306 = dma.done %s299, 256
        $region48: #{tpu_custom_call.1} parent=35 // pred_fallthru
          _
        // Predicated region
        $region49: #{tpu_custom_call.1} parent=35 // pred_check
          %p307 = pneg %p144
        $region50: #{tpu_custom_call.1} parent=35 // pred_check_branch
          %309 = sbr.rel (%p307) target = $region52
        $region51: #{tpu_custom_call.1} parent=35 // pred_region
          %310 = dma.done [#allocation10], 4096
        $region52: #{tpu_custom_call.1} parent=35 // pred_fallthru
          _
        %s311 = sand.u32 %s56, 1
        %s312 = scalar_lea.sflag [#allocation4], %s311
        %s313 = sand.u32 %s56, 1
        %s314 = smul.addr %s313, 2048
        %s315 = scalar_lea.vmem [#allocation3], %s314
        %p316 = pneg %p69
        %p317 = pneg %p66
        %s318 = sand.u32 %s25, 1
        %s319 = scalar_lea.sflag [#allocation7], %s318
        %s320 = sand.u32 %s82, 1
        %s321 = smul.addr %s320, 12
        %s322 = scalar_lea.vmem [#allocation6], %s321
        %p323 = pneg %p95
        %p324 = pneg %p92
        %s325 = sand.u32 %s25, 1
        %s326 = scalar_lea.sflag [#allocation7], %s325
        %s327 = sand.u32 %s110, 1
        %s328 = smul.addr %s327, 16
        %s329 = scalar_lea.vmem [#allocation8], %s328
        %p330 = pneg %p123
        %p331 = pneg %p120
        %p332 = pneg %p144
        %p333 = pneg %p141
        %p334 = pneg %p172
        %p335 = pneg %p169
        %s336 = sand.u32 %s159, 1
        %s337 = scalar_lea.sflag [#allocation5], %s336
        %s338 = sand.u32 %s159, 1
        %s339 = smul.addr %s338, 128
        %s340 = scalar_lea.vmem [#allocation11], %s339
        %s341 = smul.u32 16, %s32
        %p343 = scmp.eq.s32.totalorder %s32, 0
        // Predicated region
        $region53: #{tpu_custom_call.1} parent=35 // pred_check
          %p344 = pneg %p343
        $region54: #{tpu_custom_call.1} parent=35 // pred_check_branch
          %346 = sbr.rel (%p344) target = $region56
        $region55: #{tpu_custom_call.1} parent=35 // pred_region
          %347 = vst [vmem:[#allocation2] sm:$0xff] 0.0
          %348 = vst [vmem:[#allocation2 + $0x8] sm:$0xff] 0.0
          %349 = vst [vmem:[#allocation2 + $0x10] sm:$0xff] 0.0
          %350 = vst [vmem:[#allocation2 + $0x18] sm:$0xff] 0.0
          %351 = vst [vmem:[#allocation2 + $0x20] sm:$0xff] 0.0
          %352 = vst [vmem:[#allocation2 + $0x28] sm:$0xff] 0.0
          %353 = vst [vmem:[#allocation2 + $0x30] sm:$0xff] 0.0
          %354 = vst [vmem:[#allocation2 + $0x38] sm:$0xff] 0.0
          %355 = vst [vmem:[#allocation2 + $0x40] sm:$0xff] 0.0
          %356 = vst [vmem:[#allocation2 + $0x48] sm:$0xff] 0.0
          %357 = vst [vmem:[#allocation2 + $0x50] sm:$0xff] 0.0
          %358 = vst [vmem:[#allocation2 + $0x58] sm:$0xff] 0.0
          %359 = vst [vmem:[#allocation2 + $0x60] sm:$0xff] 0.0
          %360 = vst [vmem:[#allocation2 + $0x68] sm:$0xff] 0.0
          %361 = vst [vmem:[#allocation2 + $0x70] sm:$0xff] 0.0
          %362 = vst [vmem:[#allocation2 + $0x78] sm:$0xff] 0.0
          %363 = vst [vmem:[#allocation2 + $0x80] sm:$0xff] 0.0
          %364 = vst [vmem:[#allocation2 + $0x88] sm:$0xff] 0.0
          %365 = vst [vmem:[#allocation2 + $0x90] sm:$0xff] 0.0
          %366 = vst [vmem:[#allocation2 + $0x98] sm:$0xff] 0.0
          %367 = vst [vmem:[#allocation2 + $0xa0] sm:$0xff] 0.0
          %368 = vst [vmem:[#allocation2 + $0xa8] sm:$0xff] 0.0
          %369 = vst [vmem:[#allocation2 + $0xb0] sm:$0xff] 0.0
          %370 = vst [vmem:[#allocation2 + $0xb8] sm:$0xff] 0.0
          %371 = vst [vmem:[#allocation2 + $0xc0] sm:$0xff] 0.0
          %372 = vst [vmem:[#allocation2 + $0xc8] sm:$0xff] 0.0
          %373 = vst [vmem:[#allocation2 + $0xd0] sm:$0xff] 0.0
          %374 = vst [vmem:[#allocation2 + $0xd8] sm:$0xff] 0.0
          %375 = vst [vmem:[#allocation2 + $0xe0] sm:$0xff] 0.0
          %376 = vst [vmem:[#allocation2 + $0xe8] sm:$0xff] 0.0
          %377 = vst [vmem:[#allocation2 + $0xf0] sm:$0xff] 0.0
          %378 = vst [vmem:[#allocation2 + $0xf8] sm:$0xff] 0.0
          %379 = vst [vmem:[#allocation2 + $0x100] sm:$0xff] 0.0
          %380 = vst [vmem:[#allocation2 + $0x108] sm:$0xff] 0.0
          %381 = vst [vmem:[#allocation2 + $0x110] sm:$0xff] 0.0
          %382 = vst [vmem:[#allocation2 + $0x118] sm:$0xff] 0.0
          %383 = vst [vmem:[#allocation2 + $0x120] sm:$0xff] 0.0
          %384 = vst [vmem:[#allocation2 + $0x128] sm:$0xff] 0.0
          %385 = vst [vmem:[#allocation2 + $0x130] sm:$0xff] 0.0
          %386 = vst [vmem:[#allocation2 + $0x138] sm:$0xff] 0.0
          %387 = vst [vmem:[#allocation2 + $0x140] sm:$0xff] 0.0
          %388 = vst [vmem:[#allocation2 + $0x148] sm:$0xff] 0.0
          %389 = vst [vmem:[#allocation2 + $0x150] sm:$0xff] 0.0
          %390 = vst [vmem:[#allocation2 + $0x158] sm:$0xff] 0.0
          %391 = vst [vmem:[#allocation2 + $0x160] sm:$0xff] 0.0
          %392 = vst [vmem:[#allocation2 + $0x168] sm:$0xff] 0.0
          %393 = vst [vmem:[#allocation2 + $0x170] sm:$0xff] 0.0
          %394 = vst [vmem:[#allocation2 + $0x178] sm:$0xff] 0.0
          %395 = vst [vmem:[#allocation2 + $0x180] sm:$0xff] 0.0
          %396 = vst [vmem:[#allocation2 + $0x188] sm:$0xff] 0.0
          %397 = vst [vmem:[#allocation2 + $0x190] sm:$0xff] 0.0
          %398 = vst [vmem:[#allocation2 + $0x198] sm:$0xff] 0.0
          %399 = vst [vmem:[#allocation2 + $0x1a0] sm:$0xff] 0.0
          %400 = vst [vmem:[#allocation2 + $0x1a8] sm:$0xff] 0.0
          %401 = vst [vmem:[#allocation2 + $0x1b0] sm:$0xff] 0.0
          %402 = vst [vmem:[#allocation2 + $0x1b8] sm:$0xff] 0.0
          %403 = vst [vmem:[#allocation2 + $0x1c0] sm:$0xff] 0.0
          %404 = vst [vmem:[#allocation2 + $0x1c8] sm:$0xff] 0.0
          %405 = vst [vmem:[#allocation2 + $0x1d0] sm:$0xff] 0.0
          %406 = vst [vmem:[#allocation2 + $0x1d8] sm:$0xff] 0.0
          %407 = vst [vmem:[#allocation2 + $0x1e0] sm:$0xff] 0.0
          %408 = vst [vmem:[#allocation2 + $0x1e8] sm:$0xff] 0.0
          %409 = vst [vmem:[#allocation2 + $0x1f0] sm:$0xff] 0.0
          %410 = vst [vmem:[#allocation2 + $0x1f8] sm:$0xff] 0.0
          %411 = vst [vmem:[#allocation2 + $0x200] sm:$0xff] 0.0
          %412 = vst [vmem:[#allocation2 + $0x208] sm:$0xff] 0.0
          %413 = vst [vmem:[#allocation2 + $0x210] sm:$0xff] 0.0
          %414 = vst [vmem:[#allocation2 + $0x218] sm:$0xff] 0.0
          %415 = vst [vmem:[#allocation2 + $0x220] sm:$0xff] 0.0
          %416 = vst [vmem:[#allocation2 + $0x228] sm:$0xff] 0.0
          %417 = vst [vmem:[#allocation2 + $0x230] sm:$0xff] 0.0
          %418 = vst [vmem:[#allocation2 + $0x238] sm:$0xff] 0.0
          %419 = vst [vmem:[#allocation2 + $0x240] sm:$0xff] 0.0
          %420 = vst [vmem:[#allocation2 + $0x248] sm:$0xff] 0.0
          %421 = vst [vmem:[#allocation2 + $0x250] sm:$0xff] 0.0
          %422 = vst [vmem:[#allocation2 + $0x258] sm:$0xff] 0.0
          %423 = vst [vmem:[#allocation2 + $0x260] sm:$0xff] 0.0
          %424 = vst [vmem:[#allocation2 + $0x268] sm:$0xff] 0.0
          %425 = vst [vmem:[#allocation2 + $0x270] sm:$0xff] 0.0
          %426 = vst [vmem:[#allocation2 + $0x278] sm:$0xff] 0.0
          %427 = vst [vmem:[#allocation2 + $0x280] sm:$0xff] 0.0
          %428 = vst [vmem:[#allocation2 + $0x288] sm:$0xff] 0.0
          %429 = vst [vmem:[#allocation2 + $0x290] sm:$0xff] 0.0
          %430 = vst [vmem:[#allocation2 + $0x298] sm:$0xff] 0.0
          %431 = vst [vmem:[#allocation2 + $0x2a0] sm:$0xff] 0.0
          %432 = vst [vmem:[#allocation2 + $0x2a8] sm:$0xff] 0.0
          %433 = vst [vmem:[#allocation2 + $0x2b0] sm:$0xff] 0.0
          %434 = vst [vmem:[#allocation2 + $0x2b8] sm:$0xff] 0.0
          %435 = vst [vmem:[#allocation2 + $0x2c0] sm:$0xff] 0.0
          %436 = vst [vmem:[#allocation2 + $0x2c8] sm:$0xff] 0.0
          %437 = vst [vmem:[#allocation2 + $0x2d0] sm:$0xff] 0.0
          %438 = vst [vmem:[#allocation2 + $0x2d8] sm:$0xff] 0.0
          %439 = vst [vmem:[#allocation2 + $0x2e0] sm:$0xff] 0.0
          %440 = vst [vmem:[#allocation2 + $0x2e8] sm:$0xff] 0.0
          %441 = vst [vmem:[#allocation2 + $0x2f0] sm:$0xff] 0.0
          %442 = vst [vmem:[#allocation2 + $0x2f8] sm:$0xff] 0.0
        $region56: #{tpu_custom_call.1} parent=35 // pred_fallthru
          _
        %s443 = smul.u32 %s32, 128
        %s444 = sshra.s32 %s443, 7
        %s445 = sand.u32 %s443, 127
        %s446 = smul.addr %s444, 4
        %s447 = scalar_lea.vmem %s293, %s446 [#allocation6]
        %v448 = vld [vmem:[%s447] sm:$0xf]
        %v449 = vld [vmem:[%s447 + $0x4] sm:$0xf]
        %v450 = vld [vmem:[%s447 + $0x8] sm:$0xf]
        %v451 = vld [vmem:[#allocation2] sm:$0xff]
        %v452 = vld [vmem:[#allocation2 + $0x8] sm:$0xff]
        %v453 = vld [vmem:[#allocation2 + $0x10] sm:$0xff]
        %v454 = vld [vmem:[#allocation2 + $0x18] sm:$0xff]
        %v455 = vld [vmem:[#allocation2 + $0x20] sm:$0xff]
        %v456 = vld [vmem:[#allocation2 + $0x28] sm:$0xff]
        %v457 = vld [vmem:[#allocation2 + $0x30] sm:$0xff]
        %v458 = vld [vmem:[#allocation2 + $0x38] sm:$0xff]
        %v459 = vld [vmem:[#allocation2 + $0x40] sm:$0xff]
        %v460 = vld [vmem:[#allocation2 + $0x48] sm:$0xff]
        %v461 = vld [vmem:[#allocation2 + $0x50] sm:$0xff]
        %v462 = vld [vmem:[#allocation2 + $0x58] sm:$0xff]
        %v463 = vld [vmem:[#allocation2 + $0x60] sm:$0xff]
        %v464 = vld [vmem:[#allocation2 + $0x68] sm:$0xff]
        %v465 = vld [vmem:[#allocation2 + $0x70] sm:$0xff]
        %v466 = vld [vmem:[#allocation2 + $0x78] sm:$0xff]
        %v467 = vld [vmem:[#allocation2 + $0x80] sm:$0xff]
        %v468 = vld [vmem:[#allocation2 + $0x88] sm:$0xff]
        %v469 = vld [vmem:[#allocation2 + $0x90] sm:$0xff]
        %v470 = vld [vmem:[#allocation2 + $0x98] sm:$0xff]
        %v471 = vld [vmem:[#allocation2 + $0xa0] sm:$0xff]
        %v472 = vld [vmem:[#allocation2 + $0xa8] sm:$0xff]
        %v473 = vld [vmem:[#allocation2 + $0xb0] sm:$0xff]
        %v474 = vld [vmem:[#allocation2 + $0xb8] sm:$0xff]
        %v475 = vld [vmem:[#allocation2 + $0xc0] sm:$0xff]
        %v476 = vld [vmem:[#allocation2 + $0xc8] sm:$0xff]
        %v477 = vld [vmem:[#allocation2 + $0xd0] sm:$0xff]
        %v478 = vld [vmem:[#allocation2 + $0xd8] sm:$0xff]
        %v479 = vld [vmem:[#allocation2 + $0xe0] sm:$0xff]
        %v480 = vld [vmem:[#allocation2 + $0xe8] sm:$0xff]
        %v481 = vld [vmem:[#allocation2 + $0xf0] sm:$0xff]
        %v482 = vld [vmem:[#allocation2 + $0xf8] sm:$0xff]
        %v483 = vld [vmem:[#allocation2 + $0x100] sm:$0xff]
        %v484 = vld [vmem:[#allocation2 + $0x108] sm:$0xff]
        %v485 = vld [vmem:[#allocation2 + $0x110] sm:$0xff]
        %v486 = vld [vmem:[#allocation2 + $0x118] sm:$0xff]
        %v487 = vld [vmem:[#allocation2 + $0x120] sm:$0xff]
        %v488 = vld [vmem:[#allocation2 + $0x128] sm:$0xff]
        %v489 = vld [vmem:[#allocation2 + $0x130] sm:$0xff]
        %v490 = vld [vmem:[#allocation2 + $0x138] sm:$0xff]
        %v491 = vld [vmem:[#allocation2 + $0x140] sm:$0xff]
        %v492 = vld [vmem:[#allocation2 + $0x148] sm:$0xff]
        %v493 = vld [vmem:[#allocation2 + $0x150] sm:$0xff]
        %v494 = vld [vmem:[#allocation2 + $0x158] sm:$0xff]
        %v495 = vld [vmem:[#allocation2 + $0x160] sm:$0xff]
        %v496 = vld [vmem:[#allocation2 + $0x168] sm:$0xff]
        %v497 = vld [vmem:[#allocation2 + $0x170] sm:$0xff]
        %v498 = vld [vmem:[#allocation2 + $0x178] sm:$0xff]
        %v499 = vld [vmem:[#allocation2 + $0x180] sm:$0xff]
        %v500 = vld [vmem:[#allocation2 + $0x188] sm:$0xff]
        %v501 = vld [vmem:[#allocation2 + $0x190] sm:$0xff]
        %v502 = vld [vmem:[#allocation2 + $0x198] sm:$0xff]
        %v503 = vld [vmem:[#allocation2 + $0x1a0] sm:$0xff]
        %v504 = vld [vmem:[#allocation2 + $0x1a8] sm:$0xff]
        %v505 = vld [vmem:[#allocation2 + $0x1b0] sm:$0xff]
        %v506 = vld [vmem:[#allocation2 + $0x1b8] sm:$0xff]
        %v507 = vld [vmem:[#allocation2 + $0x1c0] sm:$0xff]
        %v508 = vld [vmem:[#allocation2 + $0x1c8] sm:$0xff]
        %v509 = vld [vmem:[#allocation2 + $0x1d0] sm:$0xff]
        %v510 = vld [vmem:[#allocation2 + $0x1d8] sm:$0xff]
        %v511 = vld [vmem:[#allocation2 + $0x1e0] sm:$0xff]
        %v512 = vld [vmem:[#allocation2 + $0x1e8] sm:$0xff]
        %v513 = vld [vmem:[#allocation2 + $0x1f0] sm:$0xff]
        %v514 = vld [vmem:[#allocation2 + $0x1f8] sm:$0xff]
        %v515 = vld [vmem:[#allocation2 + $0x200] sm:$0xff]
        %v516 = vld [vmem:[#allocation2 + $0x208] sm:$0xff]
        %v517 = vld [vmem:[#allocation2 + $0x210] sm:$0xff]
        %v518 = vld [vmem:[#allocation2 + $0x218] sm:$0xff]
        %v519 = vld [vmem:[#allocation2 + $0x220] sm:$0xff]
        %v520 = vld [vmem:[#allocation2 + $0x228] sm:$0xff]
        %v521 = vld [vmem:[#allocation2 + $0x230] sm:$0xff]
        %v522 = vld [vmem:[#allocation2 + $0x238] sm:$0xff]
        %v523 = vld [vmem:[#allocation2 + $0x240] sm:$0xff]
        %v524 = vld [vmem:[#allocation2 + $0x248] sm:$0xff]
        %v525 = vld [vmem:[#allocation2 + $0x250] sm:$0xff]
        %v526 = vld [vmem:[#allocation2 + $0x258] sm:$0xff]
        %v527 = vld [vmem:[#allocation2 + $0x260] sm:$0xff]
        %v528 = vld [vmem:[#allocation2 + $0x268] sm:$0xff]
        %v529 = vld [vmem:[#allocation2 + $0x270] sm:$0xff]
        %v530 = vld [vmem:[#allocation2 + $0x278] sm:$0xff]
        %v531 = vld [vmem:[#allocation2 + $0x280] sm:$0xff]
        %v532 = vld [vmem:[#allocation2 + $0x288] sm:$0xff]
        %v533 = vld [vmem:[#allocation2 + $0x290] sm:$0xff]
        %v534 = vld [vmem:[#allocation2 + $0x298] sm:$0xff]
        %v535 = vld [vmem:[#allocation2 + $0x2a0] sm:$0xff]
        %v536 = vld [vmem:[#allocation2 + $0x2a8] sm:$0xff]
        %v537 = vld [vmem:[#allocation2 + $0x2b0] sm:$0xff]
        %v538 = vld [vmem:[#allocation2 + $0x2b8] sm:$0xff]
        %v539 = vld [vmem:[#allocation2 + $0x2c0] sm:$0xff]
        %v540 = vld [vmem:[#allocation2 + $0x2c8] sm:$0xff]
        %v541 = vld [vmem:[#allocation2 + $0x2d0] sm:$0xff]
        %v542 = vld [vmem:[#allocation2 + $0x2d8] sm:$0xff]
        %v543 = vld [vmem:[#allocation2 + $0x2e0] sm:$0xff]
        %v544 = vld [vmem:[#allocation2 + $0x2e8] sm:$0xff]
        %v545 = vld [vmem:[#allocation2 + $0x2f0] sm:$0xff]
        %v546 = vld [vmem:[#allocation2 + $0x2f8] sm:$0xff]
        %v547 = vld [vmem:[%s284] sm:$0xff]
        %v548 = vld [vmem:[%s284 + $0x8] sm:$0xff]
        %v549 = vld [vmem:[%s284 + $0x10] sm:$0xff]
        %v550 = vld [vmem:[%s284 + $0x18] sm:$0xff]
        %v551 = vld [vmem:[%s284 + $0x20] sm:$0xff]
        %v552 = vld [vmem:[%s284 + $0x28] sm:$0xff]
        %v553 = vld [vmem:[%s284 + $0x30] sm:$0xff]
        %v554 = vld [vmem:[%s284 + $0x38] sm:$0xff]
        %v555 = vld [vmem:[%s284 + $0x40] sm:$0xff]
        %v556 = vld [vmem:[%s284 + $0x48] sm:$0xff]
        %v557 = vld [vmem:[%s284 + $0x50] sm:$0xff]
        %v558 = vld [vmem:[%s284 + $0x58] sm:$0xff]
        %v559 = vld [vmem:[%s284 + $0x60] sm:$0xff]
        %v560 = vld [vmem:[%s284 + $0x68] sm:$0xff]
        %v561 = vld [vmem:[%s284 + $0x70] sm:$0xff]
        %v562 = vld [vmem:[%s284 + $0x78] sm:$0xff]
        %v563 = vld [vmem:[%s284 + $0x80] sm:$0xff]
        %v564 = vld [vmem:[%s284 + $0x88] sm:$0xff]
        %v565 = vld [vmem:[%s284 + $0x90] sm:$0xff]
        %v566 = vld [vmem:[%s284 + $0x98] sm:$0xff]
        %v567 = vld [vmem:[%s284 + $0xa0] sm:$0xff]
        %v568 = vld [vmem:[%s284 + $0xa8] sm:$0xff]
        %v569 = vld [vmem:[%s284 + $0xb0] sm:$0xff]
        %v570 = vld [vmem:[%s284 + $0xb8] sm:$0xff]
        %v571 = vld [vmem:[%s284 + $0xc0] sm:$0xff]
        %v572 = vld [vmem:[%s284 + $0xc8] sm:$0xff]
        %v573 = vld [vmem:[%s284 + $0xd0] sm:$0xff]
        %v574 = vld [vmem:[%s284 + $0xd8] sm:$0xff]
        %v575 = vld [vmem:[%s284 + $0xe0] sm:$0xff]
        %v576 = vld [vmem:[%s284 + $0xe8] sm:$0xff]
        %v577 = vld [vmem:[%s284 + $0xf0] sm:$0xff]
        %v578 = vld [vmem:[%s284 + $0xf8] sm:$0xff]
        %v579 = vld [vmem:[%s284 + $0x100] sm:$0xff]
        %v580 = vld [vmem:[%s284 + $0x108] sm:$0xff]
        %v581 = vld [vmem:[%s284 + $0x110] sm:$0xff]
        %v582 = vld [vmem:[%s284 + $0x118] sm:$0xff]
        %v583 = vld [vmem:[%s284 + $0x120] sm:$0xff]
        %v584 = vld [vmem:[%s284 + $0x128] sm:$0xff]
        %v585 = vld [vmem:[%s284 + $0x130] sm:$0xff]
        %v586 = vld [vmem:[%s284 + $0x138] sm:$0xff]
        %v587 = vld [vmem:[%s284 + $0x140] sm:$0xff]
        %v588 = vld [vmem:[%s284 + $0x148] sm:$0xff]
        %v589 = vld [vmem:[%s284 + $0x150] sm:$0xff]
        %v590 = vld [vmem:[%s284 + $0x158] sm:$0xff]
        %v591 = vld [vmem:[%s284 + $0x160] sm:$0xff]
        %v592 = vld [vmem:[%s284 + $0x168] sm:$0xff]
        %v593 = vld [vmem:[%s284 + $0x170] sm:$0xff]
        %v594 = vld [vmem:[%s284 + $0x178] sm:$0xff]
        %v595 = vld [vmem:[%s284 + $0x180] sm:$0xff]
        %v596 = vld [vmem:[%s284 + $0x188] sm:$0xff]
        %v597 = vld [vmem:[%s284 + $0x190] sm:$0xff]
        %v598 = vld [vmem:[%s284 + $0x198] sm:$0xff]
        %v599 = vld [vmem:[%s284 + $0x1a0] sm:$0xff]
        %v600 = vld [vmem:[%s284 + $0x1a8] sm:$0xff]
        %v601 = vld [vmem:[%s284 + $0x1b0] sm:$0xff]
        %v602 = vld [vmem:[%s284 + $0x1b8] sm:$0xff]
        %v603 = vld [vmem:[%s284 + $0x1c0] sm:$0xff]
        %v604 = vld [vmem:[%s284 + $0x1c8] sm:$0xff]
        %v605 = vld [vmem:[%s284 + $0x1d0] sm:$0xff]
        %v606 = vld [vmem:[%s284 + $0x1d8] sm:$0xff]
        %v607 = vld [vmem:[%s284 + $0x1e0] sm:$0xff]
        %v608 = vld [vmem:[%s284 + $0x1e8] sm:$0xff]
        %v609 = vld [vmem:[%s284 + $0x1f0] sm:$0xff]
        %v610 = vld [vmem:[%s284 + $0x1f8] sm:$0xff]
        %v611 = vld [vmem:[%s284 + $0x200] sm:$0xff]
        %v612 = vld [vmem:[%s284 + $0x208] sm:$0xff]
        %v613 = vld [vmem:[%s284 + $0x210] sm:$0xff]
        %v614 = vld [vmem:[%s284 + $0x218] sm:$0xff]
        %v615 = vld [vmem:[%s284 + $0x220] sm:$0xff]
        %v616 = vld [vmem:[%s284 + $0x228] sm:$0xff]
        %v617 = vld [vmem:[%s284 + $0x230] sm:$0xff]
        %v618 = vld [vmem:[%s284 + $0x238] sm:$0xff]
        %v619 = vld [vmem:[%s284 + $0x240] sm:$0xff]
        %v620 = vld [vmem:[%s284 + $0x248] sm:$0xff]
        %v621 = vld [vmem:[%s284 + $0x250] sm:$0xff]
        %v622 = vld [vmem:[%s284 + $0x258] sm:$0xff]
        %v623 = vld [vmem:[%s284 + $0x260] sm:$0xff]
        %v624 = vld [vmem:[%s284 + $0x268] sm:$0xff]
        %v625 = vld [vmem:[%s284 + $0x270] sm:$0xff]
        %v626 = vld [vmem:[%s284 + $0x278] sm:$0xff]
        %v627 = vld [vmem:[%s284 + $0x280] sm:$0xff]
        %v628 = vld [vmem:[%s284 + $0x288] sm:$0xff]
        %v629 = vld [vmem:[%s284 + $0x290] sm:$0xff]
        %v630 = vld [vmem:[%s284 + $0x298] sm:$0xff]
        %v631 = vld [vmem:[%s284 + $0x2a0] sm:$0xff]
        %v632 = vld [vmem:[%s284 + $0x2a8] sm:$0xff]
        %v633 = vld [vmem:[%s284 + $0x2b0] sm:$0xff]
        %v634 = vld [vmem:[%s284 + $0x2b8] sm:$0xff]
        %v635 = vld [vmem:[%s284 + $0x2c0] sm:$0xff]
        %v636 = vld [vmem:[%s284 + $0x2c8] sm:$0xff]
        %v637 = vld [vmem:[%s284 + $0x2d0] sm:$0xff]
        %v638 = vld [vmem:[%s284 + $0x2d8] sm:$0xff]
        %v639 = vld [vmem:[%s284 + $0x2e0] sm:$0xff]
        %v640 = vld [vmem:[%s284 + $0x2e8] sm:$0xff]
        %v641 = vld [vmem:[%s284 + $0x2f0] sm:$0xff]
        %v642 = vld [vmem:[%s284 + $0x2f8] sm:$0xff]
        %v643 = vld [vmem:[%s284 + $0x300] sm:$0xff]
        %v644 = vld [vmem:[%s284 + $0x308] sm:$0xff]
        %v645 = vld [vmem:[%s284 + $0x310] sm:$0xff]
        %v646 = vld [vmem:[%s284 + $0x318] sm:$0xff]
        %v647 = vld [vmem:[%s284 + $0x320] sm:$0xff]
        %v648 = vld [vmem:[%s284 + $0x328] sm:$0xff]
        %v649 = vld [vmem:[%s284 + $0x330] sm:$0xff]
        %v650 = vld [vmem:[%s284 + $0x338] sm:$0xff]
        %v651 = vld [vmem:[%s284 + $0x340] sm:$0xff]
        %v652 = vld [vmem:[%s284 + $0x348] sm:$0xff]
        %v653 = vld [vmem:[%s284 + $0x350] sm:$0xff]
        %v654 = vld [vmem:[%s284 + $0x358] sm:$0xff]
        %v655 = vld [vmem:[%s284 + $0x360] sm:$0xff]
        %v656 = vld [vmem:[%s284 + $0x368] sm:$0xff]
        %v657 = vld [vmem:[%s284 + $0x370] sm:$0xff]
        %v658 = vld [vmem:[%s284 + $0x378] sm:$0xff]
        %v659 = vld [vmem:[%s284 + $0x380] sm:$0xff]
        %v660 = vld [vmem:[%s284 + $0x388] sm:$0xff]
        %v661 = vld [vmem:[%s284 + $0x390] sm:$0xff]
        %v662 = vld [vmem:[%s284 + $0x398] sm:$0xff]
        %v663 = vld [vmem:[%s284 + $0x3a0] sm:$0xff]
        %v664 = vld [vmem:[%s284 + $0x3a8] sm:$0xff]
        %v665 = vld [vmem:[%s284 + $0x3b0] sm:$0xff]
        %v666 = vld [vmem:[%s284 + $0x3b8] sm:$0xff]
        %v667 = vld [vmem:[%s284 + $0x3c0] sm:$0xff]
        %v668 = vld [vmem:[%s284 + $0x3c8] sm:$0xff]
        %v669 = vld [vmem:[%s284 + $0x3d0] sm:$0xff]
        %v670 = vld [vmem:[%s284 + $0x3d8] sm:$0xff]
        %v671 = vld [vmem:[%s284 + $0x3e0] sm:$0xff]
        %v672 = vld [vmem:[%s284 + $0x3e8] sm:$0xff]
        %v673 = vld [vmem:[%s284 + $0x3f0] sm:$0xff]
        %v674 = vld [vmem:[%s284 + $0x3f8] sm:$0xff]
        %v675 = vld [vmem:[%s284 + $0x400] sm:$0xff]
        %v676 = vld [vmem:[%s284 + $0x408] sm:$0xff]
        %v677 = vld [vmem:[%s284 + $0x410] sm:$0xff]
        %v678 = vld [vmem:[%s284 + $0x418] sm:$0xff]
        %v679 = vld [vmem:[%s284 + $0x420] sm:$0xff]
        %v680 = vld [vmem:[%s284 + $0x428] sm:$0xff]
        %v681 = vld [vmem:[%s284 + $0x430] sm:$0xff]
        %v682 = vld [vmem:[%s284 + $0x438] sm:$0xff]
        %v683 = vld [vmem:[%s284 + $0x440] sm:$0xff]
        %v684 = vld [vmem:[%s284 + $0x448] sm:$0xff]
        %v685 = vld [vmem:[%s284 + $0x450] sm:$0xff]
        %v686 = vld [vmem:[%s284 + $0x458] sm:$0xff]
        %v687 = vld [vmem:[%s284 + $0x460] sm:$0xff]
        %v688 = vld [vmem:[%s284 + $0x468] sm:$0xff]
        %v689 = vld [vmem:[%s284 + $0x470] sm:$0xff]
        %v690 = vld [vmem:[%s284 + $0x478] sm:$0xff]
        %v691 = vld [vmem:[%s284 + $0x480] sm:$0xff]
        %v692 = vld [vmem:[%s284 + $0x488] sm:$0xff]
        %v693 = vld [vmem:[%s284 + $0x490] sm:$0xff]
        %v694 = vld [vmem:[%s284 + $0x498] sm:$0xff]
        %v695 = vld [vmem:[%s284 + $0x4a0] sm:$0xff]
        %v696 = vld [vmem:[%s284 + $0x4a8] sm:$0xff]
        %v697 = vld [vmem:[%s284 + $0x4b0] sm:$0xff]
        %v698 = vld [vmem:[%s284 + $0x4b8] sm:$0xff]
        %v699 = vld [vmem:[%s284 + $0x4c0] sm:$0xff]
        %v700 = vld [vmem:[%s284 + $0x4c8] sm:$0xff]
        %v701 = vld [vmem:[%s284 + $0x4d0] sm:$0xff]
        %v702 = vld [vmem:[%s284 + $0x4d8] sm:$0xff]
        %v703 = vld [vmem:[%s284 + $0x4e0] sm:$0xff]
        %v704 = vld [vmem:[%s284 + $0x4e8] sm:$0xff]
        %v705 = vld [vmem:[%s284 + $0x4f0] sm:$0xff]
        %v706 = vld [vmem:[%s284 + $0x4f8] sm:$0xff]
        %v707 = vld [vmem:[%s284 + $0x500] sm:$0xff]
        %v708 = vld [vmem:[%s284 + $0x508] sm:$0xff]
        %v709 = vld [vmem:[%s284 + $0x510] sm:$0xff]
        %v710 = vld [vmem:[%s284 + $0x518] sm:$0xff]
        %v711 = vld [vmem:[%s284 + $0x520] sm:$0xff]
        %v712 = vld [vmem:[%s284 + $0x528] sm:$0xff]
        %v713 = vld [vmem:[%s284 + $0x530] sm:$0xff]
        %v714 = vld [vmem:[%s284 + $0x538] sm:$0xff]
        %v715 = vld [vmem:[%s284 + $0x540] sm:$0xff]
        %v716 = vld [vmem:[%s284 + $0x548] sm:$0xff]
        %v717 = vld [vmem:[%s284 + $0x550] sm:$0xff]
        %v718 = vld [vmem:[%s284 + $0x558] sm:$0xff]
        %v719 = vld [vmem:[%s284 + $0x560] sm:$0xff]
        %v720 = vld [vmem:[%s284 + $0x568] sm:$0xff]
        %v721 = vld [vmem:[%s284 + $0x570] sm:$0xff]
        %v722 = vld [vmem:[%s284 + $0x578] sm:$0xff]
        %v723 = vld [vmem:[%s284 + $0x580] sm:$0xff]
        %v724 = vld [vmem:[%s284 + $0x588] sm:$0xff]
        %v725 = vld [vmem:[%s284 + $0x590] sm:$0xff]
        %v726 = vld [vmem:[%s284 + $0x598] sm:$0xff]
        %v727 = vld [vmem:[%s284 + $0x5a0] sm:$0xff]
        %v728 = vld [vmem:[%s284 + $0x5a8] sm:$0xff]
        %v729 = vld [vmem:[%s284 + $0x5b0] sm:$0xff]
        %v730 = vld [vmem:[%s284 + $0x5b8] sm:$0xff]
        %v731 = vld [vmem:[%s284 + $0x5c0] sm:$0xff]
        %v732 = vld [vmem:[%s284 + $0x5c8] sm:$0xff]
        %v733 = vld [vmem:[%s284 + $0x5d0] sm:$0xff]
        %v734 = vld [vmem:[%s284 + $0x5d8] sm:$0xff]
        %v735 = vld [vmem:[%s284 + $0x5e0] sm:$0xff]
        %v736 = vld [vmem:[%s284 + $0x5e8] sm:$0xff]
        %v737 = vld [vmem:[%s284 + $0x5f0] sm:$0xff]
        %v738 = vld [vmem:[%s284 + $0x5f8] sm:$0xff]
        %v739 = vld [vmem:[%s284 + $0x600] sm:$0xff]
        %v740 = vld [vmem:[%s284 + $0x608] sm:$0xff]
        %v741 = vld [vmem:[%s284 + $0x610] sm:$0xff]
        %v742 = vld [vmem:[%s284 + $0x618] sm:$0xff]
        %v743 = vld [vmem:[%s284 + $0x620] sm:$0xff]
        %v744 = vld [vmem:[%s284 + $0x628] sm:$0xff]
        %v745 = vld [vmem:[%s284 + $0x630] sm:$0xff]
        %v746 = vld [vmem:[%s284 + $0x638] sm:$0xff]
        %v747 = vld [vmem:[%s284 + $0x640] sm:$0xff]
        %v748 = vld [vmem:[%s284 + $0x648] sm:$0xff]
        %v749 = vld [vmem:[%s284 + $0x650] sm:$0xff]
        %v750 = vld [vmem:[%s284 + $0x658] sm:$0xff]
        %v751 = vld [vmem:[%s284 + $0x660] sm:$0xff]
        %v752 = vld [vmem:[%s284 + $0x668] sm:$0xff]
        %v753 = vld [vmem:[%s284 + $0x670] sm:$0xff]
        %v754 = vld [vmem:[%s284 + $0x678] sm:$0xff]
        %v755 = vld [vmem:[%s284 + $0x680] sm:$0xff]
        %v756 = vld [vmem:[%s284 + $0x688] sm:$0xff]
        %v757 = vld [vmem:[%s284 + $0x690] sm:$0xff]
        %v758 = vld [vmem:[%s284 + $0x698] sm:$0xff]
        %v759 = vld [vmem:[%s284 + $0x6a0] sm:$0xff]
        %v760 = vld [vmem:[%s284 + $0x6a8] sm:$0xff]
        %v761 = vld [vmem:[%s284 + $0x6b0] sm:$0xff]
        %v762 = vld [vmem:[%s284 + $0x6b8] sm:$0xff]
        %v763 = vld [vmem:[%s284 + $0x6c0] sm:$0xff]
        %v764 = vld [vmem:[%s284 + $0x6c8] sm:$0xff]
        %v765 = vld [vmem:[%s284 + $0x6d0] sm:$0xff]
        %v766 = vld [vmem:[%s284 + $0x6d8] sm:$0xff]
        %v767 = vld [vmem:[%s284 + $0x6e0] sm:$0xff]
        %v768 = vld [vmem:[%s284 + $0x6e8] sm:$0xff]
        %v769 = vld [vmem:[%s284 + $0x6f0] sm:$0xff]
        %v770 = vld [vmem:[%s284 + $0x6f8] sm:$0xff]
        %v771 = vld [vmem:[%s284 + $0x700] sm:$0xff]
        %v772 = vld [vmem:[%s284 + $0x708] sm:$0xff]
        %v773 = vld [vmem:[%s284 + $0x710] sm:$0xff]
        %v774 = vld [vmem:[%s284 + $0x718] sm:$0xff]
        %v775 = vld [vmem:[%s284 + $0x720] sm:$0xff]
        %v776 = vld [vmem:[%s284 + $0x728] sm:$0xff]
        %v777 = vld [vmem:[%s284 + $0x730] sm:$0xff]
        %v778 = vld [vmem:[%s284 + $0x738] sm:$0xff]
        %v779 = vld [vmem:[%s284 + $0x740] sm:$0xff]
        %v780 = vld [vmem:[%s284 + $0x748] sm:$0xff]
        %v781 = vld [vmem:[%s284 + $0x750] sm:$0xff]
        %v782 = vld [vmem:[%s284 + $0x758] sm:$0xff]
        %v783 = vld [vmem:[%s284 + $0x760] sm:$0xff]
        %v784 = vld [vmem:[%s284 + $0x768] sm:$0xff]
        %v785 = vld [vmem:[%s284 + $0x770] sm:$0xff]
        %v786 = vld [vmem:[%s284 + $0x778] sm:$0xff]
        %v787 = vld [vmem:[%s284 + $0x780] sm:$0xff]
        %v788 = vld [vmem:[%s284 + $0x788] sm:$0xff]
        %v789 = vld [vmem:[%s284 + $0x790] sm:$0xff]
        %v790 = vld [vmem:[%s284 + $0x798] sm:$0xff]
        %v791 = vld [vmem:[%s284 + $0x7a0] sm:$0xff]
        %v792 = vld [vmem:[%s284 + $0x7a8] sm:$0xff]
        %v793 = vld [vmem:[%s284 + $0x7b0] sm:$0xff]
        %v794 = vld [vmem:[%s284 + $0x7b8] sm:$0xff]
        %v795 = vld [vmem:[%s284 + $0x7c0] sm:$0xff]
        %v796 = vld [vmem:[%s284 + $0x7c8] sm:$0xff]
        %v797 = vld [vmem:[%s284 + $0x7d0] sm:$0xff]
        %v798 = vld [vmem:[%s284 + $0x7d8] sm:$0xff]
        %v799 = vld [vmem:[%s284 + $0x7e0] sm:$0xff]
        %v800 = vld [vmem:[%s284 + $0x7e8] sm:$0xff]
        %v801 = vld [vmem:[%s284 + $0x7f0] sm:$0xff]
        %v802 = vld [vmem:[%s284 + $0x7f8] sm:$0xff]
        %v806 = vunpack.c.l.b16 %v448
        %v807 = vunpack.c.l.b16 %v449
        %v808 = vunpack.c.l.b16 %v450
        %v809 = vpack.c.b16 %v807, %v806
        %v810 = vpack.c.b16 %v808, %v808
        %v1069 = vunpack.c.l.b16 %v547
        %v1070 = vunpack.c.h.b16 %v547
        %v1071 = vunpack.c.l.b16 %v548
        %v1072 = vunpack.c.h.b16 %v548
        %v1073 = vunpack.c.l.b16 %v549
        %v1074 = vunpack.c.h.b16 %v549
        %v1075 = vunpack.c.l.b16 %v550
        %v1076 = vunpack.c.h.b16 %v550
        %v1077 = vunpack.c.l.b16 %v551
        %v1078 = vunpack.c.h.b16 %v551
        %v1079 = vunpack.c.l.b16 %v552
        %v1080 = vunpack.c.h.b16 %v552
        %v1081 = vunpack.c.l.b16 %v553
        %v1082 = vunpack.c.h.b16 %v553
        %v1083 = vunpack.c.l.b16 %v554
        %v1084 = vunpack.c.h.b16 %v554
        %v1085 = vunpack.c.l.b16 %v555
        %v1086 = vunpack.c.h.b16 %v555
        %v1087 = vunpack.c.l.b16 %v556
        %v1088 = vunpack.c.h.b16 %v556
        %v1089 = vunpack.c.l.b16 %v557
        %v1090 = vunpack.c.h.b16 %v557
        %v1091 = vunpack.c.l.b16 %v558
        %v1092 = vunpack.c.h.b16 %v558
        %v1093 = vunpack.c.l.b16 %v559
        %v1094 = vunpack.c.h.b16 %v559
        %v1095 = vunpack.c.l.b16 %v560
        %v1096 = vunpack.c.h.b16 %v560
        %v1097 = vunpack.c.l.b16 %v561
        %v1098 = vunpack.c.h.b16 %v561
        %v1099 = vunpack.c.l.b16 %v562
        %v1100 = vunpack.c.h.b16 %v562
        %v1101 = vunpack.c.l.b16 %v563
        %v1102 = vunpack.c.h.b16 %v563
        %v1103 = vunpack.c.l.b16 %v564
        %v1104 = vunpack.c.h.b16 %v564
        %v1105 = vunpack.c.l.b16 %v565
        %v1106 = vunpack.c.h.b16 %v565
        %v1107 = vunpack.c.l.b16 %v566
        %v1108 = vunpack.c.h.b16 %v566
        %v1109 = vunpack.c.l.b16 %v567
        %v1110 = vunpack.c.h.b16 %v567
        %v1111 = vunpack.c.l.b16 %v568
        %v1112 = vunpack.c.h.b16 %v568
        %v1113 = vunpack.c.l.b16 %v569
        %v1114 = vunpack.c.h.b16 %v569
        %v1115 = vunpack.c.l.b16 %v570
        %v1116 = vunpack.c.h.b16 %v570
        %v1117 = vunpack.c.l.b16 %v571
        %v1118 = vunpack.c.h.b16 %v571
        %v1119 = vunpack.c.l.b16 %v572
        %v1120 = vunpack.c.h.b16 %v572
        %v1121 = vunpack.c.l.b16 %v573
        %v1122 = vunpack.c.h.b16 %v573
        %v1123 = vunpack.c.l.b16 %v574
        %v1124 = vunpack.c.h.b16 %v574
        %v1125 = vunpack.c.l.b16 %v575
        %v1126 = vunpack.c.h.b16 %v575
        %v1127 = vunpack.c.l.b16 %v576
        %v1128 = vunpack.c.h.b16 %v576
        %v1129 = vunpack.c.l.b16 %v577
        %v1130 = vunpack.c.h.b16 %v577
        %v1131 = vunpack.c.l.b16 %v578
        %v1132 = vunpack.c.h.b16 %v578
        %v1133 = vunpack.c.l.b16 %v579
        %v1134 = vunpack.c.h.b16 %v579
        %v1135 = vunpack.c.l.b16 %v580
        %v1136 = vunpack.c.h.b16 %v580
        %v1137 = vunpack.c.l.b16 %v581
        %v1138 = vunpack.c.h.b16 %v581
        %v1139 = vunpack.c.l.b16 %v582
        %v1140 = vunpack.c.h.b16 %v582
        %v1141 = vunpack.c.l.b16 %v583
        %v1142 = vunpack.c.h.b16 %v583
        %v1143 = vunpack.c.l.b16 %v584
        %v1144 = vunpack.c.h.b16 %v584
        %v1145 = vunpack.c.l.b16 %v585
        %v1146 = vunpack.c.h.b16 %v585
        %v1147 = vunpack.c.l.b16 %v586
        %v1148 = vunpack.c.h.b16 %v586
        %v1149 = vunpack.c.l.b16 %v587
        %v1150 = vunpack.c.h.b16 %v587
        %v1151 = vunpack.c.l.b16 %v588
        %v1152 = vunpack.c.h.b16 %v588
        %v1153 = vunpack.c.l.b16 %v589
        %v1154 = vunpack.c.h.b16 %v589
        %v1155 = vunpack.c.l.b16 %v590
        %v1156 = vunpack.c.h.b16 %v590
        %v1157 = vunpack.c.l.b16 %v591
        %v1158 = vunpack.c.h.b16 %v591
        %v1159 = vunpack.c.l.b16 %v592
        %v1160 = vunpack.c.h.b16 %v592
        %v1161 = vunpack.c.l.b16 %v593
        %v1162 = vunpack.c.h.b16 %v593
        %v1163 = vunpack.c.l.b16 %v594
        %v1164 = vunpack.c.h.b16 %v594
        %v1165 = vunpack.c.l.b16 %v595
        %v1166 = vunpack.c.h.b16 %v595
        %v1167 = vunpack.c.l.b16 %v596
        %v1168 = vunpack.c.h.b16 %v596
        %v1169 = vunpack.c.l.b16 %v597
        %v1170 = vunpack.c.h.b16 %v597
        %v1171 = vunpack.c.l.b16 %v598
        %v1172 = vunpack.c.h.b16 %v598
        %v1173 = vunpack.c.l.b16 %v599
        %v1174 = vunpack.c.h.b16 %v599
        %v1175 = vunpack.c.l.b16 %v600
        %v1176 = vunpack.c.h.b16 %v600
        %v1177 = vunpack.c.l.b16 %v601
        %v1178 = vunpack.c.h.b16 %v601
        %v1179 = vunpack.c.l.b16 %v602
        %v1180 = vunpack.c.h.b16 %v602
        %v1181 = vunpack.c.l.b16 %v603
        %v1182 = vunpack.c.h.b16 %v603
        %v1183 = vunpack.c.l.b16 %v604
        %v1184 = vunpack.c.h.b16 %v604
        %v1185 = vunpack.c.l.b16 %v605
        %v1186 = vunpack.c.h.b16 %v605
        %v1187 = vunpack.c.l.b16 %v606
        %v1188 = vunpack.c.h.b16 %v606
        %v1189 = vunpack.c.l.b16 %v607
        %v1190 = vunpack.c.h.b16 %v607
        %v1191 = vunpack.c.l.b16 %v608
        %v1192 = vunpack.c.h.b16 %v608
        %v1193 = vunpack.c.l.b16 %v609
        %v1194 = vunpack.c.h.b16 %v609
        %v1195 = vunpack.c.l.b16 %v610
        %v1196 = vunpack.c.h.b16 %v610
        %v1197 = vunpack.c.l.b16 %v611
        %v1198 = vunpack.c.h.b16 %v611
        %v1199 = vunpack.c.l.b16 %v612
        %v1200 = vunpack.c.h.b16 %v612
        %v1201 = vunpack.c.l.b16 %v613
        %v1202 = vunpack.c.h.b16 %v613
        %v1203 = vunpack.c.l.b16 %v614
        %v1204 = vunpack.c.h.b16 %v614
        %v1205 = vunpack.c.l.b16 %v615
        %v1206 = vunpack.c.h.b16 %v615
        %v1207 = vunpack.c.l.b16 %v616
        %v1208 = vunpack.c.h.b16 %v616
        %v1209 = vunpack.c.l.b16 %v617
        %v1210 = vunpack.c.h.b16 %v617
        %v1211 = vunpack.c.l.b16 %v618
        %v1212 = vunpack.c.h.b16 %v618
        %v1213 = vunpack.c.l.b16 %v619
        %v1214 = vunpack.c.h.b16 %v619
        %v1215 = vunpack.c.l.b16 %v620
        %v1216 = vunpack.c.h.b16 %v620
        %v1217 = vunpack.c.l.b16 %v621
        %v1218 = vunpack.c.h.b16 %v621
        %v1219 = vunpack.c.l.b16 %v622
        %v1220 = vunpack.c.h.b16 %v622
        %v1221 = vunpack.c.l.b16 %v623
        %v1222 = vunpack.c.h.b16 %v623
        %v1223 = vunpack.c.l.b16 %v624
        %v1224 = vunpack.c.h.b16 %v624
        %v1225 = vunpack.c.l.b16 %v625
        %v1226 = vunpack.c.h.b16 %v625
        %v1227 = vunpack.c.l.b16 %v626
        %v1228 = vunpack.c.h.b16 %v626
        %v1229 = vunpack.c.l.b16 %v627
        %v1230 = vunpack.c.h.b16 %v627
        %v1231 = vunpack.c.l.b16 %v628
        %v1232 = vunpack.c.h.b16 %v628
        %v1233 = vunpack.c.l.b16 %v629
        %v1234 = vunpack.c.h.b16 %v629
        %v1235 = vunpack.c.l.b16 %v630
        %v1236 = vunpack.c.h.b16 %v630
        %v1237 = vunpack.c.l.b16 %v631
        %v1238 = vunpack.c.h.b16 %v631
        %v1239 = vunpack.c.l.b16 %v632
        %v1240 = vunpack.c.h.b16 %v632
        %v1241 = vunpack.c.l.b16 %v633
        %v1242 = vunpack.c.h.b16 %v633
        %v1243 = vunpack.c.l.b16 %v634
        %v1244 = vunpack.c.h.b16 %v634
        %v1245 = vunpack.c.l.b16 %v635
        %v1246 = vunpack.c.h.b16 %v635
        %v1247 = vunpack.c.l.b16 %v636
        %v1248 = vunpack.c.h.b16 %v636
        %v1249 = vunpack.c.l.b16 %v637
        %v1250 = vunpack.c.h.b16 %v637
        %v1251 = vunpack.c.l.b16 %v638
        %v1252 = vunpack.c.h.b16 %v638
        %v1253 = vunpack.c.l.b16 %v639
        %v1254 = vunpack.c.h.b16 %v639
        %v1255 = vunpack.c.l.b16 %v640
        %v1256 = vunpack.c.h.b16 %v640
        %v1257 = vunpack.c.l.b16 %v641
        %v1258 = vunpack.c.h.b16 %v641
        %v1259 = vunpack.c.l.b16 %v642
        %v1260 = vunpack.c.h.b16 %v642
        %v1261 = vunpack.c.l.b16 %v643
        %v1262 = vunpack.c.h.b16 %v643
        %v1263 = vunpack.c.l.b16 %v644
        %v1264 = vunpack.c.h.b16 %v644
        %v1265 = vunpack.c.l.b16 %v645
        %v1266 = vunpack.c.h.b16 %v645
        %v1267 = vunpack.c.l.b16 %v646
        %v1268 = vunpack.c.h.b16 %v646
        %v1269 = vunpack.c.l.b16 %v647
        %v1270 = vunpack.c.h.b16 %v647
        %v1271 = vunpack.c.l.b16 %v648
        %v1272 = vunpack.c.h.b16 %v648
        %v1273 = vunpack.c.l.b16 %v649
        %v1274 = vunpack.c.h.b16 %v649
        %v1275 = vunpack.c.l.b16 %v650
        %v1276 = vunpack.c.h.b16 %v650
        %v1277 = vunpack.c.l.b16 %v651
        %v1278 = vunpack.c.h.b16 %v651
        %v1279 = vunpack.c.l.b16 %v652
        %v1280 = vunpack.c.h.b16 %v652
        %v1281 = vunpack.c.l.b16 %v653
        %v1282 = vunpack.c.h.b16 %v653
        %v1283 = vunpack.c.l.b16 %v654
        %v1284 = vunpack.c.h.b16 %v654
        %v1285 = vunpack.c.l.b16 %v655
        %v1286 = vunpack.c.h.b16 %v655
        %v1287 = vunpack.c.l.b16 %v656
        %v1288 = vunpack.c.h.b16 %v656
        %v1289 = vunpack.c.l.b16 %v657
        %v1290 = vunpack.c.h.b16 %v657
        %v1291 = vunpack.c.l.b16 %v658
        %v1292 = vunpack.c.h.b16 %v658
        %v1293 = vunpack.c.l.b16 %v659
        %v1294 = vunpack.c.h.b16 %v659
        %v1295 = vunpack.c.l.b16 %v660
        %v1296 = vunpack.c.h.b16 %v660
        %v1297 = vunpack.c.l.b16 %v661
        %v1298 = vunpack.c.h.b16 %v661
        %v1299 = vunpack.c.l.b16 %v662
        %v1300 = vunpack.c.h.b16 %v662
        %v1301 = vunpack.c.l.b16 %v663
        %v1302 = vunpack.c.h.b16 %v663
        %v1303 = vunpack.c.l.b16 %v664
        %v1304 = vunpack.c.h.b16 %v664
        %v1305 = vunpack.c.l.b16 %v665
        %v1306 = vunpack.c.h.b16 %v665
        %v1307 = vunpack.c.l.b16 %v666
        %v1308 = vunpack.c.h.b16 %v666
        %v1309 = vunpack.c.l.b16 %v667
        %v1310 = vunpack.c.h.b16 %v667
        %v1311 = vunpack.c.l.b16 %v668
        %v1312 = vunpack.c.h.b16 %v668
        %v1313 = vunpack.c.l.b16 %v669
        %v1314 = vunpack.c.h.b16 %v669
        %v1315 = vunpack.c.l.b16 %v670
        %v1316 = vunpack.c.h.b16 %v670
        %v1317 = vunpack.c.l.b16 %v671
        %v1318 = vunpack.c.h.b16 %v671
        %v1319 = vunpack.c.l.b16 %v672
        %v1320 = vunpack.c.h.b16 %v672
        %v1321 = vunpack.c.l.b16 %v673
        %v1322 = vunpack.c.h.b16 %v673
        %v1323 = vunpack.c.l.b16 %v674
        %v1324 = vunpack.c.h.b16 %v674
        %v1325 = vunpack.c.l.b16 %v675
        %v1326 = vunpack.c.h.b16 %v675
        %v1327 = vunpack.c.l.b16 %v676
        %v1328 = vunpack.c.h.b16 %v676
        %v1329 = vunpack.c.l.b16 %v677
        %v1330 = vunpack.c.h.b16 %v677
        %v1331 = vunpack.c.l.b16 %v678
        %v1332 = vunpack.c.h.b16 %v678
        %v1333 = vunpack.c.l.b16 %v679
        %v1334 = vunpack.c.h.b16 %v679
        %v1335 = vunpack.c.l.b16 %v680
        %v1336 = vunpack.c.h.b16 %v680
        %v1337 = vunpack.c.l.b16 %v681
        %v1338 = vunpack.c.h.b16 %v681
        %v1339 = vunpack.c.l.b16 %v682
        %v1340 = vunpack.c.h.b16 %v682
        %v1341 = vunpack.c.l.b16 %v683
        %v1342 = vunpack.c.h.b16 %v683
        %v1343 = vunpack.c.l.b16 %v684
        %v1344 = vunpack.c.h.b16 %v684
        %v1345 = vunpack.c.l.b16 %v685
        %v1346 = vunpack.c.h.b16 %v685
        %v1347 = vunpack.c.l.b16 %v686
        %v1348 = vunpack.c.h.b16 %v686
        %v1349 = vunpack.c.l.b16 %v687
        %v1350 = vunpack.c.h.b16 %v687
        %v1351 = vunpack.c.l.b16 %v688
        %v1352 = vunpack.c.h.b16 %v688
        %v1353 = vunpack.c.l.b16 %v689
        %v1354 = vunpack.c.h.b16 %v689
        %v1355 = vunpack.c.l.b16 %v690
        %v1356 = vunpack.c.h.b16 %v690
        %v1357 = vunpack.c.l.b16 %v691
        %v1358 = vunpack.c.h.b16 %v691
        %v1359 = vunpack.c.l.b16 %v692
        %v1360 = vunpack.c.h.b16 %v692
        %v1361 = vunpack.c.l.b16 %v693
        %v1362 = vunpack.c.h.b16 %v693
        %v1363 = vunpack.c.l.b16 %v694
        %v1364 = vunpack.c.h.b16 %v694
        %v1365 = vunpack.c.l.b16 %v695
        %v1366 = vunpack.c.h.b16 %v695
        %v1367 = vunpack.c.l.b16 %v696
        %v1368 = vunpack.c.h.b16 %v696
        %v1369 = vunpack.c.l.b16 %v697
        %v1370 = vunpack.c.h.b16 %v697
        %v1371 = vunpack.c.l.b16 %v698
        %v1372 = vunpack.c.h.b16 %v698
        %v1373 = vunpack.c.l.b16 %v699
        %v1374 = vunpack.c.h.b16 %v699
        %v1375 = vunpack.c.l.b16 %v700
        %v1376 = vunpack.c.h.b16 %v700
        %v1377 = vunpack.c.l.b16 %v701
        %v1378 = vunpack.c.h.b16 %v701
        %v1379 = vunpack.c.l.b16 %v702
        %v1380 = vunpack.c.h.b16 %v702
        %v1381 = vunpack.c.l.b16 %v703
        %v1382 = vunpack.c.h.b16 %v703
        %v1383 = vunpack.c.l.b16 %v704
        %v1384 = vunpack.c.h.b16 %v704
        %v1385 = vunpack.c.l.b16 %v705
        %v1386 = vunpack.c.h.b16 %v705
        %v1387 = vunpack.c.l.b16 %v706
        %v1388 = vunpack.c.h.b16 %v706
        %v1389 = vunpack.c.l.b16 %v707
        %v1390 = vunpack.c.h.b16 %v707
        %v1391 = vunpack.c.l.b16 %v708
        %v1392 = vunpack.c.h.b16 %v708
        %v1393 = vunpack.c.l.b16 %v709
        %v1394 = vunpack.c.h.b16 %v709
        %v1395 = vunpack.c.l.b16 %v710
        %v1396 = vunpack.c.h.b16 %v710
        %v1397 = vunpack.c.l.b16 %v711
        %v1398 = vunpack.c.h.b16 %v711
        %v1399 = vunpack.c.l.b16 %v712
        %v1400 = vunpack.c.h.b16 %v712
        %v1401 = vunpack.c.l.b16 %v713
        %v1402 = vunpack.c.h.b16 %v713
        %v1403 = vunpack.c.l.b16 %v714
        %v1404 = vunpack.c.h.b16 %v714
        %v1405 = vunpack.c.l.b16 %v715
        %v1406 = vunpack.c.h.b16 %v715
        %v1407 = vunpack.c.l.b16 %v716
        %v1408 = vunpack.c.h.b16 %v716
        %v1409 = vunpack.c.l.b16 %v717
        %v1410 = vunpack.c.h.b16 %v717
        %v1411 = vunpack.c.l.b16 %v718
        %v1412 = vunpack.c.h.b16 %v718
        %v1413 = vunpack.c.l.b16 %v719
        %v1414 = vunpack.c.h.b16 %v719
        %v1415 = vunpack.c.l.b16 %v720
        %v1416 = vunpack.c.h.b16 %v720
        %v1417 = vunpack.c.l.b16 %v721
        %v1418 = vunpack.c.h.b16 %v721
        %v1419 = vunpack.c.l.b16 %v722
        %v1420 = vunpack.c.h.b16 %v722
        %v1421 = vunpack.c.l.b16 %v723
        %v1422 = vunpack.c.h.b16 %v723
        %v1423 = vunpack.c.l.b16 %v724
        %v1424 = vunpack.c.h.b16 %v724
        %v1425 = vunpack.c.l.b16 %v725
        %v1426 = vunpack.c.h.b16 %v725
        %v1427 = vunpack.c.l.b16 %v726
        %v1428 = vunpack.c.h.b16 %v726
        %v1429 = vunpack.c.l.b16 %v727
        %v1430 = vunpack.c.h.b16 %v727
        %v1431 = vunpack.c.l.b16 %v728
        %v1432 = vunpack.c.h.b16 %v728
        %v1433 = vunpack.c.l.b16 %v729
        %v1434 = vunpack.c.h.b16 %v729
        %v1435 = vunpack.c.l.b16 %v730
        %v1436 = vunpack.c.h.b16 %v730
        %v1437 = vunpack.c.l.b16 %v731
        %v1438 = vunpack.c.h.b16 %v731
        %v1439 = vunpack.c.l.b16 %v732
        %v1440 = vunpack.c.h.b16 %v732
        %v1441 = vunpack.c.l.b16 %v733
        %v1442 = vunpack.c.h.b16 %v733
        %v1443 = vunpack.c.l.b16 %v734
        %v1444 = vunpack.c.h.b16 %v734
        %v1445 = vunpack.c.l.b16 %v735
        %v1446 = vunpack.c.h.b16 %v735
        %v1447 = vunpack.c.l.b16 %v736
        %v1448 = vunpack.c.h.b16 %v736
        %v1449 = vunpack.c.l.b16 %v737
        %v1450 = vunpack.c.h.b16 %v737
        %v1451 = vunpack.c.l.b16 %v738
        %v1452 = vunpack.c.h.b16 %v738
        %v1453 = vunpack.c.l.b16 %v739
        %v1454 = vunpack.c.h.b16 %v739
        %v1455 = vunpack.c.l.b16 %v740
        %v1456 = vunpack.c.h.b16 %v740
        %v1457 = vunpack.c.l.b16 %v741
        %v1458 = vunpack.c.h.b16 %v741
        %v1459 = vunpack.c.l.b16 %v742
        %v1460 = vunpack.c.h.b16 %v742
        %v1461 = vunpack.c.l.b16 %v743
        %v1462 = vunpack.c.h.b16 %v743
        %v1463 = vunpack.c.l.b16 %v744
        %v1464 = vunpack.c.h.b16 %v744
        %v1465 = vunpack.c.l.b16 %v745
        %v1466 = vunpack.c.h.b16 %v745
        %v1467 = vunpack.c.l.b16 %v746
        %v1468 = vunpack.c.h.b16 %v746
        %v1469 = vunpack.c.l.b16 %v747
        %v1470 = vunpack.c.h.b16 %v747
        %v1471 = vunpack.c.l.b16 %v748
        %v1472 = vunpack.c.h.b16 %v748
        %v1473 = vunpack.c.l.b16 %v749
        %v1474 = vunpack.c.h.b16 %v749
        %v1475 = vunpack.c.l.b16 %v750
        %v1476 = vunpack.c.h.b16 %v750
        %v1477 = vunpack.c.l.b16 %v751
        %v1478 = vunpack.c.h.b16 %v751
        %v1479 = vunpack.c.l.b16 %v752
        %v1480 = vunpack.c.h.b16 %v752
        %v1481 = vunpack.c.l.b16 %v753
        %v1482 = vunpack.c.h.b16 %v753
        %v1483 = vunpack.c.l.b16 %v754
        %v1484 = vunpack.c.h.b16 %v754
        %v1485 = vunpack.c.l.b16 %v755
        %v1486 = vunpack.c.h.b16 %v755
        %v1487 = vunpack.c.l.b16 %v756
        %v1488 = vunpack.c.h.b16 %v756
        %v1489 = vunpack.c.l.b16 %v757
        %v1490 = vunpack.c.h.b16 %v757
        %v1491 = vunpack.c.l.b16 %v758
        %v1492 = vunpack.c.h.b16 %v758
        %v1493 = vunpack.c.l.b16 %v759
        %v1494 = vunpack.c.h.b16 %v759
        %v1495 = vunpack.c.l.b16 %v760
        %v1496 = vunpack.c.h.b16 %v760
        %v1497 = vunpack.c.l.b16 %v761
        %v1498 = vunpack.c.h.b16 %v761
        %v1499 = vunpack.c.l.b16 %v762
        %v1500 = vunpack.c.h.b16 %v762
        %v1501 = vunpack.c.l.b16 %v763
        %v1502 = vunpack.c.h.b16 %v763
        %v1503 = vunpack.c.l.b16 %v764
        %v1504 = vunpack.c.h.b16 %v764
        %v1505 = vunpack.c.l.b16 %v765
        %v1506 = vunpack.c.h.b16 %v765
        %v1507 = vunpack.c.l.b16 %v766
        %v1508 = vunpack.c.h.b16 %v766
        %v1509 = vunpack.c.l.b16 %v767
        %v1510 = vunpack.c.h.b16 %v767
        %v1511 = vunpack.c.l.b16 %v768
        %v1512 = vunpack.c.h.b16 %v768
        %v1513 = vunpack.c.l.b16 %v769
        %v1514 = vunpack.c.h.b16 %v769
        %v1515 = vunpack.c.l.b16 %v770
        %v1516 = vunpack.c.h.b16 %v770
        %v1517 = vunpack.c.l.b16 %v771
        %v1518 = vunpack.c.h.b16 %v771
        %v1519 = vunpack.c.l.b16 %v772
        %v1520 = vunpack.c.h.b16 %v772
        %v1521 = vunpack.c.l.b16 %v773
        %v1522 = vunpack.c.h.b16 %v773
        %v1523 = vunpack.c.l.b16 %v774
        %v1524 = vunpack.c.h.b16 %v774
        %v1525 = vunpack.c.l.b16 %v775
        %v1526 = vunpack.c.h.b16 %v775
        %v1527 = vunpack.c.l.b16 %v776
        %v1528 = vunpack.c.h.b16 %v776
        %v1529 = vunpack.c.l.b16 %v777
        %v1530 = vunpack.c.h.b16 %v777
        %v1531 = vunpack.c.l.b16 %v778
        %v1532 = vunpack.c.h.b16 %v778
        %v1533 = vunpack.c.l.b16 %v779
        %v1534 = vunpack.c.h.b16 %v779
        %v1535 = vunpack.c.l.b16 %v780
        %v1536 = vunpack.c.h.b16 %v780
        %v1537 = vunpack.c.l.b16 %v781
        %v1538 = vunpack.c.h.b16 %v781
        %v1539 = vunpack.c.l.b16 %v782
        %v1540 = vunpack.c.h.b16 %v782
        %v1541 = vunpack.c.l.b16 %v783
        %v1542 = vunpack.c.h.b16 %v783
        %v1543 = vunpack.c.l.b16 %v784
        %v1544 = vunpack.c.h.b16 %v784
        %v1545 = vunpack.c.l.b16 %v785
        %v1546 = vunpack.c.h.b16 %v785
        %v1547 = vunpack.c.l.b16 %v786
        %v1548 = vunpack.c.h.b16 %v786
        %v1549 = vunpack.c.l.b16 %v787
        %v1550 = vunpack.c.h.b16 %v787
        %v1551 = vunpack.c.l.b16 %v788
        %v1552 = vunpack.c.h.b16 %v788
        %v1553 = vunpack.c.l.b16 %v789
        %v1554 = vunpack.c.h.b16 %v789
        %v1555 = vunpack.c.l.b16 %v790
        %v1556 = vunpack.c.h.b16 %v790
        %v1557 = vunpack.c.l.b16 %v791
        %v1558 = vunpack.c.h.b16 %v791
        %v1559 = vunpack.c.l.b16 %v792
        %v1560 = vunpack.c.h.b16 %v792
        %v1561 = vunpack.c.l.b16 %v793
        %v1562 = vunpack.c.h.b16 %v793
        %v1563 = vunpack.c.l.b16 %v794
        %v1564 = vunpack.c.h.b16 %v794
        %v1565 = vunpack.c.l.b16 %v795
        %v1566 = vunpack.c.h.b16 %v795
        %v1567 = vunpack.c.l.b16 %v796
        %v1568 = vunpack.c.h.b16 %v796
        %v1569 = vunpack.c.l.b16 %v797
        %v1570 = vunpack.c.h.b16 %v797
        %v1571 = vunpack.c.l.b16 %v798
        %v1572 = vunpack.c.h.b16 %v798
        %v1573 = vunpack.c.l.b16 %v799
        %v1574 = vunpack.c.h.b16 %v799
        %v1575 = vunpack.c.l.b16 %v800
        %v1576 = vunpack.c.h.b16 %v800
        %v1577 = vunpack.c.l.b16 %v801
        %v1578 = vunpack.c.h.b16 %v801
        %v1579 = vunpack.c.l.b16 %v802
        %v1580 = vunpack.c.h.b16 %v802
        %v1581 = vpack.c.b16 %v1101, %v1069
        %v1582 = vpack.c.b16 %v1102, %v1070
        %v1583 = vpack.c.b16 %v1103, %v1071
        %v1584 = vpack.c.b16 %v1104, %v1072
        %v1585 = vpack.c.b16 %v1105, %v1073
        %v1586 = vpack.c.b16 %v1106, %v1074
        %v1587 = vpack.c.b16 %v1107, %v1075
        %v1588 = vpack.c.b16 %v1108, %v1076
        %v1589 = vpack.c.b16 %v1109, %v1077
        %v1590 = vpack.c.b16 %v1110, %v1078
        %v1591 = vpack.c.b16 %v1111, %v1079
        %v1592 = vpack.c.b16 %v1112, %v1080
        %v1593 = vpack.c.b16 %v1113, %v1081
        %v1594 = vpack.c.b16 %v1114, %v1082
        %v1595 = vpack.c.b16 %v1115, %v1083
        %v1596 = vpack.c.b16 %v1116, %v1084
        %v1597 = vpack.c.b16 %v1117, %v1085
        %v1598 = vpack.c.b16 %v1118, %v1086
        %v1599 = vpack.c.b16 %v1119, %v1087
        %v1600 = vpack.c.b16 %v1120, %v1088
        %v1601 = vpack.c.b16 %v1121, %v1089
        %v1602 = vpack.c.b16 %v1122, %v1090
        %v1603 = vpack.c.b16 %v1123, %v1091
        %v1604 = vpack.c.b16 %v1124, %v1092
        %v1605 = vpack.c.b16 %v1125, %v1093
        %v1606 = vpack.c.b16 %v1126, %v1094
        %v1607 = vpack.c.b16 %v1127, %v1095
        %v1608 = vpack.c.b16 %v1128, %v1096
        %v1609 = vpack.c.b16 %v1129, %v1097
        %v1610 = vpack.c.b16 %v1130, %v1098
        %v1611 = vpack.c.b16 %v1131, %v1099
        %v1612 = vpack.c.b16 %v1132, %v1100
        %v1613 = vpack.c.b16 %v1165, %v1133
        %v1614 = vpack.c.b16 %v1166, %v1134
        %v1615 = vpack.c.b16 %v1167, %v1135
        %v1616 = vpack.c.b16 %v1168, %v1136
        %v1617 = vpack.c.b16 %v1169, %v1137
        %v1618 = vpack.c.b16 %v1170, %v1138
        %v1619 = vpack.c.b16 %v1171, %v1139
        %v1620 = vpack.c.b16 %v1172, %v1140
        %v1621 = vpack.c.b16 %v1173, %v1141
        %v1622 = vpack.c.b16 %v1174, %v1142
        %v1623 = vpack.c.b16 %v1175, %v1143
        %v1624 = vpack.c.b16 %v1176, %v1144
        %v1625 = vpack.c.b16 %v1177, %v1145
        %v1626 = vpack.c.b16 %v1178, %v1146
        %v1627 = vpack.c.b16 %v1179, %v1147
        %v1628 = vpack.c.b16 %v1180, %v1148
        %v1629 = vpack.c.b16 %v1181, %v1149
        %v1630 = vpack.c.b16 %v1182, %v1150
        %v1631 = vpack.c.b16 %v1183, %v1151
        %v1632 = vpack.c.b16 %v1184, %v1152
        %v1633 = vpack.c.b16 %v1185, %v1153
        %v1634 = vpack.c.b16 %v1186, %v1154
        %v1635 = vpack.c.b16 %v1187, %v1155
        %v1636 = vpack.c.b16 %v1188, %v1156
        %v1637 = vpack.c.b16 %v1189, %v1157
        %v1638 = vpack.c.b16 %v1190, %v1158
        %v1639 = vpack.c.b16 %v1191, %v1159
        %v1640 = vpack.c.b16 %v1192, %v1160
        %v1641 = vpack.c.b16 %v1193, %v1161
        %v1642 = vpack.c.b16 %v1194, %v1162
        %v1643 = vpack.c.b16 %v1195, %v1163
        %v1644 = vpack.c.b16 %v1196, %v1164
        %v1645 = vpack.c.b16 %v1229, %v1197
        %v1646 = vpack.c.b16 %v1230, %v1198
        %v1647 = vpack.c.b16 %v1231, %v1199
        %v1648 = vpack.c.b16 %v1232, %v1200
        %v1649 = vpack.c.b16 %v1233, %v1201
        %v1650 = vpack.c.b16 %v1234, %v1202
        %v1651 = vpack.c.b16 %v1235, %v1203
        %v1652 = vpack.c.b16 %v1236, %v1204
        %v1653 = vpack.c.b16 %v1237, %v1205
        %v1654 = vpack.c.b16 %v1238, %v1206
        %v1655 = vpack.c.b16 %v1239, %v1207
        %v1656 = vpack.c.b16 %v1240, %v1208
        %v1657 = vpack.c.b16 %v1241, %v1209
        %v1658 = vpack.c.b16 %v1242, %v1210
        %v1659 = vpack.c.b16 %v1243, %v1211
        %v1660 = vpack.c.b16 %v1244, %v1212
        %v1661 = vpack.c.b16 %v1245, %v1213
        %v1662 = vpack.c.b16 %v1246, %v1214
        %v1663 = vpack.c.b16 %v1247, %v1215
        %v1664 = vpack.c.b16 %v1248, %v1216
        %v1665 = vpack.c.b16 %v1249, %v1217
        %v1666 = vpack.c.b16 %v1250, %v1218
        %v1667 = vpack.c.b16 %v1251, %v1219
        %v1668 = vpack.c.b16 %v1252, %v1220
        %v1669 = vpack.c.b16 %v1253, %v1221
        %v1670 = vpack.c.b16 %v1254, %v1222
        %v1671 = vpack.c.b16 %v1255, %v1223
        %v1672 = vpack.c.b16 %v1256, %v1224
        %v1673 = vpack.c.b16 %v1257, %v1225
        %v1674 = vpack.c.b16 %v1258, %v1226
        %v1675 = vpack.c.b16 %v1259, %v1227
        %v1676 = vpack.c.b16 %v1260, %v1228
        %v1677 = vpack.c.b16 %v1293, %v1261
        %v1678 = vpack.c.b16 %v1294, %v1262
        %v1679 = vpack.c.b16 %v1295, %v1263
        %v1680 = vpack.c.b16 %v1296, %v1264
        %v1681 = vpack.c.b16 %v1297, %v1265
        %v1682 = vpack.c.b16 %v1298, %v1266
        %v1683 = vpack.c.b16 %v1299, %v1267
        %v1684 = vpack.c.b16 %v1300, %v1268
        %v1685 = vpack.c.b16 %v1301, %v1269
        %v1686 = vpack.c.b16 %v1302, %v1270
        %v1687 = vpack.c.b16 %v1303, %v1271
        %v1688 = vpack.c.b16 %v1304, %v1272
        %v1689 = vpack.c.b16 %v1305, %v1273
        %v1690 = vpack.c.b16 %v1306, %v1274
        %v1691 = vpack.c.b16 %v1307, %v1275
        %v1692 = vpack.c.b16 %v1308, %v1276
        %v1693 = vpack.c.b16 %v1309, %v1277
        %v1694 = vpack.c.b16 %v1310, %v1278
        %v1695 = vpack.c.b16 %v1311, %v1279
        %v1696 = vpack.c.b16 %v1312, %v1280
        %v1697 = vpack.c.b16 %v1313, %v1281
        %v1698 = vpack.c.b16 %v1314, %v1282
        %v1699 = vpack.c.b16 %v1315, %v1283
        %v1700 = vpack.c.b16 %v1316, %v1284
        %v1701 = vpack.c.b16 %v1317, %v1285
        %v1702 = vpack.c.b16 %v1318, %v1286
        %v1703 = vpack.c.b16 %v1319, %v1287
        %v1704 = vpack.c.b16 %v1320, %v1288
        %v1705 = vpack.c.b16 %v1321, %v1289
        %v1706 = vpack.c.b16 %v1322, %v1290
        %v1707 = vpack.c.b16 %v1323, %v1291
        %v1708 = vpack.c.b16 %v1324, %v1292
        %v1709 = vpack.c.b16 %v1357, %v1325
        %v1710 = vpack.c.b16 %v1358, %v1326
        %v1711 = vpack.c.b16 %v1359, %v1327
        %v1712 = vpack.c.b16 %v1360, %v1328
        %v1713 = vpack.c.b16 %v1361, %v1329
        %v1714 = vpack.c.b16 %v1362, %v1330
        %v1715 = vpack.c.b16 %v1363, %v1331
        %v1716 = vpack.c.b16 %v1364, %v1332
        %v1717 = vpack.c.b16 %v1365, %v1333
        %v1718 = vpack.c.b16 %v1366, %v1334
        %v1719 = vpack.c.b16 %v1367, %v1335
        %v1720 = vpack.c.b16 %v1368, %v1336
        %v1721 = vpack.c.b16 %v1369, %v1337
        %v1722 = vpack.c.b16 %v1370, %v1338
        %v1723 = vpack.c.b16 %v1371, %v1339
        %v1724 = vpack.c.b16 %v1372, %v1340
        %v1725 = vpack.c.b16 %v1373, %v1341
        %v1726 = vpack.c.b16 %v1374, %v1342
        %v1727 = vpack.c.b16 %v1375, %v1343
        %v1728 = vpack.c.b16 %v1376, %v1344
        %v1729 = vpack.c.b16 %v1377, %v1345
        %v1730 = vpack.c.b16 %v1378, %v1346
        %v1731 = vpack.c.b16 %v1379, %v1347
        %v1732 = vpack.c.b16 %v1380, %v1348
        %v1733 = vpack.c.b16 %v1381, %v1349
        %v1734 = vpack.c.b16 %v1382, %v1350
        %v1735 = vpack.c.b16 %v1383, %v1351
        %v1736 = vpack.c.b16 %v1384, %v1352
        %v1737 = vpack.c.b16 %v1385, %v1353
        %v1738 = vpack.c.b16 %v1386, %v1354
        %v1739 = vpack.c.b16 %v1387, %v1355
        %v1740 = vpack.c.b16 %v1388, %v1356
        %v1741 = vpack.c.b16 %v1421, %v1389
        %v1742 = vpack.c.b16 %v1422, %v1390
        %v1743 = vpack.c.b16 %v1423, %v1391
        %v1744 = vpack.c.b16 %v1424, %v1392
        %v1745 = vpack.c.b16 %v1425, %v1393
        %v1746 = vpack.c.b16 %v1426, %v1394
        %v1747 = vpack.c.b16 %v1427, %v1395
        %v1748 = vpack.c.b16 %v1428, %v1396
        %v1749 = vpack.c.b16 %v1429, %v1397
        %v1750 = vpack.c.b16 %v1430, %v1398
        %v1751 = vpack.c.b16 %v1431, %v1399
        %v1752 = vpack.c.b16 %v1432, %v1400
        %v1753 = vpack.c.b16 %v1433, %v1401
        %v1754 = vpack.c.b16 %v1434, %v1402
        %v1755 = vpack.c.b16 %v1435, %v1403
        %v1756 = vpack.c.b16 %v1436, %v1404
        %v1757 = vpack.c.b16 %v1437, %v1405
        %v1758 = vpack.c.b16 %v1438, %v1406
        %v1759 = vpack.c.b16 %v1439, %v1407
        %v1760 = vpack.c.b16 %v1440, %v1408
        %v1761 = vpack.c.b16 %v1441, %v1409
        %v1762 = vpack.c.b16 %v1442, %v1410
        %v1763 = vpack.c.b16 %v1443, %v1411
        %v1764 = vpack.c.b16 %v1444, %v1412
        %v1765 = vpack.c.b16 %v1445, %v1413
        %v1766 = vpack.c.b16 %v1446, %v1414
        %v1767 = vpack.c.b16 %v1447, %v1415
        %v1768 = vpack.c.b16 %v1448, %v1416
        %v1769 = vpack.c.b16 %v1449, %v1417
        %v1770 = vpack.c.b16 %v1450, %v1418
        %v1771 = vpack.c.b16 %v1451, %v1419
        %v1772 = vpack.c.b16 %v1452, %v1420
        %v1773 = vpack.c.b16 %v1485, %v1453
        %v1774 = vpack.c.b16 %v1486, %v1454
        %v1775 = vpack.c.b16 %v1487, %v1455
        %v1776 = vpack.c.b16 %v1488, %v1456
        %v1777 = vpack.c.b16 %v1489, %v1457
        %v1778 = vpack.c.b16 %v1490, %v1458
        %v1779 = vpack.c.b16 %v1491, %v1459
        %v1780 = vpack.c.b16 %v1492, %v1460
        %v1781 = vpack.c.b16 %v1493, %v1461
        %v1782 = vpack.c.b16 %v1494, %v1462
        %v1783 = vpack.c.b16 %v1495, %v1463
        %v1784 = vpack.c.b16 %v1496, %v1464
        %v1785 = vpack.c.b16 %v1497, %v1465
        %v1786 = vpack.c.b16 %v1498, %v1466
        %v1787 = vpack.c.b16 %v1499, %v1467
        %v1788 = vpack.c.b16 %v1500, %v1468
        %v1789 = vpack.c.b16 %v1501, %v1469
        %v1790 = vpack.c.b16 %v1502, %v1470
        %v1791 = vpack.c.b16 %v1503, %v1471
        %v1792 = vpack.c.b16 %v1504, %v1472
        %v1793 = vpack.c.b16 %v1505, %v1473
        %v1794 = vpack.c.b16 %v1506, %v1474
        %v1795 = vpack.c.b16 %v1507, %v1475
        %v1796 = vpack.c.b16 %v1508, %v1476
        %v1797 = vpack.c.b16 %v1509, %v1477
        %v1798 = vpack.c.b16 %v1510, %v1478
        %v1799 = vpack.c.b16 %v1511, %v1479
        %v1800 = vpack.c.b16 %v1512, %v1480
        %v1801 = vpack.c.b16 %v1513, %v1481
        %v1802 = vpack.c.b16 %v1514, %v1482
        %v1803 = vpack.c.b16 %v1515, %v1483
        %v1804 = vpack.c.b16 %v1516, %v1484
        %v1805 = vpack.c.b16 %v1549, %v1517
        %v1806 = vpack.c.b16 %v1550, %v1518
        %v1807 = vpack.c.b16 %v1551, %v1519
        %v1808 = vpack.c.b16 %v1552, %v1520
        %v1809 = vpack.c.b16 %v1553, %v1521
        %v1810 = vpack.c.b16 %v1554, %v1522
        %v1811 = vpack.c.b16 %v1555, %v1523
        %v1812 = vpack.c.b16 %v1556, %v1524
        %v1813 = vpack.c.b16 %v1557, %v1525
        %v1814 = vpack.c.b16 %v1558, %v1526
        %v1815 = vpack.c.b16 %v1559, %v1527
        %v1816 = vpack.c.b16 %v1560, %v1528
        %v1817 = vpack.c.b16 %v1561, %v1529
        %v1818 = vpack.c.b16 %v1562, %v1530
        %v1819 = vpack.c.b16 %v1563, %v1531
        %v1820 = vpack.c.b16 %v1564, %v1532
        %v1821 = vpack.c.b16 %v1565, %v1533
        %v1822 = vpack.c.b16 %v1566, %v1534
        %v1823 = vpack.c.b16 %v1567, %v1535
        %v1824 = vpack.c.b16 %v1568, %v1536
        %v1825 = vpack.c.b16 %v1569, %v1537
        %v1826 = vpack.c.b16 %v1570, %v1538
        %v1827 = vpack.c.b16 %v1571, %v1539
        %v1828 = vpack.c.b16 %v1572, %v1540
        %v1829 = vpack.c.b16 %v1573, %v1541
        %v1830 = vpack.c.b16 %v1574, %v1542
        %v1831 = vpack.c.b16 %v1575, %v1543
        %v1832 = vpack.c.b16 %v1576, %v1544
        %v1833 = vpack.c.b16 %v1577, %v1545
        %v1834 = vpack.c.b16 %v1578, %v1546
        %v1835 = vpack.c.b16 %v1579, %v1547
        %v1836 = vpack.c.b16 %v1580, %v1548
        %2093 = vmatprep.subr.bf16.mxu0 %v1582
        %2094 = vmatpush1.bf16.msra.mxu0 %v1581
        %2095 = vmatprep.subr.bf16.mxu0 %v1614
        %2096 = vmatpush1.bf16.msra.mxu0 %v1613
        %2097 = vmatprep.subr.bf16.mxu0 %v1646
        %2098 = vmatpush1.bf16.msra.mxu0 %v1645
        %2099 = vmatprep.subr.bf16.mxu0 %v1678
        %2100 = vmatpush1.bf16.msra.mxu0 %v1677
        %2101 = vmatprep.subr.bf16.mxu0 %v1710
        %2102 = vmatpush1.bf16.msra.mxu0 %v1709
        %2103 = vmatprep.subr.bf16.mxu0 %v1742
        %2104 = vmatpush1.bf16.msra.mxu0 %v1741
        %2105 = vmatprep.subr.bf16.mxu0 %v1774
        %2106 = vmatpush1.bf16.msra.mxu0 %v1773
        %2107 = vmatprep.subr.bf16.mxu0 %v1806
        %2108 = vmatpush1.bf16.msra.mxu0 %v1805
        %2109 = vmatprep.subr.bf16.mxu0 0
        %2110 = vmatpush1.bf16.msra.mxu0 0
        %2111 = vmatprep.subr.bf16.mxu0 0
        %2112 = vmatpush1.bf16.msra.mxu0 0
        %2113 = vmatprep.subr.bf16.mxu0 0
        %2114 = vmatpush1.bf16.msra.mxu0 0
        %2115 = vmatprep.subr.bf16.mxu0 0
        %2116 = vmatpush1.bf16.msra.mxu0 0
        %2117 = vmatprep.subr.bf16.mxu0 0
        %2118 = vmatpush1.bf16.msra.mxu0 0
        %2119 = vmatprep.subr.bf16.mxu0 0
        %2120 = vmatpush1.bf16.msra.mxu0 0
        %2121 = vmatprep.subr.bf16.mxu0 0
        %2122 = vmatpush1.bf16.msra.mxu0 0
        %2123 = vmatprep.subr.bf16.mxu0 0
        %2124 = vmatpush1.bf16.msra.mxu0 0
        %2125 = vmatprep.mubr.bf16.mxu0 0
        %2126 = vmatmul.mubr.bf16.gmra.mrb[0].mxu0 %v809
        %v2127 = vpop.f32.mrb[0].mxu0
        %v2128 = vadd.f32 0.0, %v2127
        %v2129 = vpop.f32.mrb[0].mxu0
        %v2130 = vadd.f32 0.0, %v2129
        %v2131 = vpop.f32.mrb[0].mxu0
        %v2132 = vadd.f32 0.0, %v2131
        %v2133 = vpop.f32.mrb[0].mxu0
        %v2134 = vadd.f32 0.0, %v2133
        %2135 = vmatprep.mubr.bf16.mxu0 0
        %2136 = vmatmul.mubr.bf16.gmra.mrb[0].mxu0 %v810
        %v2137 = vpop.f32.mrb[0].mxu0
        %v2138 = vadd.f32 0.0, %v2137
        %v2139 = vpop.f32.mrb[0].mxu0
        %v2140 = vadd.f32 0.0, %v2139
        %v2141 = vpop.f32.mrb[0].mxu0
        %v2142 = vpop.f32.mrb[0].mxu0
        %2143 = vdwg.mxu0
        %2144 = vmatprep.subr.bf16.mxu0 %v1584
        %2145 = vmatpush1.bf16.msra.mxu0 %v1583
        %2146 = vmatprep.subr.bf16.mxu0 %v1616
        %2147 = vmatpush1.bf16.msra.mxu0 %v1615
        %2148 = vmatprep.subr.bf16.mxu0 %v1648
        %2149 = vmatpush1.bf16.msra.mxu0 %v1647
        %2150 = vmatprep.subr.bf16.mxu0 %v1680
        %2151 = vmatpush1.bf16.msra.mxu0 %v1679
        %2152 = vmatprep.subr.bf16.mxu0 %v1712
        %2153 = vmatpush1.bf16.msra.mxu0 %v1711
        %2154 = vmatprep.subr.bf16.mxu0 %v1744
        %2155 = vmatpush1.bf16.msra.mxu0 %v1743
        %2156 = vmatprep.subr.bf16.mxu0 %v1776
        %2157 = vmatpush1.bf16.msra.mxu0 %v1775
        %2158 = vmatprep.subr.bf16.mxu0 %v1808
        %2159 = vmatpush1.bf16.msra.mxu0 %v1807
        %2160 = vmatprep.subr.bf16.mxu0 0
        %2161 = vmatpush1.bf16.msra.mxu0 0
        %2162 = vmatprep.subr.bf16.mxu0 0
        %2163 = vmatpush1.bf16.msra.mxu0 0
        %2164 = vmatprep.subr.bf16.mxu0 0
        %2165 = vmatpush1.bf16.msra.mxu0 0
        %2166 = vmatprep.subr.bf16.mxu0 0
        %2167 = vmatpush1.bf16.msra.mxu0 0
        %2168 = vmatprep.subr.bf16.mxu0 0
        %2169 = vmatpush1.bf16.msra.mxu0 0
        %2170 = vmatprep.subr.bf16.mxu0 0
        %2171 = vmatpush1.bf16.msra.mxu0 0
        %2172 = vmatprep.subr.bf16.mxu0 0
        %2173 = vmatpush1.bf16.msra.mxu0 0
        %2174 = vmatprep.subr.bf16.mxu0 0
        %2175 = vmatpush1.bf16.msra.mxu0 0
        %2176 = vmatprep.mubr.bf16.mxu0 0
        %2177 = vmatmul.mubr.bf16.gmra.mrb[0].mxu0 %v809
        %v2178 = vpop.f32.mrb[0].mxu0
        %v2179 = vadd.f32 0.0, %v2178
        %v2180 = vpop.f32.mrb[0].mxu0
        %v2181 = vadd.f32 0.0, %v2180
        %v2182 = vpop.f32.mrb[0].mxu0
        %v2183 = vadd.f32 0.0, %v2182
        %v2184 = vpop.f32.mrb[0].mxu0
        %v2185 = vadd.f32 0.0, %v2184
        %2186 = vmatprep.mubr.bf16.mxu0 0
        %2187 = vmatmul.mubr.bf16.gmra.mrb[0].mxu0 %v810
        %v2188 = vpop.f32.mrb[0].mxu0
        %v2189 = vadd.f32 0.0, %v2188
        %v2190 = vpop.f32.mrb[0].mxu0
        %v2191 = vadd.f32 0.0, %v2190
        %v2192 = vpop.f32.mrb[0].mxu0
        %v2193 = vpop.f32.mrb[0].mxu0
        %2194 = vdwg.mxu0
        %2195 = vmatprep.subr.bf16.mxu0 %v1586
        %2196 = vmatpush1.bf16.msra.mxu0 %v1585
        %2197 = vmatprep.subr.bf16.mxu0 %v1618
        %2198 = vmatpush1.bf16.msra.mxu0 %v1617
        %2199 = vmatprep.subr.bf16.mxu0 %v1650
        %2200 = vmatpush1.bf16.msra.mxu0 %v1649
        %2201 = vmatprep.subr.bf16.mxu0 %v1682
        %2202 = vmatpush1.bf16.msra.mxu0 %v1681
        %2203 = vmatprep.subr.bf16.mxu0 %v1714
        %2204 = vmatpush1.bf16.msra.mxu0 %v1713
        %2205 = vmatprep.subr.bf16.mxu0 %v1746
        %2206 = vmatpush1.bf16.msra.mxu0 %v1745
        %2207 = vmatprep.subr.bf16.mxu0 %v1778
        %2208 = vmatpush1.bf16.msra.mxu0 %v1777
        %2209 = vmatprep.subr.bf16.mxu0 %v1810
        %2210 = vmatpush1.bf16.msra.mxu0 %v1809
        %2211 = vmatprep.subr.bf16.mxu0 0
        %2212 = vmatpush1.bf16.msra.mxu0 0
        %2213 = vmatprep.subr.bf16.mxu0 0
        %2214 = vmatpush1.bf16.msra.mxu0 0
        %2215 = vmatprep.subr.bf16.mxu0 0
        %2216 = vmatpush1.bf16.msra.mxu0 0
        %2217 = vmatprep.subr.bf16.mxu0 0
        %2218 = vmatpush1.bf16.msra.mxu0 0
        %2219 = vmatprep.subr.bf16.mxu0 0
        %2220 = vmatpush1.bf16.msra.mxu0 0
        %2221 = vmatprep.subr.bf16.mxu0 0
        %2222 = vmatpush1.bf16.msra.mxu0 0
        %2223 = vmatprep.subr.bf16.mxu0 0
        %2224 = vmatpush1.bf16.msra.mxu0 0
        %2225 = vmatprep.subr.bf16.mxu0 0
        %2226 = vmatpush1.bf16.msra.mxu0 0
        %2227 = vmatprep.mubr.bf16.mxu0 0
        %2228 = vmatmul.mubr.bf16.gmra.mrb[0].mxu0 %v809
        %v2229 = vpop.f32.mrb[0].mxu0
        %v2230 = vadd.f32 0.0, %v2229
        %v2231 = vpop.f32.mrb[0].mxu0
        %v2232 = vadd.f32 0.0, %v2231
        %v2233 = vpop.f32.mrb[0].mxu0
        %v2234 = vadd.f32 0.0, %v2233
        %v2235 = vpop.f32.mrb[0].mxu0
        %v2236 = vadd.f32 0.0, %v2235
        %2237 = vmatprep.mubr.bf16.mxu0 0
        %2238 = vmatmul.mubr.bf16.gmra.mrb[0].mxu0 %v810
        %v2239 = vpop.f32.mrb[0].mxu0
        %v2240 = vadd.f32 0.0, %v2239
        %v2241 = vpop.f32.mrb[0].mxu0
        %v2242 = vadd.f32 0.0, %v2241
        %v2243 = vpop.f32.mrb[0].mxu0
        %v2244 = vpop.f32.mrb[0].mxu0
        %2245 = vdwg.mxu0
        %2246 = vmatprep.subr.bf16.mxu0 %v1588
        %2247 = vmatpush1.bf16.msra.mxu0 %v1587
        %2248 = vmatprep.subr.bf16.mxu0 %v1620
        %2249 = vmatpush1.bf16.msra.mxu0 %v1619
        %2250 = vmatprep.subr.bf16.mxu0 %v1652
        %2251 = vmatpush1.bf16.msra.mxu0 %v1651
        %2252 = vmatprep.subr.bf16.mxu0 %v1684
        %2253 = vmatpush1.bf16.msra.mxu0 %v1683
        %2254 = vmatprep.subr.bf16.mxu0 %v1716
        %2255 = vmatpush1.bf16.msra.mxu0 %v1715
        %2256 = vmatprep.subr.bf16.mxu0 %v1748
        %2257 = vmatpush1.bf16.msra.mxu0 %v1747
        %2258 = vmatprep.subr.bf16.mxu0 %v1780
        %2259 = vmatpush1.bf16.msra.mxu0 %v1779
        %2260 = vmatprep.subr.bf16.mxu0 %v1812
        %2261 = vmatpush1.bf16.msra.mxu0 %v1811
        %2262 = vmatprep.subr.bf16.mxu0 0
        %2263 = vmatpush1.bf16.msra.mxu0 0
        %2264 = vmatprep.subr.bf16.mxu0 0
        %2265 = vmatpush1.bf16.msra.mxu0 0
        %2266 = vmatprep.subr.bf16.mxu0 0
        %2267 = vmatpush1.bf16.msra.mxu0 0
        %2268 = vmatprep.subr.bf16.mxu0 0
        %2269 = vmatpush1.bf16.msra.mxu0 0
        %2270 = vmatprep.subr.bf16.mxu0 0
        %2271 = vmatpush1.bf16.msra.mxu0 0
        %2272 = vmatprep.subr.bf16.mxu0 0
        %2273 = vmatpush1.bf16.msra.mxu0 0
        %2274 = vmatprep.subr.bf16.mxu0 0
        %2275 = vmatpush1.bf16.msra.mxu0 0
        %2276 = vmatprep.subr.bf16.mxu0 0
        %2277 = vmatpush1.bf16.msra.mxu0 0
        %2278 = vmatprep.mubr.bf16.mxu0 0
        %2279 = vmatmul.mubr.bf16.gmra.mrb[0].mxu0 %v809
        %v2280 = vpop.f32.mrb[0].mxu0
        %v2281 = vadd.f32 0.0, %v2280
        %v2282 = vpop.f32.mrb[0].mxu0
        %v2283 = vadd.f32 0.0, %v2282
        %v2284 = vpop.f32.mrb[0].mxu0
        %v2285 = vadd.f32 0.0, %v2284
        %v2286 = vpop.f32.mrb[0].mxu0
        %v2287 = vadd.f32 0.0, %v2286
        %2288 = vmatprep.mubr.bf16.mxu0 0
        %2289 = vmatmul.mubr.bf16.gmra.mrb[0].mxu0 %v810
        %v2290 = vpop.f32.mrb[0].mxu0
        %v2291 = vadd.f32 0.0, %v2290
        %v2292 = vpop.f32.mrb[0].mxu0
        %v2293 = vadd.f32 0.0, %v2292
        %v2294 = vpop.f32.mrb[0].mxu0
        %v2295 = vpop.f32.mrb[0].mxu0
        %2296 = vdwg.mxu0
        %2297 = vmatprep.subr.bf16.mxu0 %v1590
        %2298 = vmatpush1.bf16.msra.mxu0 %v1589
        %2299 = vmatprep.subr.bf16.mxu0 %v1622
        %2300 = vmatpush1.bf16.msra.mxu0 %v1621
        %2301 = vmatprep.subr.bf16.mxu0 %v1654
        %2302 = vmatpush1.bf16.msra.mxu0 %v1653
        %2303 = vmatprep.subr.bf16.mxu0 %v1686
        %2304 = vmatpush1.bf16.msra.mxu0 %v1685
        %2305 = vmatprep.subr.bf16.mxu0 %v1718
        %2306 = vmatpush1.bf16.msra.mxu0 %v1717
        %2307 = vmatprep.subr.bf16.mxu0 %v1750
        %2308 = vmatpush1.bf16.msra.mxu0 %v1749
        %2309 = vmatprep.subr.bf16.mxu0 %v1782
        %2310 = vmatpush1.bf16.msra.mxu0 %v1781
        %2311 = vmatprep.subr.bf16.mxu0 %v1814
        %2312 = vmatpush1.bf16.msra.mxu0 %v1813
        %2313 = vmatprep.subr.bf16.mxu0 0
        %2314 = vmatpush1.bf16.msra.mxu0 0
        %2315 = vmatprep.subr.bf16.mxu0 0
        %2316 = vmatpush1.bf16.msra.mxu0 0
        %2317 = vmatprep.subr.bf16.mxu0 0
        %2318 = vmatpush1.bf16.msra.mxu0 0
        %2319 = vmatprep.subr.bf16.mxu0 0
        %2320 = vmatpush1.bf16.msra.mxu0 0
        %2321 = vmatprep.subr.bf16.mxu0 0
        %2322 = vmatpush1.bf16.msra.mxu0 0
        %2323 = vmatprep.subr.bf16.mxu0 0
        %2324 = vmatpush1.bf16.msra.mxu0 0
        %2325 = vmatprep.subr.bf16.mxu0 0
        %2326 = vmatpush1.bf16.msra.mxu0 0
        %2327 = vmatprep.subr.bf16.mxu0 0
        %2328 = vmatpush1.bf16.msra.mxu0 0
        %2329 = vmatprep.mubr.bf16.mxu0 0
        %2330 = vmatmul.mubr.bf16.gmra.mrb[0].mxu0 %v809
        %v2331 = vpop.f32.mrb[0].mxu0
        %v2332 = vadd.f32 0.0, %v2331
        %v2333 = vpop.f32.mrb[0].mxu0
        %v2334 = vadd.f32 0.0, %v2333
        %v2335 = vpop.f32.mrb[0].mxu0
        %v2336 = vadd.f32 0.0, %v2335
        %v2337 = vpop.f32.mrb[0].mxu0
        %v2338 = vadd.f32 0.0, %v2337
        %2339 = vmatprep.mubr.bf16.mxu0 0
        %2340 = vmatmul.mubr.bf16.gmra.mrb[0].mxu0 %v810
        %v2341 = vpop.f32.mrb[0].mxu0
        %v2342 = vadd.f32 0.0, %v2341
        %v2343 = vpop.f32.mrb[0].mxu0
        %v2344 = vadd.f32 0.0, %v2343
        %v2345 = vpop.f32.mrb[0].mxu0
        %v2346 = vpop.f32.mrb[0].mxu0
        %2347 = vdwg.mxu0
        %2348 = vmatprep.subr.bf16.mxu0 %v1592
        %2349 = vmatpush1.bf16.msra.mxu0 %v1591
        %2350 = vmatprep.subr.bf16.mxu0 %v1624
        %2351 = vmatpush1.bf16.msra.mxu0 %v1623
        %2352 = vmatprep.subr.bf16.mxu0 %v1656
        %2353 = vmatpush1.bf16.msra.mxu0 %v1655
        %2354 = vmatprep.subr.bf16.mxu0 %v1688
        %2355 = vmatpush1.bf16.msra.mxu0 %v1687
        %2356 = vmatprep.subr.bf16.mxu0 %v1720
        %2357 = vmatpush1.bf16.msra.mxu0 %v1719
        %2358 = vmatprep.subr.bf16.mxu0 %v1752
        %2359 = vmatpush1.bf16.msra.mxu0 %v1751
        %2360 = vmatprep.subr.bf16.mxu0 %v1784
        %2361 = vmatpush1.bf16.msra.mxu0 %v1783
        %2362 = vmatprep.subr.bf16.mxu0 %v1816
        %2363 = vmatpush1.bf16.msra.mxu0 %v1815
        %2364 = vmatprep.subr.bf16.mxu0 0
        %2365 = vmatpush1.bf16.msra.mxu0 0
        %2366 = vmatprep.subr.bf16.mxu0 0
        %2367 = vmatpush1.bf16.msra.mxu0 0
        %2368 = vmatprep.subr.bf16.mxu0 0
        %2369 = vmatpush1.bf16.msra.mxu0 0
        %2370 = vmatprep.subr.bf16.mxu0 0
        %2371 = vmatpush1.bf16.msra.mxu0 0
        %2372 = vmatprep.subr.bf16.mxu0 0
        %2373 = vmatpush1.bf16.msra.mxu0 0
        %2374 = vmatprep.subr.bf16.mxu0 0
        %2375 = vmatpush1.bf16.msra.mxu0 0
        %2376 = vmatprep.subr.bf16.mxu0 0
        %2377 = vmatpush1.bf16.msra.mxu0 0
        %2378 = vmatprep.subr.bf16.mxu0 0
        %2379 = vmatpush1.bf16.msra.mxu0 0
        %2380 = vmatprep.mubr.bf16.mxu0 0
        %2381 = vmatmul.mubr.bf16.gmra.mrb[0].mxu0 %v809
        %v2382 = vpop.f32.mrb[0].mxu0
        %v2383 = vadd.f32 0.0, %v2382
        %v2384 = vpop.f32.mrb[0].mxu0
        %v2385 = vadd.f32 0.0, %v2384
        %v2386 = vpop.f32.mrb[0].mxu0
        %v2387 = vadd.f32 0.0, %v2386
        %v2388 = vpop.f32.mrb[0].mxu0
        %v2389 = vadd.f32 0.0, %v2388
        %2390 = vmatprep.mubr.bf16.mxu0 0
        %2391 = vmatmul.mubr.bf16.gmra.mrb[0].mxu0 %v810
        %v2392 = vpop.f32.mrb[0].mxu0
        %v2393 = vadd.f32 0.0, %v2392
        %v2394 = vpop.f32.mrb[0].mxu0
        %v2395 = vadd.f32 0.0, %v2394
        %v2396 = vpop.f32.mrb[0].mxu0
        %v2397 = vpop.f32.mrb[0].mxu0
        %2398 = vdwg.mxu0
        %2399 = vmatprep.subr.bf16.mxu0 %v1594
        %2400 = vmatpush1.bf16.msra.mxu0 %v1593
        %2401 = vmatprep.subr.bf16.mxu0 %v1626
        %2402 = vmatpush1.bf16.msra.mxu0 %v1625
        %2403 = vmatprep.subr.bf16.mxu0 %v1658
        %2404 = vmatpush1.bf16.msra.mxu0 %v1657
        %2405 = vmatprep.subr.bf16.mxu0 %v1690
        %2406 = vmatpush1.bf16.msra.mxu0 %v1689
        %2407 = vmatprep.subr.bf16.mxu0 %v1722
        %2408 = vmatpush1.bf16.msra.mxu0 %v1721
        %2409 = vmatprep.subr.bf16.mxu0 %v1754
        %2410 = vmatpush1.bf16.msra.mxu0 %v1753
        %2411 = vmatprep.subr.bf16.mxu0 %v1786
        %2412 = vmatpush1.bf16.msra.mxu0 %v1785
        %2413 = vmatprep.subr.bf16.mxu0 %v1818
        %2414 = vmatpush1.bf16.msra.mxu0 %v1817
        %2415 = vmatprep.subr.bf16.mxu0 0
        %2416 = vmatpush1.bf16.msra.mxu0 0
        %2417 = vmatprep.subr.bf16.mxu0 0
        %2418 = vmatpush1.bf16.msra.mxu0 0
        %2419 = vmatprep.subr.bf16.mxu0 0
        %2420 = vmatpush1.bf16.msra.mxu0 0
        %2421 = vmatprep.subr.bf16.mxu0 0
        %2422 = vmatpush1.bf16.msra.mxu0 0
        %2423 = vmatprep.subr.bf16.mxu0 0
        %2424 = vmatpush1.bf16.msra.mxu0 0
        %2425 = vmatprep.subr.bf16.mxu0 0
        %2426 = vmatpush1.bf16.msra.mxu0 0
        %2427 = vmatprep.subr.bf16.mxu0 0
        %2428 = vmatpush1.bf16.msra.mxu0 0
        %2429 = vmatprep.subr.bf16.mxu0 0
        %2430 = vmatpush1.bf16.msra.mxu0 0
        %2431 = vmatprep.mubr.bf16.mxu0 0
        %2432 = vmatmul.mubr.bf16.gmra.mrb[0].mxu0 %v809
        %v2433 = vpop.f32.mrb[0].mxu0
        %v2434 = vadd.f32 0.0, %v2433
        %v2435 = vpop.f32.mrb[0].mxu0
        %v2436 = vadd.f32 0.0, %v2435
        %v2437 = vpop.f32.mrb[0].mxu0
        %v2438 = vadd.f32 0.0, %v2437
        %v2439 = vpop.f32.mrb[0].mxu0
        %v2440 = vadd.f32 0.0, %v2439
        %2441 = vmatprep.mubr.bf16.mxu0 0
        %2442 = vmatmul.mubr.bf16.gmra.mrb[0].mxu0 %v810
        %v2443 = vpop.f32.mrb[0].mxu0
        %v2444 = vadd.f32 0.0, %v2443
        %v2445 = vpop.f32.mrb[0].mxu0
        %v2446 = vadd.f32 0.0, %v2445
        %v2447 = vpop.f32.mrb[0].mxu0
        %v2448 = vpop.f32.mrb[0].mxu0
        %2449 = vdwg.mxu0
        %2450 = vmatprep.subr.bf16.mxu0 %v1596
        %2451 = vmatpush1.bf16.msra.mxu0 %v1595
        %2452 = vmatprep.subr.bf16.mxu0 %v1628
        %2453 = vmatpush1.bf16.msra.mxu0 %v1627
        %2454 = vmatprep.subr.bf16.mxu0 %v1660
        %2455 = vmatpush1.bf16.msra.mxu0 %v1659
        %2456 = vmatprep.subr.bf16.mxu0 %v1692
        %2457 = vmatpush1.bf16.msra.mxu0 %v1691
        %2458 = vmatprep.subr.bf16.mxu0 %v1724
        %2459 = vmatpush1.bf16.msra.mxu0 %v1723
        %2460 = vmatprep.subr.bf16.mxu0 %v1756
        %2461 = vmatpush1.bf16.msra.mxu0 %v1755
        %2462 = vmatprep.subr.bf16.mxu0 %v1788
        %2463 = vmatpush1.bf16.msra.mxu0 %v1787
        %2464 = vmatprep.subr.bf16.mxu0 %v1820
        %2465 = vmatpush1.bf16.msra.mxu0 %v1819
        %2466 = vmatprep.subr.bf16.mxu0 0
        %2467 = vmatpush1.bf16.msra.mxu0 0
        %2468 = vmatprep.subr.bf16.mxu0 0
        %2469 = vmatpush1.bf16.msra.mxu0 0
        %2470 = vmatprep.subr.bf16.mxu0 0
        %2471 = vmatpush1.bf16.msra.mxu0 0
        %2472 = vmatprep.subr.bf16.mxu0 0
        %2473 = vmatpush1.bf16.msra.mxu0 0
        %2474 = vmatprep.subr.bf16.mxu0 0
        %2475 = vmatpush1.bf16.msra.mxu0 0
        %2476 = vmatprep.subr.bf16.mxu0 0
        %2477 = vmatpush1.bf16.msra.mxu0 0
        %2478 = vmatprep.subr.bf16.mxu0 0
        %2479 = vmatpush1.bf16.msra.mxu0 0
        %2480 = vmatprep.subr.bf16.mxu0 0
        %2481 = vmatpush1.bf16.msra.mxu0 0
        %2482 = vmatprep.mubr.bf16.mxu0 0
        %2483 = vmatmul.mubr.bf16.gmra.mrb[0].mxu0 %v809
        %v2484 = vpop.f32.mrb[0].mxu0
        %v2485 = vadd.f32 0.0, %v2484
        %v2486 = vpop.f32.mrb[0].mxu0
        %v2487 = vadd.f32 0.0, %v2486
        %v2488 = vpop.f32.mrb[0].mxu0
        %v2489 = vadd.f32 0.0, %v2488
        %v2490 = vpop.f32.mrb[0].mxu0
        %v2491 = vadd.f32 0.0, %v2490
        %2492 = vmatprep.mubr.bf16.mxu0 0
        %2493 = vmatmul.mubr.bf16.gmra.mrb[0].mxu0 %v810
        %v2494 = vpop.f32.mrb[0].mxu0
        %v2495 = vadd.f32 0.0, %v2494
        %v2496 = vpop.f32.mrb[0].mxu0
        %v2497 = vadd.f32 0.0, %v2496
        %v2498 = vpop.f32.mrb[0].mxu0
        %v2499 = vpop.f32.mrb[0].mxu0
        %2500 = vdwg.mxu0
        %2501 = vmatprep.subr.bf16.mxu0 %v1598
        %2502 = vmatpush1.bf16.msra.mxu0 %v1597
        %2503 = vmatprep.subr.bf16.mxu0 %v1630
        %2504 = vmatpush1.bf16.msra.mxu0 %v1629
        %2505 = vmatprep.subr.bf16.mxu0 %v1662
        %2506 = vmatpush1.bf16.msra.mxu0 %v1661
        %2507 = vmatprep.subr.bf16.mxu0 %v1694
        %2508 = vmatpush1.bf16.msra.mxu0 %v1693
        %2509 = vmatprep.subr.bf16.mxu0 %v1726
        %2510 = vmatpush1.bf16.msra.mxu0 %v1725
        %2511 = vmatprep.subr.bf16.mxu0 %v1758
        %2512 = vmatpush1.bf16.msra.mxu0 %v1757
        %2513 = vmatprep.subr.bf16.mxu0 %v1790
        %2514 = vmatpush1.bf16.msra.mxu0 %v1789
        %2515 = vmatprep.subr.bf16.mxu0 %v1822
        %2516 = vmatpush1.bf16.msra.mxu0 %v1821
        %2517 = vmatprep.subr.bf16.mxu0 0
        %2518 = vmatpush1.bf16.msra.mxu0 0
        %2519 = vmatprep.subr.bf16.mxu0 0
        %2520 = vmatpush1.bf16.msra.mxu0 0
        %2521 = vmatprep.subr.bf16.mxu0 0
        %2522 = vmatpush1.bf16.msra.mxu0 0
        %2523 = vmatprep.subr.bf16.mxu0 0
        %2524 = vmatpush1.bf16.msra.mxu0 0
        %2525 = vmatprep.subr.bf16.mxu0 0
        %2526 = vmatpush1.bf16.msra.mxu0 0
        %2527 = vmatprep.subr.bf16.mxu0 0
        %2528 = vmatpush1.bf16.msra.mxu0 0
        %2529 = vmatprep.subr.bf16.mxu0 0
        %2530 = vmatpush1.bf16.msra.mxu0 0
        %2531 = vmatprep.subr.bf16.mxu0 0
        %2532 = vmatpush1.bf16.msra.mxu0 0
        %2533 = vmatprep.mubr.bf16.mxu0 0
        %2534 = vmatmul.mubr.bf16.gmra.mrb[0].mxu0 %v809
        %v2535 = vpop.f32.mrb[0].mxu0
        %v2536 = vadd.f32 0.0, %v2535
        %v2537 = vpop.f32.mrb[0].mxu0
        %v2538 = vadd.f32 0.0, %v2537
        %v2539 = vpop.f32.mrb[0].mxu0
        %v2540 = vadd.f32 0.0, %v2539
        %v2541 = vpop.f32.mrb[0].mxu0
        %v2542 = vadd.f32 0.0, %v2541
        %2543 = vmatprep.mubr.bf16.mxu0 0
        %2544 = vmatmul.mubr.bf16.gmra.mrb[0].mxu0 %v810
        %v2545 = vpop.f32.mrb[0].mxu0
        %v2546 = vadd.f32 0.0, %v2545
        %v2547 = vpop.f32.mrb[0].mxu0
        %v2548 = vadd.f32 0.0, %v2547
        %v2549 = vpop.f32.mrb[0].mxu0
        %v2550 = vpop.f32.mrb[0].mxu0
        %2551 = vdwg.mxu0
        %2552 = vmatprep.subr.bf16.mxu0 %v1600
        %2553 = vmatpush1.bf16.msra.mxu0 %v1599
        %2554 = vmatprep.subr.bf16.mxu0 %v1632
        %2555 = vmatpush1.bf16.msra.mxu0 %v1631
        %2556 = vmatprep.subr.bf16.mxu0 %v1664
        %2557 = vmatpush1.bf16.msra.mxu0 %v1663
        %2558 = vmatprep.subr.bf16.mxu0 %v1696
        %2559 = vmatpush1.bf16.msra.mxu0 %v1695
        %2560 = vmatprep.subr.bf16.mxu0 %v1728
        %2561 = vmatpush1.bf16.msra.mxu0 %v1727
        %2562 = vmatprep.subr.bf16.mxu0 %v1760
        %2563 = vmatpush1.bf16.msra.mxu0 %v1759
        %2564 = vmatprep.subr.bf16.mxu0 %v1792
        %2565 = vmatpush1.bf16.msra.mxu0 %v1791
        %2566 = vmatprep.subr.bf16.mxu0 %v1824
        %2567 = vmatpush1.bf16.msra.mxu0 %v1823
        %2568 = vmatprep.subr.bf16.mxu0 0
        %2569 = vmatpush1.bf16.msra.mxu0 0
        %2570 = vmatprep.subr.bf16.mxu0 0
        %2571 = vmatpush1.bf16.msra.mxu0 0
        %2572 = vmatprep.subr.bf16.mxu0 0
        %2573 = vmatpush1.bf16.msra.mxu0 0
        %2574 = vmatprep.subr.bf16.mxu0 0
        %2575 = vmatpush1.bf16.msra.mxu0 0
        %2576 = vmatprep.subr.bf16.mxu0 0
        %2577 = vmatpush1.bf16.msra.mxu0 0
        %2578 = vmatprep.subr.bf16.mxu0 0
        %2579 = vmatpush1.bf16.msra.mxu0 0
        %2580 = vmatprep.subr.bf16.mxu0 0
        %2581 = vmatpush1.bf16.msra.mxu0 0
        %2582 = vmatprep.subr.bf16.mxu0 0
        %2583 = vmatpush1.bf16.msra.mxu0 0
        %2584 = vmatprep.mubr.bf16.mxu0 0
        %2585 = vmatmul.mubr.bf16.gmra.mrb[0].mxu0 %v809
        %v2586 = vpop.f32.mrb[0].mxu0
        %v2587 = vadd.f32 0.0, %v2586
        %v2588 = vpop.f32.mrb[0].mxu0
        %v2589 = vadd.f32 0.0, %v2588
        %v2590 = vpop.f32.mrb[0].mxu0
        %v2591 = vadd.f32 0.0, %v2590
        %v2592 = vpop.f32.mrb[0].mxu0
        %v2593 = vadd.f32 0.0, %v2592
        %2594 = vmatprep.mubr.bf16.mxu0 0
        %2595 = vmatmul.mubr.bf16.gmra.mrb[0].mxu0 %v810
        %v2596 = vpop.f32.mrb[0].mxu0
        %v2597 = vadd.f32 0.0, %v2596
        %v2598 = vpop.f32.mrb[0].mxu0
        %v2599 = vadd.f32 0.0, %v2598
        %v2600 = vpop.f32.mrb[0].mxu0
        %v2601 = vpop.f32.mrb[0].mxu0
        %2602 = vdwg.mxu0
        %2603 = vmatprep.subr.bf16.mxu0 %v1602
        %2604 = vmatpush1.bf16.msra.mxu0 %v1601
        %2605 = vmatprep.subr.bf16.mxu0 %v1634
        %2606 = vmatpush1.bf16.msra.mxu0 %v1633
        %2607 = vmatprep.subr.bf16.mxu0 %v1666
        %2608 = vmatpush1.bf16.msra.mxu0 %v1665
        %2609 = vmatprep.subr.bf16.mxu0 %v1698
        %2610 = vmatpush1.bf16.msra.mxu0 %v1697
        %2611 = vmatprep.subr.bf16.mxu0 %v1730
        %2612 = vmatpush1.bf16.msra.mxu0 %v1729
        %2613 = vmatprep.subr.bf16.mxu0 %v1762
        %2614 = vmatpush1.bf16.msra.mxu0 %v1761
        %2615 = vmatprep.subr.bf16.mxu0 %v1794
        %2616 = vmatpush1.bf16.msra.mxu0 %v1793
        %2617 = vmatprep.subr.bf16.mxu0 %v1826
        %2618 = vmatpush1.bf16.msra.mxu0 %v1825
        %2619 = vmatprep.subr.bf16.mxu0 0
        %2620 = vmatpush1.bf16.msra.mxu0 0
        %2621 = vmatprep.subr.bf16.mxu0 0
        %2622 = vmatpush1.bf16.msra.mxu0 0
        %2623 = vmatprep.subr.bf16.mxu0 0
        %2624 = vmatpush1.bf16.msra.mxu0 0
        %2625 = vmatprep.subr.bf16.mxu0 0
        %2626 = vmatpush1.bf16.msra.mxu0 0
        %2627 = vmatprep.subr.bf16.mxu0 0
        %2628 = vmatpush1.bf16.msra.mxu0 0
        %2629 = vmatprep.subr.bf16.mxu0 0
        %2630 = vmatpush1.bf16.msra.mxu0 0
        %2631 = vmatprep.subr.bf16.mxu0 0
        %2632 = vmatpush1.bf16.msra.mxu0 0
        %2633 = vmatprep.subr.bf16.mxu0 0
        %2634 = vmatpush1.bf16.msra.mxu0 0
        %2635 = vmatprep.mubr.bf16.mxu0 0
        %2636 = vmatmul.mubr.bf16.gmra.mrb[0].mxu0 %v809
        %v2637 = vpop.f32.mrb[0].mxu0
        %v2638 = vadd.f32 0.0, %v2637
        %v2639 = vpop.f32.mrb[0].mxu0
        %v2640 = vadd.f32 0.0, %v2639
        %v2641 = vpop.f32.mrb[0].mxu0
        %v2642 = vadd.f32 0.0, %v2641
        %v2643 = vpop.f32.mrb[0].mxu0
        %v2644 = vadd.f32 0.0, %v2643
        %2645 = vmatprep.mubr.bf16.mxu0 0
        %2646 = vmatmul.mubr.bf16.gmra.mrb[0].mxu0 %v810
        %v2647 = vpop.f32.mrb[0].mxu0
        %v2648 = vadd.f32 0.0, %v2647
        %v2649 = vpop.f32.mrb[0].mxu0
        %v2650 = vadd.f32 0.0, %v2649
        %v2651 = vpop.f32.mrb[0].mxu0
        %v2652 = vpop.f32.mrb[0].mxu0
        %2653 = vdwg.mxu0
        %2654 = vmatprep.subr.bf16.mxu0 %v1604
        %2655 = vmatpush1.bf16.msra.mxu0 %v1603
        %2656 = vmatprep.subr.bf16.mxu0 %v1636
        %2657 = vmatpush1.bf16.msra.mxu0 %v1635
        %2658 = vmatprep.subr.bf16.mxu0 %v1668
        %2659 = vmatpush1.bf16.msra.mxu0 %v1667
        %2660 = vmatprep.subr.bf16.mxu0 %v1700
        %2661 = vmatpush1.bf16.msra.mxu0 %v1699
        %2662 = vmatprep.subr.bf16.mxu0 %v1732
        %2663 = vmatpush1.bf16.msra.mxu0 %v1731
        %2664 = vmatprep.subr.bf16.mxu0 %v1764
        %2665 = vmatpush1.bf16.msra.mxu0 %v1763
        %2666 = vmatprep.subr.bf16.mxu0 %v1796
        %2667 = vmatpush1.bf16.msra.mxu0 %v1795
        %2668 = vmatprep.subr.bf16.mxu0 %v1828
        %2669 = vmatpush1.bf16.msra.mxu0 %v1827
        %2670 = vmatprep.subr.bf16.mxu0 0
        %2671 = vmatpush1.bf16.msra.mxu0 0
        %2672 = vmatprep.subr.bf16.mxu0 0
        %2673 = vmatpush1.bf16.msra.mxu0 0
        %2674 = vmatprep.subr.bf16.mxu0 0
        %2675 = vmatpush1.bf16.msra.mxu0 0
        %2676 = vmatprep.subr.bf16.mxu0 0
        %2677 = vmatpush1.bf16.msra.mxu0 0
        %2678 = vmatprep.subr.bf16.mxu0 0
        %2679 = vmatpush1.bf16.msra.mxu0 0
        %2680 = vmatprep.subr.bf16.mxu0 0
        %2681 = vmatpush1.bf16.msra.mxu0 0
        %2682 = vmatprep.subr.bf16.mxu0 0
        %2683 = vmatpush1.bf16.msra.mxu0 0
        %2684 = vmatprep.subr.bf16.mxu0 0
        %2685 = vmatpush1.bf16.msra.mxu0 0
        %2686 = vmatprep.mubr.bf16.mxu0 0
        %2687 = vmatmul.mubr.bf16.gmra.mrb[0].mxu0 %v809
        %v2688 = vpop.f32.mrb[0].mxu0
        %v2689 = vadd.f32 0.0, %v2688
        %v2690 = vpop.f32.mrb[0].mxu0
        %v2691 = vadd.f32 0.0, %v2690
        %v2692 = vpop.f32.mrb[0].mxu0
        %v2693 = vadd.f32 0.0, %v2692
        %v2694 = vpop.f32.mrb[0].mxu0
        %v2695 = vadd.f32 0.0, %v2694
        %2696 = vmatprep.mubr.bf16.mxu0 0
        %2697 = vmatmul.mubr.bf16.gmra.mrb[0].mxu0 %v810
        %v2698 = vpop.f32.mrb[0].mxu0
        %v2699 = vadd.f32 0.0, %v2698
        %v2700 = vpop.f32.mrb[0].mxu0
        %v2701 = vadd.f32 0.0, %v2700
        %v2702 = vpop.f32.mrb[0].mxu0
        %v2703 = vpop.f32.mrb[0].mxu0
        %2704 = vdwg.mxu0
        %2705 = vmatprep.subr.bf16.mxu0 %v1606
        %2706 = vmatpush1.bf16.msra.mxu0 %v1605
        %2707 = vmatprep.subr.bf16.mxu0 %v1638
        %2708 = vmatpush1.bf16.msra.mxu0 %v1637
        %2709 = vmatprep.subr.bf16.mxu0 %v1670
        %2710 = vmatpush1.bf16.msra.mxu0 %v1669
        %2711 = vmatprep.subr.bf16.mxu0 %v1702
        %2712 = vmatpush1.bf16.msra.mxu0 %v1701
        %2713 = vmatprep.subr.bf16.mxu0 %v1734
        %2714 = vmatpush1.bf16.msra.mxu0 %v1733
        %2715 = vmatprep.subr.bf16.mxu0 %v1766
        %2716 = vmatpush1.bf16.msra.mxu0 %v1765
        %2717 = vmatprep.subr.bf16.mxu0 %v1798
        %2718 = vmatpush1.bf16.msra.mxu0 %v1797
        %2719 = vmatprep.subr.bf16.mxu0 %v1830
        %2720 = vmatpush1.bf16.msra.mxu0 %v1829
        %2721 = vmatprep.subr.bf16.mxu0 0
        %2722 = vmatpush1.bf16.msra.mxu0 0
        %2723 = vmatprep.subr.bf16.mxu0 0
        %2724 = vmatpush1.bf16.msra.mxu0 0
        %2725 = vmatprep.subr.bf16.mxu0 0
        %2726 = vmatpush1.bf16.msra.mxu0 0
        %2727 = vmatprep.subr.bf16.mxu0 0
        %2728 = vmatpush1.bf16.msra.mxu0 0
        %2729 = vmatprep.subr.bf16.mxu0 0
        %2730 = vmatpush1.bf16.msra.mxu0 0
        %2731 = vmatprep.subr.bf16.mxu0 0
        %2732 = vmatpush1.bf16.msra.mxu0 0
        %2733 = vmatprep.subr.bf16.mxu0 0
        %2734 = vmatpush1.bf16.msra.mxu0 0
        %2735 = vmatprep.subr.bf16.mxu0 0
        %2736 = vmatpush1.bf16.msra.mxu0 0
        %2737 = vmatprep.mubr.bf16.mxu0 0
        %2738 = vmatmul.mubr.bf16.gmra.mrb[0].mxu0 %v809
        %v2739 = vpop.f32.mrb[0].mxu0
        %v2740 = vadd.f32 0.0, %v2739
        %v2741 = vpop.f32.mrb[0].mxu0
        %v2742 = vadd.f32 0.0, %v2741
        %v2743 = vpop.f32.mrb[0].mxu0
        %v2744 = vadd.f32 0.0, %v2743
        %v2745 = vpop.f32.mrb[0].mxu0
        %v2746 = vadd.f32 0.0, %v2745
        %2747 = vmatprep.mubr.bf16.mxu0 0
        %2748 = vmatmul.mubr.bf16.gmra.mrb[0].mxu0 %v810
        %v2749 = vpop.f32.mrb[0].mxu0
        %v2750 = vadd.f32 0.0, %v2749
        %v2751 = vpop.f32.mrb[0].mxu0
        %v2752 = vadd.f32 0.0, %v2751
        %v2753 = vpop.f32.mrb[0].mxu0
        %v2754 = vpop.f32.mrb[0].mxu0
        %2755 = vdwg.mxu0
        %2756 = vmatprep.subr.bf16.mxu0 %v1608
        %2757 = vmatpush1.bf16.msra.mxu0 %v1607
        %2758 = vmatprep.subr.bf16.mxu0 %v1640
        %2759 = vmatpush1.bf16.msra.mxu0 %v1639
        %2760 = vmatprep.subr.bf16.mxu0 %v1672
        %2761 = vmatpush1.bf16.msra.mxu0 %v1671
        %2762 = vmatprep.subr.bf16.mxu0 %v1704
        %2763 = vmatpush1.bf16.msra.mxu0 %v1703
        %2764 = vmatprep.subr.bf16.mxu0 %v1736
        %2765 = vmatpush1.bf16.msra.mxu0 %v1735
        %2766 = vmatprep.subr.bf16.mxu0 %v1768
        %2767 = vmatpush1.bf16.msra.mxu0 %v1767
        %2768 = vmatprep.subr.bf16.mxu0 %v1800
        %2769 = vmatpush1.bf16.msra.mxu0 %v1799
        %2770 = vmatprep.subr.bf16.mxu0 %v1832
        %2771 = vmatpush1.bf16.msra.mxu0 %v1831
        %2772 = vmatprep.subr.bf16.mxu0 0
        %2773 = vmatpush1.bf16.msra.mxu0 0
        %2774 = vmatprep.subr.bf16.mxu0 0
        %2775 = vmatpush1.bf16.msra.mxu0 0
        %2776 = vmatprep.subr.bf16.mxu0 0
        %2777 = vmatpush1.bf16.msra.mxu0 0
        %2778 = vmatprep.subr.bf16.mxu0 0
        %2779 = vmatpush1.bf16.msra.mxu0 0
        %2780 = vmatprep.subr.bf16.mxu0 0
        %2781 = vmatpush1.bf16.msra.mxu0 0
        %2782 = vmatprep.subr.bf16.mxu0 0
        %2783 = vmatpush1.bf16.msra.mxu0 0
        %2784 = vmatprep.subr.bf16.mxu0 0
        %2785 = vmatpush1.bf16.msra.mxu0 0
        %2786 = vmatprep.subr.bf16.mxu0 0
        %2787 = vmatpush1.bf16.msra.mxu0 0
        %2788 = vmatprep.mubr.bf16.mxu0 0
        %2789 = vmatmul.mubr.bf16.gmra.mrb[0].mxu0 %v809
        %v2790 = vpop.f32.mrb[0].mxu0
        %v2791 = vadd.f32 0.0, %v2790
        %v2792 = vpop.f32.mrb[0].mxu0
        %v2793 = vadd.f32 0.0, %v2792
        %v2794 = vpop.f32.mrb[0].mxu0
        %v2795 = vadd.f32 0.0, %v2794
        %v2796 = vpop.f32.mrb[0].mxu0
        %v2797 = vadd.f32 0.0, %v2796
        %2798 = vmatprep.mubr.bf16.mxu0 0
        %2799 = vmatmul.mubr.bf16.gmra.mrb[0].mxu0 %v810
        %v2800 = vpop.f32.mrb[0].mxu0
        %v2801 = vadd.f32 0.0, %v2800
        %v2802 = vpop.f32.mrb[0].mxu0
        %v2803 = vadd.f32 0.0, %v2802
        %v2804 = vpop.f32.mrb[0].mxu0
        %v2805 = vpop.f32.mrb[0].mxu0
        %2806 = vdwg.mxu0
        %2807 = vmatprep.subr.bf16.mxu0 %v1610
        %2808 = vmatpush1.bf16.msra.mxu0 %v1609
        %2809 = vmatprep.subr.bf16.mxu0 %v1642
        %2810 = vmatpush1.bf16.msra.mxu0 %v1641
        %2811 = vmatprep.subr.bf16.mxu0 %v1674
        %2812 = vmatpush1.bf16.msra.mxu0 %v1673
        %2813 = vmatprep.subr.bf16.mxu0 %v1706
        %2814 = vmatpush1.bf16.msra.mxu0 %v1705
        %2815 = vmatprep.subr.bf16.mxu0 %v1738
        %2816 = vmatpush1.bf16.msra.mxu0 %v1737
        %2817 = vmatprep.subr.bf16.mxu0 %v1770
        %2818 = vmatpush1.bf16.msra.mxu0 %v1769
        %2819 = vmatprep.subr.bf16.mxu0 %v1802
        %2820 = vmatpush1.bf16.msra.mxu0 %v1801
        %2821 = vmatprep.subr.bf16.mxu0 %v1834
        %2822 = vmatpush1.bf16.msra.mxu0 %v1833
        %2823 = vmatprep.subr.bf16.mxu0 0
        %2824 = vmatpush1.bf16.msra.mxu0 0
        %2825 = vmatprep.subr.bf16.mxu0 0
        %2826 = vmatpush1.bf16.msra.mxu0 0
        %2827 = vmatprep.subr.bf16.mxu0 0
        %2828 = vmatpush1.bf16.msra.mxu0 0
        %2829 = vmatprep.subr.bf16.mxu0 0
        %2830 = vmatpush1.bf16.msra.mxu0 0
        %2831 = vmatprep.subr.bf16.mxu0 0
        %2832 = vmatpush1.bf16.msra.mxu0 0
        %2833 = vmatprep.subr.bf16.mxu0 0
        %2834 = vmatpush1.bf16.msra.mxu0 0
        %2835 = vmatprep.subr.bf16.mxu0 0
        %2836 = vmatpush1.bf16.msra.mxu0 0
        %2837 = vmatprep.subr.bf16.mxu0 0
        %2838 = vmatpush1.bf16.msra.mxu0 0
        %2839 = vmatprep.mubr.bf16.mxu0 0
        %2840 = vmatmul.mubr.bf16.gmra.mrb[0].mxu0 %v809
        %v2841 = vpop.f32.mrb[0].mxu0
        %v2842 = vadd.f32 0.0, %v2841
        %v2843 = vpop.f32.mrb[0].mxu0
        %v2844 = vadd.f32 0.0, %v2843
        %v2845 = vpop.f32.mrb[0].mxu0
        %v2846 = vadd.f32 0.0, %v2845
        %v2847 = vpop.f32.mrb[0].mxu0
        %v2848 = vadd.f32 0.0, %v2847
        %2849 = vmatprep.mubr.bf16.mxu0 0
        %2850 = vmatmul.mubr.bf16.gmra.mrb[0].mxu0 %v810
        %v2851 = vpop.f32.mrb[0].mxu0
        %v2852 = vadd.f32 0.0, %v2851
        %v2853 = vpop.f32.mrb[0].mxu0
        %v2854 = vadd.f32 0.0, %v2853
        %v2855 = vpop.f32.mrb[0].mxu0
        %v2856 = vpop.f32.mrb[0].mxu0
        %2857 = vdwg.mxu0
        %2858 = vmatprep.subr.bf16.mxu0 %v1612
        %2859 = vmatpush1.bf16.msra.mxu0 %v1611
        %2860 = vmatprep.subr.bf16.mxu0 %v1644
        %2861 = vmatpush1.bf16.msra.mxu0 %v1643
        %2862 = vmatprep.subr.bf16.mxu0 %v1676
        %2863 = vmatpush1.bf16.msra.mxu0 %v1675
        %2864 = vmatprep.subr.bf16.mxu0 %v1708
        %2865 = vmatpush1.bf16.msra.mxu0 %v1707
        %2866 = vmatprep.subr.bf16.mxu0 %v1740
        %2867 = vmatpush1.bf16.msra.mxu0 %v1739
        %2868 = vmatprep.subr.bf16.mxu0 %v1772
        %2869 = vmatpush1.bf16.msra.mxu0 %v1771
        %2870 = vmatprep.subr.bf16.mxu0 %v1804
        %2871 = vmatpush1.bf16.msra.mxu0 %v1803
        %2872 = vmatprep.subr.bf16.mxu0 %v1836
        %2873 = vmatpush1.bf16.msra.mxu0 %v1835
        %2874 = vmatprep.subr.bf16.mxu0 0
        %2875 = vmatpush1.bf16.msra.mxu0 0
        %2876 = vmatprep.subr.bf16.mxu0 0
        %2877 = vmatpush1.bf16.msra.mxu0 0
        %2878 = vmatprep.subr.bf16.mxu0 0
        %2879 = vmatpush1.bf16.msra.mxu0 0
        %2880 = vmatprep.subr.bf16.mxu0 0
        %2881 = vmatpush1.bf16.msra.mxu0 0
        %2882 = vmatprep.subr.bf16.mxu0 0
        %2883 = vmatpush1.bf16.msra.mxu0 0
        %2884 = vmatprep.subr.bf16.mxu0 0
        %2885 = vmatpush1.bf16.msra.mxu0 0
        %2886 = vmatprep.subr.bf16.mxu0 0
        %2887 = vmatpush1.bf16.msra.mxu0 0
        %2888 = vmatprep.subr.bf16.mxu0 0
        %2889 = vmatpush1.bf16.msra.mxu0 0
        %2890 = vmatprep.mubr.bf16.mxu0 0
        %2891 = vmatmul.mubr.bf16.gmra.mrb[0].mxu0 %v809
        %v2892 = vpop.f32.mrb[0].mxu0
        %v2893 = vadd.f32 0.0, %v2892
        %v2894 = vpop.f32.mrb[0].mxu0
        %v2895 = vadd.f32 0.0, %v2894
        %v2896 = vpop.f32.mrb[0].mxu0
        %v2897 = vadd.f32 0.0, %v2896
        %v2898 = vpop.f32.mrb[0].mxu0
        %v2899 = vadd.f32 0.0, %v2898
        %2900 = vmatprep.mubr.bf16.mxu0 0
        %2901 = vmatmul.mubr.bf16.gmra.mrb[0].mxu0 %v810
        %v2902 = vpop.f32.mrb[0].mxu0
        %v2903 = vadd.f32 0.0, %v2902
        %v2904 = vpop.f32.mrb[0].mxu0
        %v2905 = vadd.f32 0.0, %v2904
        %v2906 = vpop.f32.mrb[0].mxu0
        %v2907 = vpop.f32.mrb[0].mxu0
        %2908 = vdwg.mxu0
        %v2909 = vadd.f32 %v451, %v2128
        %v2910 = vadd.f32 %v452, %v2130
        %v2911 = vadd.f32 %v453, %v2179
        %v2912 = vadd.f32 %v454, %v2181
        %v2913 = vadd.f32 %v455, %v2230
        %v2914 = vadd.f32 %v456, %v2232
        %v2915 = vadd.f32 %v457, %v2281
        %v2916 = vadd.f32 %v458, %v2283
        %v2917 = vadd.f32 %v459, %v2332
        %v2918 = vadd.f32 %v460, %v2334
        %v2919 = vadd.f32 %v461, %v2383
        %v2920 = vadd.f32 %v462, %v2385
        %v2921 = vadd.f32 %v463, %v2434
        %v2922 = vadd.f32 %v464, %v2436
        %v2923 = vadd.f32 %v465, %v2485
        %v2924 = vadd.f32 %v466, %v2487
        %v2925 = vadd.f32 %v467, %v2536
        %v2926 = vadd.f32 %v468, %v2538
        %v2927 = vadd.f32 %v469, %v2587
        %v2928 = vadd.f32 %v470, %v2589
        %v2929 = vadd.f32 %v471, %v2638
        %v2930 = vadd.f32 %v472, %v2640
        %v2931 = vadd.f32 %v473, %v2689
        %v2932 = vadd.f32 %v474, %v2691
        %v2933 = vadd.f32 %v475, %v2740
        %v2934 = vadd.f32 %v476, %v2742
        %v2935 = vadd.f32 %v477, %v2791
        %v2936 = vadd.f32 %v478, %v2793
        %v2937 = vadd.f32 %v479, %v2842
        %v2938 = vadd.f32 %v480, %v2844
        %v2939 = vadd.f32 %v481, %v2893
        %v2940 = vadd.f32 %v482, %v2895
        %v2941 = vadd.f32 %v483, %v2132
        %v2942 = vadd.f32 %v484, %v2134
        %v2943 = vadd.f32 %v485, %v2183
        %v2944 = vadd.f32 %v486, %v2185
        %v2945 = vadd.f32 %v487, %v2234
        %v2946 = vadd.f32 %v488, %v2236
        %v2947 = vadd.f32 %v489, %v2285
        %v2948 = vadd.f32 %v490, %v2287
        %v2949 = vadd.f32 %v491, %v2336
        %v2950 = vadd.f32 %v492, %v2338
        %v2951 = vadd.f32 %v493, %v2387
        %v2952 = vadd.f32 %v494, %v2389
        %v2953 = vadd.f32 %v495, %v2438
        %v2954 = vadd.f32 %v496, %v2440
        %v2955 = vadd.f32 %v497, %v2489
        %v2956 = vadd.f32 %v498, %v2491
        %v2957 = vadd.f32 %v499, %v2540
        %v2958 = vadd.f32 %v500, %v2542
        %v2959 = vadd.f32 %v501, %v2591
        %v2960 = vadd.f32 %v502, %v2593
        %v2961 = vadd.f32 %v503, %v2642
        %v2962 = vadd.f32 %v504, %v2644
        %v2963 = vadd.f32 %v505, %v2693
        %v2964 = vadd.f32 %v506, %v2695
        %v2965 = vadd.f32 %v507, %v2744
        %v2966 = vadd.f32 %v508, %v2746
        %v2967 = vadd.f32 %v509, %v2795
        %v2968 = vadd.f32 %v510, %v2797
        %v2969 = vadd.f32 %v511, %v2846
        %v2970 = vadd.f32 %v512, %v2848
        %v2971 = vadd.f32 %v513, %v2897
        %v2972 = vadd.f32 %v514, %v2899
        %v2973 = vadd.f32 %v515, %v2138
        %v2974 = vadd.f32 %v516, %v2140
        %v2975 = vadd.f32 %v517, %v2189
        %v2976 = vadd.f32 %v518, %v2191
        %v2977 = vadd.f32 %v519, %v2240
        %v2978 = vadd.f32 %v520, %v2242
        %v2979 = vadd.f32 %v521, %v2291
        %v2980 = vadd.f32 %v522, %v2293
        %v2981 = vadd.f32 %v523, %v2342
        %v2982 = vadd.f32 %v524, %v2344
        %v2983 = vadd.f32 %v525, %v2393
        %v2984 = vadd.f32 %v526, %v2395
        %v2985 = vadd.f32 %v527, %v2444
        %v2986 = vadd.f32 %v528, %v2446
        %v2987 = vadd.f32 %v529, %v2495
        %v2988 = vadd.f32 %v530, %v2497
        %v2989 = vadd.f32 %v531, %v2546
        %v2990 = vadd.f32 %v532, %v2548
        %v2991 = vadd.f32 %v533, %v2597
        %v2992 = vadd.f32 %v534, %v2599
        %v2993 = vadd.f32 %v535, %v2648
        %v2994 = vadd.f32 %v536, %v2650
        %v2995 = vadd.f32 %v537, %v2699
        %v2996 = vadd.f32 %v538, %v2701
        %v2997 = vadd.f32 %v539, %v2750
        %v2998 = vadd.f32 %v540, %v2752
        %v2999 = vadd.f32 %v541, %v2801
        %v3000 = vadd.f32 %v542, %v2803
        %v3001 = vadd.f32 %v543, %v2852
        %v3002 = vadd.f32 %v544, %v2854
        %v3003 = vadd.f32 %v545, %v2903
        %v3004 = vadd.f32 %v546, %v2905
        %3005 = vst [vmem:[#allocation2] sm:$0xff] %v2909
        %3006 = vst [vmem:[#allocation2 + $0x8] sm:$0xff] %v2910
        %3007 = vst [vmem:[#allocation2 + $0x10] sm:$0xff] %v2911
        %3008 = vst [vmem:[#allocation2 + $0x18] sm:$0xff] %v2912
        %3009 = vst [vmem:[#allocation2 + $0x20] sm:$0xff] %v2913
        %3010 = vst [vmem:[#allocation2 + $0x28] sm:$0xff] %v2914
        %3011 = vst [vmem:[#allocation2 + $0x30] sm:$0xff] %v2915
        %3012 = vst [vmem:[#allocation2 + $0x38] sm:$0xff] %v2916
        %3013 = vst [vmem:[#allocation2 + $0x40] sm:$0xff] %v2917
        %3014 = vst [vmem:[#allocation2 + $0x48] sm:$0xff] %v2918
        %3015 = vst [vmem:[#allocation2 + $0x50] sm:$0xff] %v2919
        %3016 = vst [vmem:[#allocation2 + $0x58] sm:$0xff] %v2920
        %3017 = vst [vmem:[#allocation2 + $0x60] sm:$0xff] %v2921
        %3018 = vst [vmem:[#allocation2 + $0x68] sm:$0xff] %v2922
        %3019 = vst [vmem:[#allocation2 + $0x70] sm:$0xff] %v2923
        %3020 = vst [vmem:[#allocation2 + $0x78] sm:$0xff] %v2924
        %3021 = vst [vmem:[#allocation2 + $0x80] sm:$0xff] %v2925
        %3022 = vst [vmem:[#allocation2 + $0x88] sm:$0xff] %v2926
        %3023 = vst [vmem:[#allocation2 + $0x90] sm:$0xff] %v2927
        %3024 = vst [vmem:[#allocation2 + $0x98] sm:$0xff] %v2928
        %3025 = vst [vmem:[#allocation2 + $0xa0] sm:$0xff] %v2929
        %3026 = vst [vmem:[#allocation2 + $0xa8] sm:$0xff] %v2930
        %3027 = vst [vmem:[#allocation2 + $0xb0] sm:$0xff] %v2931
        %3028 = vst [vmem:[#allocation2 + $0xb8] sm:$0xff] %v2932
        %3029 = vst [vmem:[#allocation2 + $0xc0] sm:$0xff] %v2933
        %3030 = vst [vmem:[#allocation2 + $0xc8] sm:$0xff] %v2934
        %3031 = vst [vmem:[#allocation2 + $0xd0] sm:$0xff] %v2935
        %3032 = vst [vmem:[#allocation2 + $0xd8] sm:$0xff] %v2936
        %3033 = vst [vmem:[#allocation2 + $0xe0] sm:$0xff] %v2937
        %3034 = vst [vmem:[#allocation2 + $0xe8] sm:$0xff] %v2938
        %3035 = vst [vmem:[#allocation2 + $0xf0] sm:$0xff] %v2939
        %3036 = vst [vmem:[#allocation2 + $0xf8] sm:$0xff] %v2940
        %3037 = vst [vmem:[#allocation2 + $0x100] sm:$0xff] %v2941
        %3038 = vst [vmem:[#allocation2 + $0x108] sm:$0xff] %v2942
        %3039 = vst [vmem:[#allocation2 + $0x110] sm:$0xff] %v2943
        %3040 = vst [vmem:[#allocation2 + $0x118] sm:$0xff] %v2944
        %3041 = vst [vmem:[#allocation2 + $0x120] sm:$0xff] %v2945
        %3042 = vst [vmem:[#allocation2 + $0x128] sm:$0xff] %v2946
        %3043 = vst [vmem:[#allocation2 + $0x130] sm:$0xff] %v2947
        %3044 = vst [vmem:[#allocation2 + $0x138] sm:$0xff] %v2948
        %3045 = vst [vmem:[#allocation2 + $0x140] sm:$0xff] %v2949
        %3046 = vst [vmem:[#allocation2 + $0x148] sm:$0xff] %v2950
        %3047 = vst [vmem:[#allocation2 + $0x150] sm:$0xff] %v2951
        %3048 = vst [vmem:[#allocation2 + $0x158] sm:$0xff] %v2952
        %3049 = vst [vmem:[#allocation2 + $0x160] sm:$0xff] %v2953
        %3050 = vst [vmem:[#allocation2 + $0x168] sm:$0xff] %v2954
        %3051 = vst [vmem:[#allocation2 + $0x170] sm:$0xff] %v2955
        %3052 = vst [vmem:[#allocation2 + $0x178] sm:$0xff] %v2956
        %3053 = vst [vmem:[#allocation2 + $0x180] sm:$0xff] %v2957
        %3054 = vst [vmem:[#allocation2 + $0x188] sm:$0xff] %v2958
        %3055 = vst [vmem:[#allocation2 + $0x190] sm:$0xff] %v2959
        %3056 = vst [vmem:[#allocation2 + $0x198] sm:$0xff] %v2960
        %3057 = vst [vmem:[#allocation2 + $0x1a0] sm:$0xff] %v2961
        %3058 = vst [vmem:[#allocation2 + $0x1a8] sm:$0xff] %v2962
        %3059 = vst [vmem:[#allocation2 + $0x1b0] sm:$0xff] %v2963
        %3060 = vst [vmem:[#allocation2 + $0x1b8] sm:$0xff] %v2964
        %3061 = vst [vmem:[#allocation2 + $0x1c0] sm:$0xff] %v2965
        %3062 = vst [vmem:[#allocation2 + $0x1c8] sm:$0xff] %v2966
        %3063 = vst [vmem:[#allocation2 + $0x1d0] sm:$0xff] %v2967
        %3064 = vst [vmem:[#allocation2 + $0x1d8] sm:$0xff] %v2968
        %3065 = vst [vmem:[#allocation2 + $0x1e0] sm:$0xff] %v2969
        %3066 = vst [vmem:[#allocation2 + $0x1e8] sm:$0xff] %v2970
        %3067 = vst [vmem:[#allocation2 + $0x1f0] sm:$0xff] %v2971
        %3068 = vst [vmem:[#allocation2 + $0x1f8] sm:$0xff] %v2972
        %3069 = vst [vmem:[#allocation2 + $0x200] sm:$0xff] %v2973
        %3070 = vst [vmem:[#allocation2 + $0x208] sm:$0xff] %v2974
        %3071 = vst [vmem:[#allocation2 + $0x210] sm:$0xff] %v2975
        %3072 = vst [vmem:[#allocation2 + $0x218] sm:$0xff] %v2976
        %3073 = vst [vmem:[#allocation2 + $0x220] sm:$0xff] %v2977
        %3074 = vst [vmem:[#allocation2 + $0x228] sm:$0xff] %v2978
        %3075 = vst [vmem:[#allocation2 + $0x230] sm:$0xff] %v2979
        %3076 = vst [vmem:[#allocation2 + $0x238] sm:$0xff] %v2980
        %3077 = vst [vmem:[#allocation2 + $0x240] sm:$0xff] %v2981
        %3078 = vst [vmem:[#allocation2 + $0x248] sm:$0xff] %v2982
        %3079 = vst [vmem:[#allocation2 + $0x250] sm:$0xff] %v2983
        %3080 = vst [vmem:[#allocation2 + $0x258] sm:$0xff] %v2984
        %3081 = vst [vmem:[#allocation2 + $0x260] sm:$0xff] %v2985
        %3082 = vst [vmem:[#allocation2 + $0x268] sm:$0xff] %v2986
        %3083 = vst [vmem:[#allocation2 + $0x270] sm:$0xff] %v2987
        %3084 = vst [vmem:[#allocation2 + $0x278] sm:$0xff] %v2988
        %3085 = vst [vmem:[#allocation2 + $0x280] sm:$0xff] %v2989
        %3086 = vst [vmem:[#allocation2 + $0x288] sm:$0xff] %v2990
        %3087 = vst [vmem:[#allocation2 + $0x290] sm:$0xff] %v2991
        %3088 = vst [vmem:[#allocation2 + $0x298] sm:$0xff] %v2992
        %3089 = vst [vmem:[#allocation2 + $0x2a0] sm:$0xff] %v2993
        %3090 = vst [vmem:[#allocation2 + $0x2a8] sm:$0xff] %v2994
        %3091 = vst [vmem:[#allocation2 + $0x2b0] sm:$0xff] %v2995
        %3092 = vst [vmem:[#allocation2 + $0x2b8] sm:$0xff] %v2996
        %3093 = vst [vmem:[#allocation2 + $0x2c0] sm:$0xff] %v2997
        %3094 = vst [vmem:[#allocation2 + $0x2c8] sm:$0xff] %v2998
        %3095 = vst [vmem:[#allocation2 + $0x2d0] sm:$0xff] %v2999
        %3096 = vst [vmem:[#allocation2 + $0x2d8] sm:$0xff] %v3000
        %3097 = vst [vmem:[#allocation2 + $0x2e0] sm:$0xff] %v3001
        %3098 = vst [vmem:[#allocation2 + $0x2e8] sm:$0xff] %v3002
        %3099 = vst [vmem:[#allocation2 + $0x2f0] sm:$0xff] %v3003
        %3100 = vst [vmem:[#allocation2 + $0x2f8] sm:$0xff] %v3004
        // Predicated region
        $region57: #{tpu_custom_call.1} parent=35 // pred_check
          %p3101 = pneg %p343
        $region58: #{tpu_custom_call.1} parent=35 // pred_check_branch
          %3103 = sbr.rel (%p3101) target = $region60
        $region59: #{tpu_custom_call.1} parent=35 // pred_region
          %v3104 = vld [vmem:[%s302] sm:$0xff]
          %v3105 = vld [vmem:[%s302 + $0x8] sm:$0xff]
          %v3106 = vld [vmem:[#allocation2] sm:$0xff]
          %v3107 = vld [vmem:[#allocation2 + $0x100] sm:$0xff]
          %v3108 = vld [vmem:[#allocation2 + $0x200] ss:$0 sm:$0xff]
          %v3109 = vmul.f32 %v3108, %v3104
          %v3110 = vmul.f32 %v3108, %v3105
          %v3111 = vsub.f32 %v3106, %v3109
          %v3112 = vsub.f32 %v3107, %v3110
          %v3113 = vld [vmem:[#allocation2 + $0x8] sm:$0xff]
          %v3114 = vld [vmem:[#allocation2 + $0x108] sm:$0xff]
          %v3115 = vld [vmem:[#allocation2 + $0x208] ss:$0 sm:$0xff]
          %v3116 = vmul.f32 %v3115, %v3104
          %v3117 = vmul.f32 %v3115, %v3105
          %v3118 = vsub.f32 %v3113, %v3116
          %v3119 = vsub.f32 %v3114, %v3117
          %v3120 = vld [vmem:[#allocation2 + $0x10] sm:$0xff]
          %v3121 = vld [vmem:[#allocation2 + $0x110] sm:$0xff]
          %v3122 = vld [vmem:[#allocation2 + $0x210] ss:$0 sm:$0xff]
          %v3123 = vmul.f32 %v3122, %v3104
          %v3124 = vmul.f32 %v3122, %v3105
          %v3125 = vsub.f32 %v3120, %v3123
          %v3126 = vsub.f32 %v3121, %v3124
          %v3127 = vld [vmem:[#allocation2 + $0x18] sm:$0xff]
          %v3128 = vld [vmem:[#allocation2 + $0x118] sm:$0xff]
          %v3129 = vld [vmem:[#allocation2 + $0x218] ss:$0 sm:$0xff]
          %v3130 = vmul.f32 %v3129, %v3104
          %v3131 = vmul.f32 %v3129, %v3105
          %v3132 = vsub.f32 %v3127, %v3130
          %v3133 = vsub.f32 %v3128, %v3131
          %v3134 = vld [vmem:[#allocation2 + $0x20] sm:$0xff]
          %v3135 = vld [vmem:[#allocation2 + $0x120] sm:$0xff]
          %v3136 = vld [vmem:[#allocation2 + $0x220] ss:$0 sm:$0xff]
          %v3137 = vmul.f32 %v3136, %v3104
          %v3138 = vmul.f32 %v3136, %v3105
          %v3139 = vsub.f32 %v3134, %v3137
          %v3140 = vsub.f32 %v3135, %v3138
          %v3141 = vld [vmem:[#allocation2 + $0x28] sm:$0xff]
          %v3142 = vld [vmem:[#allocation2 + $0x128] sm:$0xff]
          %v3143 = vld [vmem:[#allocation2 + $0x228] ss:$0 sm:$0xff]
          %v3144 = vmul.f32 %v3143, %v3104
          %v3145 = vmul.f32 %v3143, %v3105
          %v3146 = vsub.f32 %v3141, %v3144
          %v3147 = vsub.f32 %v3142, %v3145
          %v3148 = vld [vmem:[#allocation2 + $0x30] sm:$0xff]
          %v3149 = vld [vmem:[#allocation2 + $0x130] sm:$0xff]
          %v3150 = vld [vmem:[#allocation2 + $0x230] ss:$0 sm:$0xff]
          %v3151 = vmul.f32 %v3150, %v3104
          %v3152 = vmul.f32 %v3150, %v3105
          %v3153 = vsub.f32 %v3148, %v3151
          %v3154 = vsub.f32 %v3149, %v3152
          %v3155 = vld [vmem:[#allocation2 + $0x38] sm:$0xff]
          %v3156 = vld [vmem:[#allocation2 + $0x138] sm:$0xff]
          %v3157 = vld [vmem:[#allocation2 + $0x238] ss:$0 sm:$0xff]
          %v3158 = vmul.f32 %v3157, %v3104
          %v3159 = vmul.f32 %v3157, %v3105
          %v3160 = vsub.f32 %v3155, %v3158
          %v3161 = vsub.f32 %v3156, %v3159
          %v3162 = vld [vmem:[#allocation2 + $0x40] sm:$0xff]
          %v3163 = vld [vmem:[#allocation2 + $0x140] sm:$0xff]
          %v3164 = vld [vmem:[#allocation2 + $0x240] ss:$0 sm:$0xff]
          %v3165 = vmul.f32 %v3164, %v3104
          %v3166 = vmul.f32 %v3164, %v3105
          %v3167 = vsub.f32 %v3162, %v3165
          %v3168 = vsub.f32 %v3163, %v3166
          %v3169 = vld [vmem:[#allocation2 + $0x48] sm:$0xff]
          %v3170 = vld [vmem:[#allocation2 + $0x148] sm:$0xff]
          %v3171 = vld [vmem:[#allocation2 + $0x248] ss:$0 sm:$0xff]
          %v3172 = vmul.f32 %v3171, %v3104
          %v3173 = vmul.f32 %v3171, %v3105
          %v3174 = vsub.f32 %v3169, %v3172
          %v3175 = vsub.f32 %v3170, %v3173
          %v3176 = vld [vmem:[#allocation2 + $0x50] sm:$0xff]
          %v3177 = vld [vmem:[#allocation2 + $0x150] sm:$0xff]
          %v3178 = vld [vmem:[#allocation2 + $0x250] ss:$0 sm:$0xff]
          %v3179 = vmul.f32 %v3178, %v3104
          %v3180 = vmul.f32 %v3178, %v3105
          %v3181 = vsub.f32 %v3176, %v3179
          %v3182 = vsub.f32 %v3177, %v3180
          %v3183 = vld [vmem:[#allocation2 + $0x58] sm:$0xff]
          %v3184 = vld [vmem:[#allocation2 + $0x158] sm:$0xff]
          %v3185 = vld [vmem:[#allocation2 + $0x258] ss:$0 sm:$0xff]
          %v3186 = vmul.f32 %v3185, %v3104
          %v3187 = vmul.f32 %v3185, %v3105
          %v3188 = vsub.f32 %v3183, %v3186
          %v3189 = vsub.f32 %v3184, %v3187
          %v3190 = vld [vmem:[#allocation2 + $0x60] sm:$0xff]
          %v3191 = vld [vmem:[#allocation2 + $0x160] sm:$0xff]
          %v3192 = vld [vmem:[#allocation2 + $0x260] ss:$0 sm:$0xff]
          %v3193 = vmul.f32 %v3192, %v3104
          %v3194 = vmul.f32 %v3192, %v3105
          %v3195 = vsub.f32 %v3190, %v3193
          %v3196 = vsub.f32 %v3191, %v3194
          %v3197 = vld [vmem:[#allocation2 + $0x68] sm:$0xff]
          %v3198 = vld [vmem:[#allocation2 + $0x168] sm:$0xff]
          %v3199 = vld [vmem:[#allocation2 + $0x268] ss:$0 sm:$0xff]
          %v3200 = vmul.f32 %v3199, %v3104
          %v3201 = vmul.f32 %v3199, %v3105
          %v3202 = vsub.f32 %v3197, %v3200
          %v3203 = vsub.f32 %v3198, %v3201
          %v3204 = vld [vmem:[#allocation2 + $0x70] sm:$0xff]
          %v3205 = vld [vmem:[#allocation2 + $0x170] sm:$0xff]
          %v3206 = vld [vmem:[#allocation2 + $0x270] ss:$0 sm:$0xff]
          %v3207 = vmul.f32 %v3206, %v3104
          %v3208 = vmul.f32 %v3206, %v3105
          %v3209 = vsub.f32 %v3204, %v3207
          %v3210 = vsub.f32 %v3205, %v3208
          %v3211 = vld [vmem:[#allocation2 + $0x78] sm:$0xff]
          %v3212 = vld [vmem:[#allocation2 + $0x178] sm:$0xff]
          %v3213 = vld [vmem:[#allocation2 + $0x278] ss:$0 sm:$0xff]
          %v3214 = vmul.f32 %v3213, %v3104
          %v3215 = vmul.f32 %v3213, %v3105
          %v3216 = vsub.f32 %v3211, %v3214
          %v3217 = vsub.f32 %v3212, %v3215
          %v3218 = vld [vmem:[#allocation2 + $0x80] sm:$0xff]
          %v3219 = vld [vmem:[#allocation2 + $0x180] sm:$0xff]
          %v3220 = vld [vmem:[#allocation2 + $0x280] ss:$0 sm:$0xff]
          %v3221 = vmul.f32 %v3220, %v3104
          %v3222 = vmul.f32 %v3220, %v3105
          %v3223 = vsub.f32 %v3218, %v3221
          %v3224 = vsub.f32 %v3219, %v3222
          %v3225 = vld [vmem:[#allocation2 + $0x88] sm:$0xff]
          %v3226 = vld [vmem:[#allocation2 + $0x188] sm:$0xff]
          %v3227 = vld [vmem:[#allocation2 + $0x288] ss:$0 sm:$0xff]
          %v3228 = vmul.f32 %v3227, %v3104
          %v3229 = vmul.f32 %v3227, %v3105
          %v3230 = vsub.f32 %v3225, %v3228
          %v3231 = vsub.f32 %v3226, %v3229
          %v3232 = vld [vmem:[#allocation2 + $0x90] sm:$0xff]
          %v3233 = vld [vmem:[#allocation2 + $0x190] sm:$0xff]
          %v3234 = vld [vmem:[#allocation2 + $0x290] ss:$0 sm:$0xff]
          %v3235 = vmul.f32 %v3234, %v3104
          %v3236 = vmul.f32 %v3234, %v3105
          %v3237 = vsub.f32 %v3232, %v3235
          %v3238 = vsub.f32 %v3233, %v3236
          %v3239 = vld [vmem:[#allocation2 + $0x98] sm:$0xff]
          %v3240 = vld [vmem:[#allocation2 + $0x198] sm:$0xff]
          %v3241 = vld [vmem:[#allocation2 + $0x298] ss:$0 sm:$0xff]
          %v3242 = vmul.f32 %v3241, %v3104
          %v3243 = vmul.f32 %v3241, %v3105
          %v3244 = vsub.f32 %v3239, %v3242
          %v3245 = vsub.f32 %v3240, %v3243
          %v3246 = vld [vmem:[#allocation2 + $0xa0] sm:$0xff]
          %v3247 = vld [vmem:[#allocation2 + $0x1a0] sm:$0xff]
          %v3248 = vld [vmem:[#allocation2 + $0x2a0] ss:$0 sm:$0xff]
          %v3249 = vmul.f32 %v3248, %v3104
          %v3250 = vmul.f32 %v3248, %v3105
          %v3251 = vsub.f32 %v3246, %v3249
          %v3252 = vsub.f32 %v3247, %v3250
          %v3253 = vld [vmem:[#allocation2 + $0xa8] sm:$0xff]
          %v3254 = vld [vmem:[#allocation2 + $0x1a8] sm:$0xff]
          %v3255 = vld [vmem:[#allocation2 + $0x2a8] ss:$0 sm:$0xff]
          %v3256 = vmul.f32 %v3255, %v3104
          %v3257 = vmul.f32 %v3255, %v3105
          %v3258 = vsub.f32 %v3253, %v3256
          %v3259 = vsub.f32 %v3254, %v3257
          %v3260 = vld [vmem:[#allocation2 + $0xb0] sm:$0xff]
          %v3261 = vld [vmem:[#allocation2 + $0x1b0] sm:$0xff]
          %v3262 = vld [vmem:[#allocation2 + $0x2b0] ss:$0 sm:$0xff]
          %v3263 = vmul.f32 %v3262, %v3104
          %v3264 = vmul.f32 %v3262, %v3105
          %v3265 = vsub.f32 %v3260, %v3263
          %v3266 = vsub.f32 %v3261, %v3264
          %v3267 = vld [vmem:[#allocation2 + $0xb8] sm:$0xff]
          %v3268 = vld [vmem:[#allocation2 + $0x1b8] sm:$0xff]
          %v3269 = vld [vmem:[#allocation2 + $0x2b8] ss:$0 sm:$0xff]
          %v3270 = vmul.f32 %v3269, %v3104
          %v3271 = vmul.f32 %v3269, %v3105
          %v3272 = vsub.f32 %v3267, %v3270
          %v3273 = vsub.f32 %v3268, %v3271
          %v3274 = vld [vmem:[#allocation2 + $0xc0] sm:$0xff]
          %v3275 = vld [vmem:[#allocation2 + $0x1c0] sm:$0xff]
          %v3276 = vld [vmem:[#allocation2 + $0x2c0] ss:$0 sm:$0xff]
          %v3277 = vmul.f32 %v3276, %v3104
          %v3278 = vmul.f32 %v3276, %v3105
          %v3279 = vsub.f32 %v3274, %v3277
          %v3280 = vsub.f32 %v3275, %v3278
          %v3281 = vld [vmem:[#allocation2 + $0xc8] sm:$0xff]
          %v3282 = vld [vmem:[#allocation2 + $0x1c8] sm:$0xff]
          %v3283 = vld [vmem:[#allocation2 + $0x2c8] ss:$0 sm:$0xff]
          %v3284 = vmul.f32 %v3283, %v3104
          %v3285 = vmul.f32 %v3283, %v3105
          %v3286 = vsub.f32 %v3281, %v3284
          %v3287 = vsub.f32 %v3282, %v3285
          %v3288 = vld [vmem:[#allocation2 + $0xd0] sm:$0xff]
          %v3289 = vld [vmem:[#allocation2 + $0x1d0] sm:$0xff]
          %v3290 = vld [vmem:[#allocation2 + $0x2d0] ss:$0 sm:$0xff]
          %v3291 = vmul.f32 %v3290, %v3104
          %v3292 = vmul.f32 %v3290, %v3105
          %v3293 = vsub.f32 %v3288, %v3291
          %v3294 = vsub.f32 %v3289, %v3292
          %v3295 = vld [vmem:[#allocation2 + $0xd8] sm:$0xff]
          %v3296 = vld [vmem:[#allocation2 + $0x1d8] sm:$0xff]
          %v3297 = vld [vmem:[#allocation2 + $0x2d8] ss:$0 sm:$0xff]
          %v3298 = vmul.f32 %v3297, %v3104
          %v3299 = vmul.f32 %v3297, %v3105
          %v3300 = vsub.f32 %v3295, %v3298
          %v3301 = vsub.f32 %v3296, %v3299
          %v3302 = vld [vmem:[#allocation2 + $0xe0] sm:$0xff]
          %v3303 = vld [vmem:[#allocation2 + $0x1e0] sm:$0xff]
          %v3304 = vld [vmem:[#allocation2 + $0x2e0] ss:$0 sm:$0xff]
          %v3305 = vmul.f32 %v3304, %v3104
          %v3306 = vmul.f32 %v3304, %v3105
          %v3307 = vsub.f32 %v3302, %v3305
          %v3308 = vsub.f32 %v3303, %v3306
          %v3309 = vld [vmem:[#allocation2 + $0xe8] sm:$0xff]
          %v3310 = vld [vmem:[#allocation2 + $0x1e8] sm:$0xff]
          %v3311 = vld [vmem:[#allocation2 + $0x2e8] ss:$0 sm:$0xff]
          %v3312 = vmul.f32 %v3311, %v3104
          %v3313 = vmul.f32 %v3311, %v3105
          %v3314 = vsub.f32 %v3309, %v3312
          %v3315 = vsub.f32 %v3310, %v3313
          %v3316 = vld [vmem:[#allocation2 + $0xf0] sm:$0xff]
          %v3317 = vld [vmem:[#allocation2 + $0x1f0] sm:$0xff]
          %v3318 = vld [vmem:[#allocation2 + $0x2f0] ss:$0 sm:$0xff]
          %v3319 = vmul.f32 %v3318, %v3104
          %v3320 = vmul.f32 %v3318, %v3105
          %v3321 = vsub.f32 %v3316, %v3319
          %v3322 = vsub.f32 %v3317, %v3320
          %v3323 = vld [vmem:[#allocation2 + $0xf8] sm:$0xff]
          %v3324 = vld [vmem:[#allocation2 + $0x1f8] sm:$0xff]
          %v3325 = vld [vmem:[#allocation2 + $0x2f8] ss:$0 sm:$0xff]
          %v3326 = vmul.f32 %v3325, %v3104
          %v3327 = vmul.f32 %v3325, %v3105
          %v3328 = vsub.f32 %v3323, %v3326
          %v3329 = vsub.f32 %v3324, %v3327
          %v3330 = vpack.c.bf16 %v3112, %v3111
          %v3331 = vpack.c.bf16 %v3119, %v3118
          %v3332 = vpack.c.bf16 %v3126, %v3125
          %v3333 = vpack.c.bf16 %v3133, %v3132
          %v3334 = vpack.c.bf16 %v3140, %v3139
          %v3335 = vpack.c.bf16 %v3147, %v3146
          %v3336 = vpack.c.bf16 %v3154, %v3153
          %v3337 = vpack.c.bf16 %v3161, %v3160
          %v3338 = vpack.c.bf16 %v3168, %v3167
          %v3339 = vpack.c.bf16 %v3175, %v3174
          %v3340 = vpack.c.bf16 %v3182, %v3181
          %v3341 = vpack.c.bf16 %v3189, %v3188
          %v3342 = vpack.c.bf16 %v3196, %v3195
          %v3343 = vpack.c.bf16 %v3203, %v3202
          %v3344 = vpack.c.bf16 %v3210, %v3209
          %v3345 = vpack.c.bf16 %v3217, %v3216
          %v3346 = vpack.c.bf16 %v3224, %v3223
          %v3347 = vpack.c.bf16 %v3231, %v3230
          %v3348 = vpack.c.bf16 %v3238, %v3237
          %v3349 = vpack.c.bf16 %v3245, %v3244
          %v3350 = vpack.c.bf16 %v3252, %v3251
          %v3351 = vpack.c.bf16 %v3259, %v3258
          %v3352 = vpack.c.bf16 %v3266, %v3265
          %v3353 = vpack.c.bf16 %v3273, %v3272
          %v3354 = vpack.c.bf16 %v3280, %v3279
          %v3355 = vpack.c.bf16 %v3287, %v3286
          %v3356 = vpack.c.bf16 %v3294, %v3293
          %v3357 = vpack.c.bf16 %v3301, %v3300
          %v3358 = vpack.c.bf16 %v3308, %v3307
          %v3359 = vpack.c.bf16 %v3315, %v3314
          %v3360 = vpack.c.bf16 %v3322, %v3321
          %v3361 = vpack.c.bf16 %v3329, %v3328
          %v3362 = vld [vmem:[#allocation9] sm:$0xff]
          %v3363 = vld [vmem:[#allocation9 + $0x8] sm:$0xff]
          %v3364 = vld [vmem:[#allocation9 + $0x10] sm:$0xff]
          %v3365 = vld [vmem:[#allocation9 + $0x18] sm:$0xff]
          %v3366 = vld [vmem:[#allocation9 + $0x20] sm:$0xff]
          %v3367 = vld [vmem:[#allocation9 + $0x28] sm:$0xff]
          %v3368 = vld [vmem:[#allocation9 + $0x30] sm:$0xff]
          %v3369 = vld [vmem:[#allocation9 + $0x38] sm:$0xff]
          %v3370 = vld [vmem:[#allocation9 + $0x40] sm:$0xff]
          %v3371 = vld [vmem:[#allocation9 + $0x48] sm:$0xff]
          %v3372 = vld [vmem:[#allocation9 + $0x50] sm:$0xff]
          %v3373 = vld [vmem:[#allocation9 + $0x58] sm:$0xff]
          %v3374 = vld [vmem:[#allocation9 + $0x60] sm:$0xff]
          %v3375 = vld [vmem:[#allocation9 + $0x68] sm:$0xff]
          %v3376 = vld [vmem:[#allocation9 + $0x70] sm:$0xff]
          %v3377 = vld [vmem:[#allocation9 + $0x78] sm:$0xff]
          %v3378 = vld [vmem:[#allocation9 + $0x80] sm:$0xff]
          %v3379 = vld [vmem:[#allocation9 + $0x88] sm:$0xff]
          %v3380 = vld [vmem:[#allocation9 + $0x90] sm:$0xff]
          %v3381 = vld [vmem:[#allocation9 + $0x98] sm:$0xff]
          %v3382 = vld [vmem:[#allocation9 + $0xa0] sm:$0xff]
          %v3383 = vld [vmem:[#allocation9 + $0xa8] sm:$0xff]
          %v3384 = vld [vmem:[#allocation9 + $0xb0] sm:$0xff]
          %v3385 = vld [vmem:[#allocation9 + $0xb8] sm:$0xff]
          %v3386 = vld [vmem:[#allocation9 + $0xc0] sm:$0xff]
          %v3387 = vld [vmem:[#allocation9 + $0xc8] sm:$0xff]
          %v3388 = vld [vmem:[#allocation9 + $0xd0] sm:$0xff]
          %v3389 = vld [vmem:[#allocation9 + $0xd8] sm:$0xff]
          %v3390 = vld [vmem:[#allocation9 + $0xe0] sm:$0xff]
          %v3391 = vld [vmem:[#allocation9 + $0xe8] sm:$0xff]
          %v3392 = vld [vmem:[#allocation9 + $0xf0] sm:$0xff]
          %v3393 = vld [vmem:[#allocation9 + $0xf8] sm:$0xff]
          %v3426 = vunpack.c.l.b16 %v3362
          %v3427 = vunpack.c.h.b16 %v3362
          %v3428 = vunpack.c.l.b16 %v3363
          %v3429 = vunpack.c.h.b16 %v3363
          %v3430 = vunpack.c.l.b16 %v3364
          %v3431 = vunpack.c.h.b16 %v3364
          %v3432 = vunpack.c.l.b16 %v3365
          %v3433 = vunpack.c.h.b16 %v3365
          %v3434 = vunpack.c.l.b16 %v3366
          %v3435 = vunpack.c.h.b16 %v3366
          %v3436 = vunpack.c.l.b16 %v3367
          %v3437 = vunpack.c.h.b16 %v3367
          %v3438 = vunpack.c.l.b16 %v3368
          %v3439 = vunpack.c.h.b16 %v3368
          %v3440 = vunpack.c.l.b16 %v3369
          %v3441 = vunpack.c.h.b16 %v3369
          %v3442 = vunpack.c.l.b16 %v3370
          %v3443 = vunpack.c.h.b16 %v3370
          %v3444 = vunpack.c.l.b16 %v3371
          %v3445 = vunpack.c.h.b16 %v3371
          %v3446 = vunpack.c.l.b16 %v3372
          %v3447 = vunpack.c.h.b16 %v3372
          %v3448 = vunpack.c.l.b16 %v3373
          %v3449 = vunpack.c.h.b16 %v3373
          %v3450 = vunpack.c.l.b16 %v3374
          %v3451 = vunpack.c.h.b16 %v3374
          %v3452 = vunpack.c.l.b16 %v3375
          %v3453 = vunpack.c.h.b16 %v3375
          %v3454 = vunpack.c.l.b16 %v3376
          %v3455 = vunpack.c.h.b16 %v3376
          %v3456 = vunpack.c.l.b16 %v3377
          %v3457 = vunpack.c.h.b16 %v3377
          %v3458 = vunpack.c.l.b16 %v3378
          %v3459 = vunpack.c.h.b16 %v3378
          %v3460 = vunpack.c.l.b16 %v3379
          %v3461 = vunpack.c.h.b16 %v3379
          %v3462 = vunpack.c.l.b16 %v3380
          %v3463 = vunpack.c.h.b16 %v3380
          %v3464 = vunpack.c.l.b16 %v3381
          %v3465 = vunpack.c.h.b16 %v3381
          %v3466 = vunpack.c.l.b16 %v3382
          %v3467 = vunpack.c.h.b16 %v3382
          %v3468 = vunpack.c.l.b16 %v3383
          %v3469 = vunpack.c.h.b16 %v3383
          %v3470 = vunpack.c.l.b16 %v3384
          %v3471 = vunpack.c.h.b16 %v3384
          %v3472 = vunpack.c.l.b16 %v3385
          %v3473 = vunpack.c.h.b16 %v3385
          %v3474 = vunpack.c.l.b16 %v3386
          %v3475 = vunpack.c.h.b16 %v3386
          %v3476 = vunpack.c.l.b16 %v3387
          %v3477 = vunpack.c.h.b16 %v3387
          %v3478 = vunpack.c.l.b16 %v3388
          %v3479 = vunpack.c.h.b16 %v3388
          %v3480 = vunpack.c.l.b16 %v3389
          %v3481 = vunpack.c.h.b16 %v3389
          %v3482 = vunpack.c.l.b16 %v3390
          %v3483 = vunpack.c.h.b16 %v3390
          %v3484 = vunpack.c.l.b16 %v3391
          %v3485 = vunpack.c.h.b16 %v3391
          %v3486 = vunpack.c.l.b16 %v3392
          %v3487 = vunpack.c.h.b16 %v3392
          %v3488 = vunpack.c.l.b16 %v3393
          %v3489 = vunpack.c.h.b16 %v3393
          %v3490 = vpack.c.b16 %v3430, %v3426
          %v3491 = vpack.c.b16 %v3431, %v3427
          %v3492 = vpack.c.b16 %v3432, %v3428
          %v3493 = vpack.c.b16 %v3433, %v3429
          %v3494 = vpack.c.b16 %v3438, %v3434
          %v3495 = vpack.c.b16 %v3439, %v3435
          %v3496 = vpack.c.b16 %v3440, %v3436
          %v3497 = vpack.c.b16 %v3441, %v3437
          %v3498 = vpack.c.b16 %v3446, %v3442
          %v3499 = vpack.c.b16 %v3447, %v3443
          %v3500 = vpack.c.b16 %v3448, %v3444
          %v3501 = vpack.c.b16 %v3449, %v3445
          %v3502 = vpack.c.b16 %v3454, %v3450
          %v3503 = vpack.c.b16 %v3455, %v3451
          %v3504 = vpack.c.b16 %v3456, %v3452
          %v3505 = vpack.c.b16 %v3457, %v3453
          %v3506 = vpack.c.b16 %v3462, %v3458
          %v3507 = vpack.c.b16 %v3463, %v3459
          %v3508 = vpack.c.b16 %v3464, %v3460
          %v3509 = vpack.c.b16 %v3465, %v3461
          %v3510 = vpack.c.b16 %v3470, %v3466
          %v3511 = vpack.c.b16 %v3471, %v3467
          %v3512 = vpack.c.b16 %v3472, %v3468
          %v3513 = vpack.c.b16 %v3473, %v3469
          %v3514 = vpack.c.b16 %v3478, %v3474
          %v3515 = vpack.c.b16 %v3479, %v3475
          %v3516 = vpack.c.b16 %v3480, %v3476
          %v3517 = vpack.c.b16 %v3481, %v3477
          %v3518 = vpack.c.b16 %v3486, %v3482
          %v3519 = vpack.c.b16 %v3487, %v3483
          %v3520 = vpack.c.b16 %v3488, %v3484
          %v3521 = vpack.c.b16 %v3489, %v3485
          %3554 = vmatprep.subr.bf16.mxu0 0
          %3555 = vmatpush1.bf16.msra.mxu0 %v3330
          %3556 = vmatprep.subr.bf16.mxu0 0
          %3557 = vmatpush1.bf16.msra.mxu0 %v3331
          %3558 = vmatprep.subr.bf16.mxu0 0
          %3559 = vmatpush1.bf16.msra.mxu0 %v3332
          %3560 = vmatprep.subr.bf16.mxu0 0
          %3561 = vmatpush1.bf16.msra.mxu0 %v3333
          %3562 = vmatprep.subr.bf16.mxu0 0
          %3563 = vmatpush1.bf16.msra.mxu0 %v3334
          %3564 = vmatprep.subr.bf16.mxu0 0
          %3565 = vmatpush1.bf16.msra.mxu0 %v3335
          %3566 = vmatprep.subr.bf16.mxu0 0
          %3567 = vmatpush1.bf16.msra.mxu0 %v3336
          %3568 = vmatprep.subr.bf16.mxu0 0
          %3569 = vmatpush1.bf16.msra.mxu0 %v3337
          %3570 = vmatprep.subr.bf16.mxu0 0
          %3571 = vmatpush1.bf16.msra.mxu0 %v3338
          %3572 = vmatprep.subr.bf16.mxu0 0
          %3573 = vmatpush1.bf16.msra.mxu0 %v3339
          %3574 = vmatprep.subr.bf16.mxu0 0
          %3575 = vmatpush1.bf16.msra.mxu0 %v3340
          %3576 = vmatprep.subr.bf16.mxu0 0
          %3577 = vmatpush1.bf16.msra.mxu0 %v3341
          %3578 = vmatprep.subr.bf16.mxu0 0
          %3579 = vmatpush1.bf16.msra.mxu0 %v3342
          %3580 = vmatprep.subr.bf16.mxu0 0
          %3581 = vmatpush1.bf16.msra.mxu0 %v3343
          %3582 = vmatprep.subr.bf16.mxu0 0
          %3583 = vmatpush1.bf16.msra.mxu0 %v3344
          %3584 = vmatprep.subr.bf16.mxu0 0
          %3585 = vmatpush1.bf16.msra.mxu0 %v3345
          %3586 = vmatprep.mubr.bf16.mxu0 %v3491
          %3587 = vmatmul.mubr.bf16.gmra.mrb[0].mxu0 %v3490
          %v3588 = vpop.f32.mrb[0].mxu0
          %v3589 = vadd.f32 0.0, %v3588
          %v3590 = vpop.f32.mrb[0].mxu0
          %v3591 = vpop.f32.mrb[0].mxu0
          %v3592 = vadd.f32 0.0, %v3591
          %v3593 = vpop.f32.mrb[0].mxu0
          %3594 = vmatprep.mubr.bf16.mxu0 %v3495
          %3595 = vmatmul.mubr.bf16.gmra.mrb[0].mxu0 %v3494
          %v3596 = vpop.f32.mrb[0].mxu0
          %v3597 = vadd.f32 0.0, %v3596
          %v3598 = vpop.f32.mrb[0].mxu0
          %v3599 = vpop.f32.mrb[0].mxu0
          %v3600 = vadd.f32 0.0, %v3599
          %v3601 = vpop.f32.mrb[0].mxu0
          %3602 = vmatprep.mubr.bf16.mxu0 %v3499
          %3603 = vmatmul.mubr.bf16.gmra.mrb[0].mxu0 %v3498
          %v3604 = vpop.f32.mrb[0].mxu0
          %v3605 = vadd.f32 0.0, %v3604
          %v3606 = vpop.f32.mrb[0].mxu0
          %v3607 = vpop.f32.mrb[0].mxu0
          %v3608 = vadd.f32 0.0, %v3607
          %v3609 = vpop.f32.mrb[0].mxu0
          %3610 = vmatprep.mubr.bf16.mxu0 %v3503
          %3611 = vmatmul.mubr.bf16.gmra.mrb[0].mxu0 %v3502
          %v3612 = vpop.f32.mrb[0].mxu0
          %v3613 = vadd.f32 0.0, %v3612
          %v3614 = vpop.f32.mrb[0].mxu0
          %v3615 = vpop.f32.mrb[0].mxu0
          %v3616 = vadd.f32 0.0, %v3615
          %v3617 = vpop.f32.mrb[0].mxu0
          %3618 = vmatprep.mubr.bf16.mxu0 %v3507
          %3619 = vmatmul.mubr.bf16.gmra.mrb[0].mxu0 %v3506
          %v3620 = vpop.f32.mrb[0].mxu0
          %v3621 = vadd.f32 0.0, %v3620
          %v3622 = vpop.f32.mrb[0].mxu0
          %v3623 = vpop.f32.mrb[0].mxu0
          %v3624 = vadd.f32 0.0, %v3623
          %v3625 = vpop.f32.mrb[0].mxu0
          %3626 = vmatprep.mubr.bf16.mxu0 %v3511
          %3627 = vmatmul.mubr.bf16.gmra.mrb[0].mxu0 %v3510
          %v3628 = vpop.f32.mrb[0].mxu0
          %v3629 = vadd.f32 0.0, %v3628
          %v3630 = vpop.f32.mrb[0].mxu0
          %v3631 = vpop.f32.mrb[0].mxu0
          %v3632 = vadd.f32 0.0, %v3631
          %v3633 = vpop.f32.mrb[0].mxu0
          %3634 = vmatprep.mubr.bf16.mxu0 %v3515
          %3635 = vmatmul.mubr.bf16.gmra.mrb[0].mxu0 %v3514
          %v3636 = vpop.f32.mrb[0].mxu0
          %v3637 = vadd.f32 0.0, %v3636
          %v3638 = vpop.f32.mrb[0].mxu0
          %v3639 = vpop.f32.mrb[0].mxu0
          %v3640 = vadd.f32 0.0, %v3639
          %v3641 = vpop.f32.mrb[0].mxu0
          %3642 = vmatprep.mubr.bf16.mxu0 %v3519
          %3643 = vmatmul.mubr.bf16.gmra.mrb[0].mxu0 %v3518
          %v3644 = vpop.f32.mrb[0].mxu0
          %v3645 = vadd.f32 0.0, %v3644
          %v3646 = vpop.f32.mrb[0].mxu0
          %v3647 = vpop.f32.mrb[0].mxu0
          %v3648 = vadd.f32 0.0, %v3647
          %v3649 = vpop.f32.mrb[0].mxu0
          %3650 = vdwg.mxu0
          %3651 = vmatprep.subr.bf16.mxu0 0
          %3652 = vmatpush1.bf16.msra.mxu0 %v3346
          %3653 = vmatprep.subr.bf16.mxu0 0
          %3654 = vmatpush1.bf16.msra.mxu0 %v3347
          %3655 = vmatprep.subr.bf16.mxu0 0
          %3656 = vmatpush1.bf16.msra.mxu0 %v3348
          %3657 = vmatprep.subr.bf16.mxu0 0
          %3658 = vmatpush1.bf16.msra.mxu0 %v3349
          %3659 = vmatprep.subr.bf16.mxu0 0
          %3660 = vmatpush1.bf16.msra.mxu0 %v3350
          %3661 = vmatprep.subr.bf16.mxu0 0
          %3662 = vmatpush1.bf16.msra.mxu0 %v3351
          %3663 = vmatprep.subr.bf16.mxu0 0
          %3664 = vmatpush1.bf16.msra.mxu0 %v3352
          %3665 = vmatprep.subr.bf16.mxu0 0
          %3666 = vmatpush1.bf16.msra.mxu0 %v3353
          %3667 = vmatprep.subr.bf16.mxu0 0
          %3668 = vmatpush1.bf16.msra.mxu0 %v3354
          %3669 = vmatprep.subr.bf16.mxu0 0
          %3670 = vmatpush1.bf16.msra.mxu0 %v3355
          %3671 = vmatprep.subr.bf16.mxu0 0
          %3672 = vmatpush1.bf16.msra.mxu0 %v3356
          %3673 = vmatprep.subr.bf16.mxu0 0
          %3674 = vmatpush1.bf16.msra.mxu0 %v3357
          %3675 = vmatprep.subr.bf16.mxu0 0
          %3676 = vmatpush1.bf16.msra.mxu0 %v3358
          %3677 = vmatprep.subr.bf16.mxu0 0
          %3678 = vmatpush1.bf16.msra.mxu0 %v3359
          %3679 = vmatprep.subr.bf16.mxu0 0
          %3680 = vmatpush1.bf16.msra.mxu0 %v3360
          %3681 = vmatprep.subr.bf16.mxu0 0
          %3682 = vmatpush1.bf16.msra.mxu0 %v3361
          %3683 = vmatprep.mubr.bf16.mxu0 %v3493
          %3684 = vmatmul.mubr.bf16.gmra.mrb[0].mxu0 %v3492
          %v3685 = vpop.f32.mrb[0].mxu0
          %v3686 = vadd.f32 %v3589, %v3685
          %v3687 = vpop.f32.mrb[0].mxu0
          %v3688 = vpop.f32.mrb[0].mxu0
          %v3689 = vadd.f32 %v3592, %v3688
          %v3690 = vpop.f32.mrb[0].mxu0
          %3691 = vmatprep.mubr.bf16.mxu0 %v3497
          %3692 = vmatmul.mubr.bf16.gmra.mrb[0].mxu0 %v3496
          %v3693 = vpop.f32.mrb[0].mxu0
          %v3694 = vadd.f32 %v3597, %v3693
          %v3695 = vpop.f32.mrb[0].mxu0
          %v3696 = vpop.f32.mrb[0].mxu0
          %v3697 = vadd.f32 %v3600, %v3696
          %v3698 = vpop.f32.mrb[0].mxu0
          %3699 = vmatprep.mubr.bf16.mxu0 %v3501
          %3700 = vmatmul.mubr.bf16.gmra.mrb[0].mxu0 %v3500
          %v3701 = vpop.f32.mrb[0].mxu0
          %v3702 = vadd.f32 %v3605, %v3701
          %v3703 = vpop.f32.mrb[0].mxu0
          %v3704 = vpop.f32.mrb[0].mxu0
          %v3705 = vadd.f32 %v3608, %v3704
          %v3706 = vpop.f32.mrb[0].mxu0
          %3707 = vmatprep.mubr.bf16.mxu0 %v3505
          %3708 = vmatmul.mubr.bf16.gmra.mrb[0].mxu0 %v3504
          %v3709 = vpop.f32.mrb[0].mxu0
          %v3710 = vadd.f32 %v3613, %v3709
          %v3711 = vpop.f32.mrb[0].mxu0
          %v3712 = vpop.f32.mrb[0].mxu0
          %v3713 = vadd.f32 %v3616, %v3712
          %v3714 = vpop.f32.mrb[0].mxu0
          %3715 = vmatprep.mubr.bf16.mxu0 %v3509
          %3716 = vmatmul.mubr.bf16.gmra.mrb[0].mxu0 %v3508
          %v3717 = vpop.f32.mrb[0].mxu0
          %v3718 = vadd.f32 %v3621, %v3717
          %v3719 = vpop.f32.mrb[0].mxu0
          %v3720 = vpop.f32.mrb[0].mxu0
          %v3721 = vadd.f32 %v3624, %v3720
          %v3722 = vpop.f32.mrb[0].mxu0
          %3723 = vmatprep.mubr.bf16.mxu0 %v3513
          %3724 = vmatmul.mubr.bf16.gmra.mrb[0].mxu0 %v3512
          %v3725 = vpop.f32.mrb[0].mxu0
          %v3726 = vadd.f32 %v3629, %v3725
          %v3727 = vpop.f32.mrb[0].mxu0
          %v3728 = vpop.f32.mrb[0].mxu0
          %v3729 = vadd.f32 %v3632, %v3728
          %v3730 = vpop.f32.mrb[0].mxu0
          %3731 = vmatprep.mubr.bf16.mxu0 %v3517
          %3732 = vmatmul.mubr.bf16.gmra.mrb[0].mxu0 %v3516
          %v3733 = vpop.f32.mrb[0].mxu0
          %v3734 = vadd.f32 %v3637, %v3733
          %v3735 = vpop.f32.mrb[0].mxu0
          %v3736 = vpop.f32.mrb[0].mxu0
          %v3737 = vadd.f32 %v3640, %v3736
          %v3738 = vpop.f32.mrb[0].mxu0
          %3739 = vmatprep.mubr.bf16.mxu0 %v3521
          %3740 = vmatmul.mubr.bf16.gmra.mrb[0].mxu0 %v3520
          %v3741 = vpop.f32.mrb[0].mxu0
          %v3742 = vadd.f32 %v3645, %v3741
          %v3743 = vpop.f32.mrb[0].mxu0
          %v3744 = vpop.f32.mrb[0].mxu0
          %v3745 = vadd.f32 %v3648, %v3744
          %v3746 = vpop.f32.mrb[0].mxu0
          %3747 = vdwg.mxu0
          %3748 = vst [vmem:[%s340] sm:$0xff] %v3686
          %3749 = vst [vmem:[%s340 + $0x8] sm:$0xff] %v3689
          %3750 = vst [vmem:[%s340 + $0x10] sm:$0xff] %v3694
          %3751 = vst [vmem:[%s340 + $0x18] sm:$0xff] %v3697
          %3752 = vst [vmem:[%s340 + $0x20] sm:$0xff] %v3702
          %3753 = vst [vmem:[%s340 + $0x28] sm:$0xff] %v3705
          %3754 = vst [vmem:[%s340 + $0x30] sm:$0xff] %v3710
          %3755 = vst [vmem:[%s340 + $0x38] sm:$0xff] %v3713
          %3756 = vst [vmem:[%s340 + $0x40] sm:$0xff] %v3718
          %3757 = vst [vmem:[%s340 + $0x48] sm:$0xff] %v3721
          %3758 = vst [vmem:[%s340 + $0x50] sm:$0xff] %v3726
          %3759 = vst [vmem:[%s340 + $0x58] sm:$0xff] %v3729
          %3760 = vst [vmem:[%s340 + $0x60] sm:$0xff] %v3734
          %3761 = vst [vmem:[%s340 + $0x68] sm:$0xff] %v3737
          %3762 = vst [vmem:[%s340 + $0x70] sm:$0xff] %v3742
          %3763 = vst [vmem:[%s340 + $0x78] sm:$0xff] %v3745
        $region60: #{tpu_custom_call.1} parent=35 // pred_fallthru
          _
        %s3764 = sand.u32 %s159, 1
        %s3765 = scalar_lea.sflag [#allocation5], %s3764
        %s3766 = sand.u32 %s159, 1
        %s3767 = smul.addr %s3766, 128
        %s3768 = scalar_lea.vmem [#allocation11], %s3767
        // Predicated region
        $region61: #{tpu_custom_call.1} parent=35 // pred_check
          %p3769 = pneg %p169
        $region62: #{tpu_custom_call.1} parent=35 // pred_check_branch
          %3771 = sbr.rel (%p3769) target = $region64
        $region63: #{tpu_custom_call.1} parent=35 // pred_region
          %s3773 = ssub.s32 2048, 2048
          %3774 = vsyncadd %s3765, %s3773
          %s3775 = smul.addr %s30, 16
          %s3776 = sadd.s32 %s31, %s3775
          %s3777 = smul.addr %s3776, 128
          %s3778 = scalar_lea.hbm %s4, %s3777
          %s3779 = sshll.u32 %s3768, 4
          %s3780 = int_to_ptr.vmem [resolvable:$true] %s3779
          %3785 = dma.vmem_to_hbm [thread:$0]  %s3780, 2048, %s3778, %s3765, 128, 128, 8
        $region64: #{tpu_custom_call.1} parent=35 // pred_fallthru
          _
      $region36: #{tpu_custom_call.1} parent=5 // pred_fallthru
        _
      %p3786 = scmp.le.s32.totalorder 2, %s20
      // Predicated region
      $region65: #{tpu_custom_call.1} parent=5 // pred_check
        %p3787 = pneg %p3786
      $region66: #{tpu_custom_call.1} parent=5 // pred_check_branch
        %3789 = sbr.rel (%p3787) target = $region68
      $region67: #{tpu_custom_call.1} parent=5 // pred_region
        %s3790 = ssub.s32 %s20, 2
        // Predicated region
        $region69: #{tpu_custom_call.1} parent=67 // pred_check
          %p3791 = pneg %p175
        $region70: #{tpu_custom_call.1} parent=67 // pred_check_branch
          %3793 = sbr.rel (%p3791) target = $region72
        $region71: #{tpu_custom_call.1} parent=67 // pred_region
          %s3794 = sand.u32 %s160, 1
          %s3795 = scalar_lea.sflag [#allocation5], %s3794
          %s3796 = sand.u32 %s160, 1
          %s3797 = smul.addr %s3796, 128
          %s3798 = scalar_lea.vmem [#allocation11], %s3797
          %3799 = dma.done %s3795, 2048
        $region72: #{tpu_custom_call.1} parent=67 // pred_fallthru
          _
      $region68: #{tpu_custom_call.1} parent=5 // pred_fallthru
        _
    $region6: #{tpu_custom_call.1} parent=1 // loop_footer
      %s24 = sadd.s32 1, %s20
    $region7: #{tpu_custom_call.1} parent=1 // loop_footer_branch
      %19 = sbr.rel target = $region3
    $region8: #{tpu_custom_call.1} parent=1 // loop_exit
      _
    %3800 = vsyncpa [#allocation4], 1
    %s3801 = scalar_lea.sflag [#allocation4], 1
    %3802 = vsyncpa %s3801, 1
    %3803 = vsyncpa [#allocation7], 1
    %s3804 = scalar_lea.sflag [#allocation7], 1
    %3805 = vsyncpa %s3804, 1
    %3806 = vsyncpa [#allocation10], 1
    %3807 = vsyncpa [#allocation5], 1
    %s3808 = scalar_lea.sflag [#allocation5], 1
    %3809 = vsyncpa %s3808, 1

</llo_original>
